<compile_context>
chip_gen: v6e
topology: v6e:2x2x1
jax: 0.10.0
libtpu: 0.0.40
codegen_flags: <defaults>
</compile_context>

<pallas_src>
import functools

import jax
import jax.numpy as jnp
from jax.experimental import pallas as pl
from jax.experimental.pallas import tpu as pltpu

LEAKY_SLOPE = 0.01           # nn.LeakyReLU default
BN_EPS = 1e-5                # nn.BatchNorm default
L1_EPS = 1e-12               # F.normalize default
MATMUL_DTYPE = jnp.bfloat16  # MXU operand dtype; accumulation stays float32


# ----------------------------- small helpers --------------------------------

def _full_spec(shape):
    """BlockSpec covering the whole array for a grid=(1,) kernel."""
    nd = len(shape)
    return pl.BlockSpec(tuple(shape), lambda i, nd=nd: (0,) * nd)


def _bn_lrelu_parts(parts, gamma, beta):
    """Train-mode BatchNorm + LeakyReLU; statistics shared across row blocks."""
    n = float(sum(p.shape[0] for p in parts))
    mean = sum(jnp.sum(p, axis=0, keepdims=True) for p in parts) / n
    var = sum(jnp.sum(jnp.square(p - mean), axis=0, keepdims=True)
              for p in parts) / n
    inv = jax.lax.rsqrt(var + BN_EPS)
    out = []
    for p in parts:
        y = (p - mean) * inv * gamma + beta
        out.append(jnp.where(y >= 0, y, LEAKY_SLOPE * y))
    return out


def _eye(n, dtype=jnp.float32):
    row = jax.lax.broadcasted_iota(jnp.int32, (n, n), 0)
    col = jax.lax.broadcasted_iota(jnp.int32, (n, n), 1)
    return jnp.where(row == col, 1.0, 0.0).astype(dtype)


def _selection_matrices(N):
    """0/1 matrices mapping node rows <-> flattened (i, j) pair rows.

    si  (N*N, N): si[r, i]  = 1 iff r // N == i   (gather x_i into pair row r)
    sj  (N*N, N): sj[r, j]  = 1 iff r %  N == j   (gather x_j into pair row r)
    siT (N, N*N): siT[i, r] = 1 iff r // N == i   (scatter pair rows -> (N, N))

    Built from iota + compares only (no integer div/mod, no reshapes of
    unaligned slabs), so the pairwise-row construction is plain VPU/MXU work.
    """
    R = N * N
    r2 = jax.lax.broadcasted_iota(jnp.int32, (R, N), 0)
    c2 = jax.lax.broadcasted_iota(jnp.int32, (R, N), 1)
    lo = c2 * N
    si = jnp.where((r2 >= lo) & (r2 < lo + N), 1.0, 0.0)          # (R, N)
    colf = c2.astype(jnp.float32)
    i_of_r = jnp.sum(si * colf, axis=1, keepdims=True)            # exact f32
    j_of_r = r2[:, :1].astype(jnp.float32) - float(N) * i_of_r    # exact f32
    sj = jnp.where(j_of_r == colf, 1.0, 0.0)                      # (R, N)
    rT = jax.lax.broadcasted_iota(jnp.int32, (N, R), 1)
    cT = jax.lax.broadcasted_iota(jnp.int32, (N, R), 0)
    loT = cT * N
    siT = jnp.where((rT >= loT) & (rT < loT + N), 1.0, 0.0)       # (N, R)
    return si, sj, siT


# ------------------------- Pallas kernels / wrappers -------------------------

def _matmul_kernel(a_ref, w_ref, o_ref):
    o_ref[...] = jnp.dot(a_ref[...].astype(MATMUL_DTYPE), w_ref[...],
                         preferred_element_type=jnp.float32)


def small_matmul(a, w_bf16):
    """Single-block (M,K)@(K,N) matmul — no padding, whole thing fits VMEM."""
    M, K = a.shape
    _, N = w_bf16.shape
    return pl.pallas_call(
        _matmul_kernel,
        out_shape=jax.ShapeDtypeStruct((M, N), jnp.float32),
        grid=(1,),
        in_specs=[_full_spec((M, K)), _full_spec((K, N))],
        out_specs=_full_spec((M, N)),
    )(a, w_bf16)


# ------------------------------ node update ---------------------------------

def _node_update_kernel(nf_ref, ef_ref, w0_ref, g0_ref, b0_ref,
                        w1_ref, g1_ref, b1_ref, out_ref):
    B, N, D = nf_ref.shape
    diag_mask = 1.0 - _eye(N)

    # build [node_feat, aggr0, aggr1] rows per batch (all 2-D, VMEM-resident)
    parts = []
    for b in range(B):                                   # B is a tiny constant
        nf = nf_ref[b]                                   # (N, D)
        eb = ef_ref[b]                                   # (2, N, N)
        feats = [nf]
        for k in range(2):
            e = eb[k] * diag_mask
            e = e / jnp.maximum(jnp.sum(jnp.abs(e), axis=-1, keepdims=True),
                                L1_EPS)
            feats.append(jnp.dot(e.astype(MATMUL_DTYPE),
                                 nf.astype(MATMUL_DTYPE),
                                 preferred_element_type=jnp.float32))
        parts.append(jnp.concatenate(feats, axis=-1))    # (N, 3D)

    # conv0 -> BN -> LeakyReLU -> conv1 -> BN -> LeakyReLU, all fused
    parts = [jnp.dot(p.astype(MATMUL_DTYPE), w0_ref[...],
                     preferred_element_type=jnp.float32) for p in parts]
    parts = _bn_lrelu_parts(parts, g0_ref[...], b0_ref[...])
    parts = [jnp.dot(p.astype(MATMUL_DTYPE), w1_ref[...],
                     preferred_element_type=jnp.float32) for p in parts]
    parts = _bn_lrelu_parts(parts, g1_ref[...], b1_ref[...])
    for b in range(B):
        out_ref[b] = parts[b]


def node_update(node_feat, edge_feat, p):
    """NodeUpdateNetwork.forward as ONE fused pallas_call."""
    B, N, D = node_feat.shape
    d_out = p["w1"].shape[1]
    operands = (node_feat, edge_feat,
                p["w0"], p["g0"], p["b0"], p["w1"], p["g1"], p["b1"])
    return pl.pallas_call(
        _node_update_kernel,
        out_shape=jax.ShapeDtypeStruct((B, N, d_out), jnp.float32),
        grid=(1,),
        in_specs=[_full_spec(o.shape) for o in operands],
        out_specs=_full_spec((B, N, d_out)),
    )(*operands)


# ------------------------------ edge update ---------------------------------

def _edge_update_kernel(nf_ref, ef_ref,
                        w0_ref, g0_ref, b0_ref, w1_ref, g1_ref, b1_ref,
                        w2_ref, g2_ref, b2_ref, w3_ref, g3_ref, b3_ref,
                        wo_ref, bo_ref, out_ref):
    B, N, _ = nf_ref.shape
    si, sj, siT = _selection_matrices(N)
    eye = _eye(N)
    diag_mask = 1.0 - eye

    # ---- pairwise |x_i - x_j| rows + first conv, per batch -----------------
    # (the abs-diff slab never leaves VMEM; selection matmuls are exact f32)
    parts = []
    for b in range(B):
        x = nf_ref[b]                                            # (N, D) f32
        xi = jnp.dot(si, x, preferred_element_type=jnp.float32)  # (N*N, D)
        xj = jnp.dot(sj, x, preferred_element_type=jnp.float32)  # (N*N, D)
        rows = jnp.abs(xi - xj).astype(MATMUL_DTYPE)             # (N*N, D)
        parts.append(jnp.dot(rows, w0_ref[...],
                             preferred_element_type=jnp.float32))
    parts = _bn_lrelu_parts(parts, g0_ref[...], b0_ref[...])

    # ---- remaining sim-MLP layers (BN stats shared over all B*N*N rows) ----
    for w_ref, g_ref, b_ref in ((w1_ref, g1_ref, b1_ref),
                                (w2_ref, g2_ref, b2_ref),
                                (w3_ref, g3_ref, b3_ref)):
        parts = [jnp.dot(p.astype(MATMUL_DTYPE), w_ref[...],
                         preferred_element_type=jnp.float32) for p in parts]
        parts = _bn_lrelu_parts(parts, g_ref[...], b_ref[...])

    # ---- conv_out + sigmoid + edge post-processing, per batch ---------------
    for b in range(B):
        # conv_out (width 1) stays on the VPU/XLU; the narrow result never
        # leaves VMEM.
        logit = jnp.sum(parts[b] * wo_ref[...], axis=-1, keepdims=True) \
            + bo_ref[...]
        sim_rows = 1.0 / (1.0 + jnp.exp(-logit))                 # (N*N, 1)
        # scatter back to the node grid: sim[i, j] = sim_rows[i * N + j]
        sim = jnp.dot(siT, sim_rows * sj,
                      preferred_element_type=jnp.float32)        # (N, N)
        eb = ef_ref[b]                                           # (2, N, N)
        outs = []
        for c in range(2):
            s = sim if c == 0 else 1.0 - sim
            ef = eb[c] * diag_mask
            merge_sum = jnp.sum(ef, axis=-1, keepdims=True)
            w = s * ef
            denom = jnp.maximum(jnp.sum(jnp.abs(w), axis=-1, keepdims=True),
                                L1_EPS)
            e = w / denom * merge_sum
            if c == 0:
                e = e + eye                                      # force edges
            outs.append(e + 1e-6)
        total = outs[0] + outs[1]
        out_ref[b] = jnp.stack([outs[0] / total, outs[1] / total], axis=0)


def edge_update(node_feat, edge_feat, p):
    """EdgeUpdateNetwork.forward (separate_dissimilarity=False) as ONE kernel."""
    B, N, _ = node_feat.shape
    operands = (node_feat, edge_feat,
                p["w0"], p["g0"], p["b0"], p["w1"], p["g1"], p["b1"],
                p["w2"], p["g2"], p["b2"], p["w3"], p["g3"], p["b3"],
                p["w_out"], p["b_out"])
    return pl.pallas_call(
        _edge_update_kernel,
        out_shape=jax.ShapeDtypeStruct((B, 2, N, N), jnp.float32),
        grid=(1,),
        in_specs=[_full_spec(o.shape) for o in operands],
        out_specs=_full_spec((B, 2, N, N)),
        compiler_params=pltpu.CompilerParams(
            vmem_limit_bytes=48 * 1024 * 1024),  # f32 pair slabs live in VMEM
    )(*operands)


# --------------------------------- head --------------------------------------

def _head_kernel(pooled_ref, w_ref, b_ref, g_ref, beta_ref, out_ref):
    h = jnp.dot(pooled_ref[...].astype(MATMUL_DTYPE), w_ref[...],
                preferred_element_type=jnp.float32) + b_ref[...]
    mean = jnp.mean(h, axis=0, keepdims=True)             # BatchNorm1d (train)
    var = jnp.mean(jnp.square(h - mean), axis=0, keepdims=True)
    out_ref[...] = (h - mean) * jax.lax.rsqrt(var + BN_EPS) * g_ref[...] \
        + beta_ref[...]


def head(pooled, params):
    B = pooled.shape[0]
    operands = (pooled, params["fc_w"], params["fc_b"],
                params["bn1d_g"], params["bn1d_b"])
    return pl.pallas_call(
        _head_kernel,
        out_shape=jax.ShapeDtypeStruct((B, 10), jnp.float32),
        grid=(1,),
        in_specs=[_full_spec(o.shape) for o in operands],
        out_specs=_full_spec((B, 10)),
    )(*operands)


# ------------------------------- forward ------------------------------------

def graph_network_forward(x, params, num_layers):
    """GraphNetwork.forward (x in NCHW)."""
    B, C, H, W = x.shape
    N = H * W
    # conv1: 1x1 conv, no bias -> channel-last matmul (node index = h*W + w)
    rows = jnp.transpose(x, (0, 2, 3, 1)).reshape(B * N, C)
    node_feat = small_matmul(rows, params["conv1_w"]).reshape(B, N, -1)
    D = node_feat.shape[-1]

    # edge initialization: channel 0 has diag=1.0, everything else 0.5
    eye = _eye(N)
    base = jnp.stack([0.5 + 0.5 * eye,
                      jnp.full((N, N), 0.5, jnp.float32)], axis=0)   # (2,N,N)
    edge_feat = jnp.broadcast_to(base[None], (B, 2, N, N))

    for l in range(num_layers):
        node_feat = node_update(node_feat, edge_feat, params[f"node{l}"])
        edge_feat = edge_update(node_feat, edge_feat, params[f"edge{l}"])

    # PyTorch does a RAW reshape (B, N, D) -> (B, D, 7, 7) before avg-pooling;
    # reproduce exactly: contiguous reinterpretation, then mean over the 49
    # trailing elements per (b, c).  Free bitcast + one tiny reduce in XLA.
    pooled = node_feat.reshape(B, D, N).mean(axis=-1)     # (B, 256)
    return head(pooled, params)                           # Linear(256,10)+BN1d


# ------------------------------ parameters ----------------------------------

def _init(key, shape, scale=0.05):
    return scale * jax.random.normal(key, shape, jnp.float32)


def init_params(key, in_features, node_features, edge_features, num_layers,
                ratio):
    hide = in_features // ratio            # module hard-codes 256 downstream
    keys = iter(jax.random.split(key, 256))
    p = {"conv1_w": _init(next(keys), (in_features, hide)).astype(MATMUL_DTYPE)}

    # NodeUpdateNetwork: channels hard-coded to 256 in the reference module
    node_in, node_out = [256 * 3, 512], [512, 256]
    # EdgeUpdateNetwork: ratio [2, 2, 1, 1]
    edge_out = [edge_features * r for r in (2, 2, 1, 1)]
    edge_in = [node_features] + edge_out[:-1]

    for l in range(num_layers):
        npar = {}
        for i, (ci, co) in enumerate(zip(node_in, node_out)):
            npar[f"w{i}"] = _init(next(keys), (ci, co)).astype(MATMUL_DTYPE)
            npar[f"g{i}"] = 1.0 + _init(next(keys), (1, co))
            npar[f"b{i}"] = _init(next(keys), (1, co))
        p[f"node{l}"] = npar

        epar = {}
        for i, (ci, co) in enumerate(zip(edge_in, edge_out)):
            epar[f"w{i}"] = _init(next(keys), (ci, co)).astype(MATMUL_DTYPE)
            epar[f"g{i}"] = 1.0 + _init(next(keys), (1, co))
            epar[f"b{i}"] = _init(next(keys), (1, co))
        epar["w_out"] = _init(next(keys), (1, edge_out[-1]))  # conv_out weight
        epar["b_out"] = _init(next(keys), (1, 1))
        p[f"edge{l}"] = epar

    p["fc_w"] = _init(next(keys), (256, 10)).astype(MATMUL_DTYPE)
    p["fc_b"] = _init(next(keys), (1, 10))
    p["bn1d_g"] = 1.0 + _init(next(keys), (1, 10))
    p["bn1d_b"] = _init(next(keys), (1, 10))
    return p


# --------------------------------- main --------------------------------------

if __name__ == "__main__":
    # GraphNetwork(in_features=256, node_features=256, edge_features=32,
    #              num_layers=1, ratio=1); 7x7 map required by the final reshape.
    B = 2
    IN_FEATURES, NODE_FEATURES, EDGE_FEATURES, NUM_LAYERS, RATIO = 256, 256, 32, 1, 1
    H = W = 7

    key = jax.random.PRNGKey(0)
    kx, kp = jax.random.split(key)
    x = jax.random.normal(kx, (B, IN_FEATURES, H, W), jnp.float32)
    params = init_params(kp, IN_FEATURES, NODE_FEATURES, EDGE_FEATURES,
                         NUM_LAYERS, RATIO)

    fwd = jax.jit(functools.partial(graph_network_forward, num_layers=NUM_LAYERS))
    out = fwd(x, params)
    jax.block_until_ready(out)
    assert out.shape == (B, 10) and out.dtype == jnp.float32
    print("KERNEL_OK")
</pallas_src>

<mosaic_0001>
module attributes {stable_mosaic.version = 11 : i64} {
  func.func @_matmul_kernel(%arg0: i32, %arg1: memref<98x256xf32, #tpu.memory_space<vmem>>, %arg2: memref<256x256xbf16, #tpu.memory_space<vmem>>, %arg3: memref<98x256xf32, #tpu.memory_space<vmem>>) attributes {dimension_semantics = [#tpu.dimension_semantics<arbitrary>], iteration_bounds = array<i64: 1>, scalar_prefetch = 0 : i64, scratch_operands = 0 : i64, tpu.core_type = #tpu.core_type<tc>, window_params = [{pipeline_mode = #tpu.pipeline_mode<synchronous>, transform_indices = @transform_0, window_bounds = array<i64: 98, 256>}, {pipeline_mode = #tpu.pipeline_mode<synchronous>, transform_indices = @transform_1, window_bounds = array<i64: 256, 256>}, {pipeline_mode = #tpu.pipeline_mode<synchronous>, transform_indices = @transform_2, window_bounds = array<i64: 98, 256>}]} {
    %c0 = arith.constant 0 : index
    %c0_0 = arith.constant 0 : index
    %0 = vector.load %arg1[%c0, %c0_0] : memref<98x256xf32, #tpu.memory_space<vmem>>, vector<98x256xf32>
    %1 = arith.truncf %0 : vector<98x256xf32> to vector<98x256xbf16>
    %c0_1 = arith.constant 0 : index
    %c0_2 = arith.constant 0 : index
    %2 = vector.load %arg2[%c0_1, %c0_2] : memref<256x256xbf16, #tpu.memory_space<vmem>>, vector<256x256xbf16>
    %cst = arith.constant dense<0.000000e+00> : vector<98x256xf32>
    %3 = tpu.matmul %1, %2, %cst {dimension_numbers = #tpu.dot_dimension_numbers<[1], [0], [0], [1], [0, 0, 1, 1], [], []>} : vector<98x256xbf16>, vector<256x256xbf16>, vector<98x256xf32> -> vector<98x256xf32>
    %c0_3 = arith.constant 0 : index
    %c0_4 = arith.constant 0 : index
    %4 = vector.load %arg3[%c0_3, %c0_4] : memref<98x256xf32, #tpu.memory_space<vmem>>, vector<98x256xf32>
    tpu.vector_store %arg3[%c0_3, %c0_4], %3 {strides = array<i32>} : memref<98x256xf32, #tpu.memory_space<vmem>>, vector<98x256xf32>,
    return
  }
  func.func @transform_0(%arg0: i32) -> (i32, i32) {
    %c0_i32 = arith.constant 0 : i32
    %c0_i32_0 = arith.constant 0 : i32
    %c0_i32_1 = arith.constant 0 : i32
    return %c0_i32, %c0_i32_0 : i32, i32
  }
  func.func @transform_1(%arg0: i32) -> (i32, i32) {
    %c0_i32 = arith.constant 0 : i32
    %c0_i32_0 = arith.constant 0 : i32
    %c0_i32_1 = arith.constant 0 : i32
    return %c0_i32, %c0_i32_0 : i32, i32
  }
  func.func @transform_2(%arg0: i32) -> (i32, i32) {
    %c0_i32 = arith.constant 0 : i32
    %c0_i32_0 = arith.constant 0 : i32
    %c0_i32_1 = arith.constant 0 : i32
    return %c0_i32, %c0_i32_0 : i32, i32
  }
}

module attributes {stable_mosaic.version = 11 : i64} {
  func.func @_node_update_kernel(%arg0: i32, %arg1: memref<2x49x256xf32, #tpu.memory_space<vmem>>, %arg2: memref<2x2x49x49xf32, #tpu.memory_space<vmem>>, %arg3: memref<768x512xbf16, #tpu.memory_space<vmem>>, %arg4: memref<1x512xf32, #tpu.memory_space<vmem>>, %arg5: memref<1x512xf32, #tpu.memory_space<vmem>>, %arg6: memref<512x256xbf16, #tpu.memory_space<vmem>>, %arg7: memref<1x256xf32, #tpu.memory_space<vmem>>, %arg8: memref<1x256xf32, #tpu.memory_space<vmem>>, %arg9: memref<2x49x256xf32, #tpu.memory_space<vmem>>) attributes {dimension_semantics = [#tpu.dimension_semantics<arbitrary>], iteration_bounds = array<i64: 1>, scalar_prefetch = 0 : i64, scratch_operands = 0 : i64, tpu.core_type = #tpu.core_type<tc>, window_params = [{pipeline_mode = #tpu.pipeline_mode<synchronous>, transform_indices = @transform_0, window_bounds = array<i64: 2, 49, 256>}, {pipeline_mode = #tpu.pipeline_mode<synchronous>, transform_indices = @transform_1, window_bounds = array<i64: 2, 2, 49, 49>}, {pipeline_mode = #tpu.pipeline_mode<synchronous>, transform_indices = @transform_2, window_bounds = array<i64: 768, 512>}, {pipeline_mode = #tpu.pipeline_mode<synchronous>, transform_indices = @transform_3, window_bounds = array<i64: 1, 512>}, {pipeline_mode = #tpu.pipeline_mode<synchronous>, transform_indices = @transform_4, window_bounds = array<i64: 1, 512>}, {pipeline_mode = #tpu.pipeline_mode<synchronous>, transform_indices = @transform_5, window_bounds = array<i64: 512, 256>}, {pipeline_mode = #tpu.pipeline_mode<synchronous>, transform_indices = @transform_6, window_bounds = array<i64: 1, 256>}, {pipeline_mode = #tpu.pipeline_mode<synchronous>, transform_indices = @transform_7, window_bounds = array<i64: 1, 256>}, {pipeline_mode = #tpu.pipeline_mode<synchronous>, transform_indices = @transform_8, window_bounds = array<i64: 2, 49, 256>}]} {
    %0 = tpu.iota {dimensions = array<i32: 0>} : vector<49x49xi32>
    %1 = tpu.iota {dimensions = array<i32: 1>} : vector<49x49xi32>
    %2 = arith.cmpi eq, %0, %1 : vector<49x49xi32>
    %cst = arith.constant 1.000000e+00 : f32
    %cst_0 = arith.constant 0.000000e+00 : f32
    %3 = vector.broadcast %cst : f32 to vector<49x49xf32>
    %4 = vector.broadcast %cst_0 : f32 to vector<49x49xf32>
    %5 = arith.select %2, %3, %4 : vector<49x49xi1>, vector<49x49xf32>
    %cst_1 = arith.constant 1.000000e+00 : f32
    %6 = vector.broadcast %cst_1 : f32 to vector<49x49xf32>
    %7 = arith.subf %6, %5 : vector<49x49xf32>
    %c0 = arith.constant 0 : index
    %c0_2 = arith.constant 0 : index
    %c0_3 = arith.constant 0 : index
    %8 = vector.load %arg1[%c0, %c0_2, %c0_3] : memref<2x49x256xf32, #tpu.memory_space<vmem>>, vector<1x49x256xf32>
    %9 = vector.shape_cast %8 : vector<1x49x256xf32> to vector<49x256xf32>
    %c0_4 = arith.constant 0 : index
    %c0_5 = arith.constant 0 : index
    %c0_6 = arith.constant 0 : index
    %c0_7 = arith.constant 0 : index
    %10 = vector.load %arg2[%c0_4, %c0_5, %c0_6, %c0_7] : memref<2x2x49x49xf32, #tpu.memory_space<vmem>>, vector<1x2x49x49xf32>
    %11 = vector.shape_cast %10 : vector<1x2x49x49xf32> to vector<2x49x49xf32>
    %12 = vector.extract_strided_slice %11 {offsets = [0, 0, 0], sizes = [1, 49, 49], strides = [1, 1, 1]} : vector<2x49x49xf32> to vector<1x49x49xf32>
    %13 = vector.shape_cast %12 : vector<1x49x49xf32> to vector<49x49xf32>
    %14 = arith.mulf %13, %7 : vector<49x49xf32>
    %15 = math.absf %14 : vector<49x49xf32>
    %cst_8 = arith.constant dense<0.000000e+00> : vector<49xf32>
    %16 = vector.multi_reduction <add>, %15, %cst_8 [1] : vector<49x49xf32> to vector<49xf32>
    %17 = vector.shape_cast %16 : vector<49xf32> to vector<49x1xf32>
    %cst_9 = arith.constant 9.99999996E-13 : f32
    %18 = vector.broadcast %cst_9 : f32 to vector<49x1xf32>
    %19 = arith.maximumf %17, %18 : vector<49x1xf32>
    %20 = vector.broadcast %19 : vector<49x1xf32> to vector<49x49xf32>
    %21 = arith.divf %14, %20 : vector<49x49xf32>
    %22 = arith.truncf %21 : vector<49x49xf32> to vector<49x49xbf16>
    %23 = arith.truncf %9 : vector<49x256xf32> to vector<49x256xbf16>
    %cst_10 = arith.constant dense<0.000000e+00> : vector<49x256xf32>
    %24 = tpu.matmul %22, %23, %cst_10 {dimension_numbers = #tpu.dot_dimension_numbers<[1], [0], [0], [1], [0, 0, 1, 1], [], []>} : vector<49x49xbf16>, vector<49x256xbf16>, vector<49x256xf32> -> vector<49x256xf32>
    %25 = vector.extract_strided_slice %11 {offsets = [1, 0, 0], sizes = [1, 49, 49], strides = [1, 1, 1]} : vector<2x49x49xf32> to vector<1x49x49xf32>
    %26 = vector.shape_cast %25 : vector<1x49x49xf32> to vector<49x49xf32>
    %27 = arith.mulf %26, %7 : vector<49x49xf32>
    %28 = math.absf %27 : vector<49x49xf32>
    %cst_11 = arith.constant dense<0.000000e+00> : vector<49xf32>
    %29 = vector.multi_reduction <add>, %28, %cst_11 [1] : vector<49x49xf32> to vector<49xf32>
    %30 = vector.shape_cast %29 : vector<49xf32> to vector<49x1xf32>
    %cst_12 = arith.constant 9.99999996E-13 : f32
    %31 = vector.broadcast %cst_12 : f32 to vector<49x1xf32>
    %32 = arith.maximumf %30, %31 : vector<49x1xf32>
    %33 = vector.broadcast %32 : vector<49x1xf32> to vector<49x49xf32>
    %34 = arith.divf %27, %33 : vector<49x49xf32>
    %35 = arith.truncf %34 : vector<49x49xf32> to vector<49x49xbf16>
    %36 = arith.truncf %9 : vector<49x256xf32> to vector<49x256xbf16>
    %cst_13 = arith.constant dense<0.000000e+00> : vector<49x256xf32>
    %37 = tpu.matmul %35, %36, %cst_13 {dimension_numbers = #tpu.dot_dimension_numbers<[1], [0], [0], [1], [0, 0, 1, 1], [], []>} : vector<49x49xbf16>, vector<49x256xbf16>, vector<49x256xf32> -> vector<49x256xf32>
    %38 = tpu.concatenate %9, %24, %37 in 1 : vector<49x256xf32>, vector<49x256xf32>, vector<49x256xf32> -> vector<49x768xf32>
    %c1 = arith.constant 1 : index
    %c0_14 = arith.constant 0 : index
    %c0_15 = arith.constant 0 : index
    %39 = vector.load %arg1[%c1, %c0_14, %c0_15] : memref<2x49x256xf32, #tpu.memory_space<vmem>>, vector<1x49x256xf32>
    %40 = vector.shape_cast %39 : vector<1x49x256xf32> to vector<49x256xf32>
    %c1_16 = arith.constant 1 : index
    %c0_17 = arith.constant 0 : index
    %c0_18 = arith.constant 0 : index
    %c0_19 = arith.constant 0 : index
    %41 = vector.load %arg2[%c1_16, %c0_17, %c0_18, %c0_19] : memref<2x2x49x49xf32, #tpu.memory_space<vmem>>, vector<1x2x49x49xf32>
    %42 = vector.shape_cast %41 : vector<1x2x49x49xf32> to vector<2x49x49xf32>
    %43 = vector.extract_strided_slice %42 {offsets = [0, 0, 0], sizes = [1, 49, 49], strides = [1, 1, 1]} : vector<2x49x49xf32> to vector<1x49x49xf32>
    %44 = vector.shape_cast %43 : vector<1x49x49xf32> to vector<49x49xf32>
    %45 = arith.mulf %44, %7 : vector<49x49xf32>
    %46 = math.absf %45 : vector<49x49xf32>
    %cst_20 = arith.constant dense<0.000000e+00> : vector<49xf32>
    %47 = vector.multi_reduction <add>, %46, %cst_20 [1] : vector<49x49xf32> to vector<49xf32>
    %48 = vector.shape_cast %47 : vector<49xf32> to vector<49x1xf32>
    %cst_21 = arith.constant 9.99999996E-13 : f32
    %49 = vector.broadcast %cst_21 : f32 to vector<49x1xf32>
    %50 = arith.maximumf %48, %49 : vector<49x1xf32>
    %51 = vector.broadcast %50 : vector<49x1xf32> to vector<49x49xf32>
    %52 = arith.divf %45, %51 : vector<49x49xf32>
    %53 = arith.truncf %52 : vector<49x49xf32> to vector<49x49xbf16>
    %54 = arith.truncf %40 : vector<49x256xf32> to vector<49x256xbf16>
    %cst_22 = arith.constant dense<0.000000e+00> : vector<49x256xf32>
    %55 = tpu.matmul %53, %54, %cst_22 {dimension_numbers = #tpu.dot_dimension_numbers<[1], [0], [0], [1], [0, 0, 1, 1], [], []>} : vector<49x49xbf16>, vector<49x256xbf16>, vector<49x256xf32> -> vector<49x256xf32>
    %56 = vector.extract_strided_slice %42 {offsets = [1, 0, 0], sizes = [1, 49, 49], strides = [1, 1, 1]} : vector<2x49x49xf32> to vector<1x49x49xf32>
    %57 = vector.shape_cast %56 : vector<1x49x49xf32> to vector<49x49xf32>
    %58 = arith.mulf %57, %7 : vector<49x49xf32>
    %59 = math.absf %58 : vector<49x49xf32>
    %cst_23 = arith.constant dense<0.000000e+00> : vector<49xf32>
    %60 = vector.multi_reduction <add>, %59, %cst_23 [1] : vector<49x49xf32> to vector<49xf32>
    %61 = vector.shape_cast %60 : vector<49xf32> to vector<49x1xf32>
    %cst_24 = arith.constant 9.99999996E-13 : f32
    %62 = vector.broadcast %cst_24 : f32 to vector<49x1xf32>
    %63 = arith.maximumf %61, %62 : vector<49x1xf32>
    %64 = vector.broadcast %63 : vector<49x1xf32> to vector<49x49xf32>
    %65 = arith.divf %58, %64 : vector<49x49xf32>
    %66 = arith.truncf %65 : vector<49x49xf32> to vector<49x49xbf16>
    %67 = arith.truncf %40 : vector<49x256xf32> to vector<49x256xbf16>
    %cst_25 = arith.constant dense<0.000000e+00> : vector<49x256xf32>
    %68 = tpu.matmul %66, %67, %cst_25 {dimension_numbers = #tpu.dot_dimension_numbers<[1], [0], [0], [1], [0, 0, 1, 1], [], []>} : vector<49x49xbf16>, vector<49x256xbf16>, vector<49x256xf32> -> vector<49x256xf32>
    %69 = tpu.concatenate %40, %55, %68 in 1 : vector<49x256xf32>, vector<49x256xf32>, vector<49x256xf32> -> vector<49x768xf32>
    %70 = arith.truncf %38 : vector<49x768xf32> to vector<49x768xbf16>
    %c0_26 = arith.constant 0 : index
    %c0_27 = arith.constant 0 : index
    %71 = vector.load %arg3[%c0_26, %c0_27] : memref<768x512xbf16, #tpu.memory_space<vmem>>, vector<768x512xbf16>
    %cst_28 = arith.constant dense<0.000000e+00> : vector<49x512xf32>
    %72 = tpu.matmul %70, %71, %cst_28 {dimension_numbers = #tpu.dot_dimension_numbers<[1], [0], [0], [1], [0, 0, 1, 1], [], []>} : vector<49x768xbf16>, vector<768x512xbf16>, vector<49x512xf32> -> vector<49x512xf32>
    %73 = arith.truncf %69 : vector<49x768xf32> to vector<49x768xbf16>
    %c0_29 = arith.constant 0 : index
    %c0_30 = arith.constant 0 : index
    %74 = vector.load %arg3[%c0_29, %c0_30] : memref<768x512xbf16, #tpu.memory_space<vmem>>, vector<768x512xbf16>
    %cst_31 = arith.constant dense<0.000000e+00> : vector<49x512xf32>
    %75 = tpu.matmul %73, %74, %cst_31 {dimension_numbers = #tpu.dot_dimension_numbers<[1], [0], [0], [1], [0, 0, 1, 1], [], []>} : vector<49x768xbf16>, vector<768x512xbf16>, vector<49x512xf32> -> vector<49x512xf32>
    %c0_32 = arith.constant 0 : index
    %c0_33 = arith.constant 0 : index
    %76 = vector.load %arg4[%c0_32, %c0_33] : memref<1x512xf32, #tpu.memory_space<vmem>>, vector<1x512xf32>
    %c0_34 = arith.constant 0 : index
    %c0_35 = arith.constant 0 : index
    %77 = vector.load %arg5[%c0_34, %c0_35] : memref<1x512xf32, #tpu.memory_space<vmem>>, vector<1x512xf32>
    %cst_36 = arith.constant dense<0.000000e+00> : vector<512xf32>
    %78 = vector.multi_reduction <add>, %72, %cst_36 [0] : vector<49x512xf32> to vector<512xf32>
    %79 = vector.shape_cast %78 : vector<512xf32> to vector<1x512xf32>
    %cst_37 = arith.constant 0.000000e+00 : f32
    %80 = vector.broadcast %cst_37 : f32 to vector<1x512xf32>
    %81 = arith.addf %80, %79 : vector<1x512xf32>
    %cst_38 = arith.constant dense<0.000000e+00> : vector<512xf32>
    %82 = vector.multi_reduction <add>, %75, %cst_38 [0] : vector<49x512xf32> to vector<512xf32>
    %83 = vector.shape_cast %82 : vector<512xf32> to vector<1x512xf32>
    %84 = arith.addf %81, %83 : vector<1x512xf32>
    %cst_39 = arith.constant 9.800000e+01 : f32
    %85 = vector.broadcast %cst_39 : f32 to vector<1x512xf32>
    %86 = arith.divf %84, %85 : vector<1x512xf32>
    %87 = vector.broadcast %86 : vector<1x512xf32> to vector<49x512xf32>
    %88 = arith.subf %72, %87 : vector<49x512xf32>
    %89 = arith.mulf %88, %88 : vector<49x512xf32>
    %cst_40 = arith.constant dense<0.000000e+00> : vector<512xf32>
    %90 = vector.multi_reduction <add>, %89, %cst_40 [0] : vector<49x512xf32> to vector<512xf32>
    %91 = vector.shape_cast %90 : vector<512xf32> to vector<1x512xf32>
    %cst_41 = arith.constant 0.000000e+00 : f32
    %92 = vector.broadcast %cst_41 : f32 to vector<1x512xf32>
    %93 = arith.addf %92, %91 : vector<1x512xf32>
    %94 = vector.broadcast %86 : vector<1x512xf32> to vector<49x512xf32>
    %95 = arith.subf %75, %94 : vector<49x512xf32>
    %96 = arith.mulf %95, %95 : vector<49x512xf32>
    %cst_42 = arith.constant dense<0.000000e+00> : vector<512xf32>
    %97 = vector.multi_reduction <add>, %96, %cst_42 [0] : vector<49x512xf32> to vector<512xf32>
    %98 = vector.shape_cast %97 : vector<512xf32> to vector<1x512xf32>
    %99 = arith.addf %93, %98 : vector<1x512xf32>
    %cst_43 = arith.constant 9.800000e+01 : f32
    %100 = vector.broadcast %cst_43 : f32 to vector<1x512xf32>
    %101 = arith.divf %99, %100 : vector<1x512xf32>
    %cst_44 = arith.constant 9.99999974E-6 : f32
    %102 = vector.broadcast %cst_44 : f32 to vector<1x512xf32>
    %103 = arith.addf %101, %102 : vector<1x512xf32>
    %104 = math.rsqrt %103 : vector<1x512xf32>
    %105 = vector.broadcast %86 : vector<1x512xf32> to vector<49x512xf32>
    %106 = arith.subf %72, %105 : vector<49x512xf32>
    %107 = vector.broadcast %104 : vector<1x512xf32> to vector<49x512xf32>
    %108 = arith.mulf %106, %107 : vector<49x512xf32>
    %109 = vector.broadcast %76 : vector<1x512xf32> to vector<49x512xf32>
    %110 = arith.mulf %108, %109 : vector<49x512xf32>
    %111 = vector.broadcast %77 : vector<1x512xf32> to vector<49x512xf32>
    %112 = arith.addf %110, %111 : vector<49x512xf32>
    %cst_45 = arith.constant 0.000000e+00 : f32
    %113 = vector.broadcast %cst_45 : f32 to vector<49x512xf32>
    %114 = arith.cmpf oge, %112, %113 : vector<49x512xf32>
    %cst_46 = arith.constant 0.00999999977 : f32
    %115 = vector.broadcast %cst_46 : f32 to vector<49x512xf32>
    %116 = arith.mulf %115, %112 : vector<49x512xf32>
    %117 = arith.select %114, %112, %116 : vector<49x512xi1>, vector<49x512xf32>
    %118 = vector.broadcast %86 : vector<1x512xf32> to vector<49x512xf32>
    %119 = arith.subf %75, %118 : vector<49x512xf32>
    %120 = vector.broadcast %104 : vector<1x512xf32> to vector<49x512xf32>
    %121 = arith.mulf %119, %120 : vector<49x512xf32>
    %122 = vector.broadcast %76 : vector<1x512xf32> to vector<49x512xf32>
    %123 = arith.mulf %121, %122 : vector<49x512xf32>
    %124 = vector.broadcast %77 : vector<1x512xf32> to vector<49x512xf32>
    %125 = arith.addf %123, %124 : vector<49x512xf32>
    %cst_47 = arith.constant 0.000000e+00 : f32
    %126 = vector.broadcast %cst_47 : f32 to vector<49x512xf32>
    %127 = arith.cmpf oge, %125, %126 : vector<49x512xf32>
    %cst_48 = arith.constant 0.00999999977 : f32
    %128 = vector.broadcast %cst_48 : f32 to vector<49x512xf32>
    %129 = arith.mulf %128, %125 : vector<49x512xf32>
    %130 = arith.select %127, %125, %129 : vector<49x512xi1>, vector<49x512xf32>
    %131 = arith.truncf %117 : vector<49x512xf32> to vector<49x512xbf16>
    %c0_49 = arith.constant 0 : index
    %c0_50 = arith.constant 0 : index
    %132 = vector.load %arg6[%c0_49, %c0_50] : memref<512x256xbf16, #tpu.memory_space<vmem>>, vector<512x256xbf16>
    %cst_51 = arith.constant dense<0.000000e+00> : vector<49x256xf32>
    %133 = tpu.matmul %131, %132, %cst_51 {dimension_numbers = #tpu.dot_dimension_numbers<[1], [0], [0], [1], [0, 0, 1, 1], [], []>} : vector<49x512xbf16>, vector<512x256xbf16>, vector<49x256xf32> -> vector<49x256xf32>
    %134 = arith.truncf %130 : vector<49x512xf32> to vector<49x512xbf16>
    %c0_52 = arith.constant 0 : index
    %c0_53 = arith.constant 0 : index
    %135 = vector.load %arg6[%c0_52, %c0_53] : memref<512x256xbf16, #tpu.memory_space<vmem>>, vector<512x256xbf16>
    %cst_54 = arith.constant dense<0.000000e+00> : vector<49x256xf32>
    %136 = tpu.matmul %134, %135, %cst_54 {dimension_numbers = #tpu.dot_dimension_numbers<[1], [0], [0], [1], [0, 0, 1, 1], [], []>} : vector<49x512xbf16>, vector<512x256xbf16>, vector<49x256xf32> -> vector<49x256xf32>
    %c0_55 = arith.constant 0 : index
    %c0_56 = arith.constant 0 : index
    %137 = vector.load %arg7[%c0_55, %c0_56] : memref<1x256xf32, #tpu.memory_space<vmem>>, vector<1x256xf32>
    %c0_57 = arith.constant 0 : index
    %c0_58 = arith.constant 0 : index
    %138 = vector.load %arg8[%c0_57, %c0_58] : memref<1x256xf32, #tpu.memory_space<vmem>>, vector<1x256xf32>
    %cst_59 = arith.constant dense<0.000000e+00> : vector<256xf32>
    %139 = vector.multi_reduction <add>, %133, %cst_59 [0] : vector<49x256xf32> to vector<256xf32>
    %140 = vector.shape_cast %139 : vector<256xf32> to vector<1x256xf32>
    %cst_60 = arith.constant 0.000000e+00 : f32
    %141 = vector.broadcast %cst_60 : f32 to vector<1x256xf32>
    %142 = arith.addf %141, %140 : vector<1x256xf32>
    %cst_61 = arith.constant dense<0.000000e+00> : vector<256xf32>
    %143 = vector.multi_reduction <add>, %136, %cst_61 [0] : vector<49x256xf32> to vector<256xf32>
    %144 = vector.shape_cast %143 : vector<256xf32> to vector<1x256xf32>
    %145 = arith.addf %142, %144 : vector<1x256xf32>
    %cst_62 = arith.constant 9.800000e+01 : f32
    %146 = vector.broadcast %cst_62 : f32 to vector<1x256xf32>
    %147 = arith.divf %145, %146 : vector<1x256xf32>
    %148 = vector.broadcast %147 : vector<1x256xf32> to vector<49x256xf32>
    %149 = arith.subf %133, %148 : vector<49x256xf32>
    %150 = arith.mulf %149, %149 : vector<49x256xf32>
    %cst_63 = arith.constant dense<0.000000e+00> : vector<256xf32>
    %151 = vector.multi_reduction <add>, %150, %cst_63 [0] : vector<49x256xf32> to vector<256xf32>
    %152 = vector.shape_cast %151 : vector<256xf32> to vector<1x256xf32>
    %cst_64 = arith.constant 0.000000e+00 : f32
    %153 = vector.broadcast %cst_64 : f32 to vector<1x256xf32>
    %154 = arith.addf %153, %152 : vector<1x256xf32>
    %155 = vector.broadcast %147 : vector<1x256xf32> to vector<49x256xf32>
    %156 = arith.subf %136, %155 : vector<49x256xf32>
    %157 = arith.mulf %156, %156 : vector<49x256xf32>
    %cst_65 = arith.constant dense<0.000000e+00> : vector<256xf32>
    %158 = vector.multi_reduction <add>, %157, %cst_65 [0] : vector<49x256xf32> to vector<256xf32>
    %159 = vector.shape_cast %158 : vector<256xf32> to vector<1x256xf32>
    %160 = arith.addf %154, %159 : vector<1x256xf32>
    %cst_66 = arith.constant 9.800000e+01 : f32
    %161 = vector.broadcast %cst_66 : f32 to vector<1x256xf32>
    %162 = arith.divf %160, %161 : vector<1x256xf32>
    %cst_67 = arith.constant 9.99999974E-6 : f32
    %163 = vector.broadcast %cst_67 : f32 to vector<1x256xf32>
    %164 = arith.addf %162, %163 : vector<1x256xf32>
    %165 = math.rsqrt %164 : vector<1x256xf32>
    %166 = vector.broadcast %147 : vector<1x256xf32> to vector<49x256xf32>
    %167 = arith.subf %133, %166 : vector<49x256xf32>
    %168 = vector.broadcast %165 : vector<1x256xf32> to vector<49x256xf32>
    %169 = arith.mulf %167, %168 : vector<49x256xf32>
    %170 = vector.broadcast %137 : vector<1x256xf32> to vector<49x256xf32>
    %171 = arith.mulf %169, %170 : vector<49x256xf32>
    %172 = vector.broadcast %138 : vector<1x256xf32> to vector<49x256xf32>
    %173 = arith.addf %171, %172 : vector<49x256xf32>
    %cst_68 = arith.constant 0.000000e+00 : f32
    %174 = vector.broadcast %cst_68 : f32 to vector<49x256xf32>
    %175 = arith.cmpf oge, %173, %174 : vector<49x256xf32>
    %cst_69 = arith.constant 0.00999999977 : f32
    %176 = vector.broadcast %cst_69 : f32 to vector<49x256xf32>
    %177 = arith.mulf %176, %173 : vector<49x256xf32>
    %178 = arith.select %175, %173, %177 : vector<49x256xi1>, vector<49x256xf32>
    %179 = vector.broadcast %147 : vector<1x256xf32> to vector<49x256xf32>
    %180 = arith.subf %136, %179 : vector<49x256xf32>
    %181 = vector.broadcast %165 : vector<1x256xf32> to vector<49x256xf32>
    %182 = arith.mulf %180, %181 : vector<49x256xf32>
    %183 = vector.broadcast %137 : vector<1x256xf32> to vector<49x256xf32>
    %184 = arith.mulf %182, %183 : vector<49x256xf32>
    %185 = vector.broadcast %138 : vector<1x256xf32> to vector<49x256xf32>
    %186 = arith.addf %184, %185 : vector<49x256xf32>
    %cst_70 = arith.constant 0.000000e+00 : f32
    %187 = vector.broadcast %cst_70 : f32 to vector<49x256xf32>
    %188 = arith.cmpf oge, %186, %187 : vector<49x256xf32>
    %cst_71 = arith.constant 0.00999999977 : f32
    %189 = vector.broadcast %cst_71 : f32 to vector<49x256xf32>
    %190 = arith.mulf %189, %186 : vector<49x256xf32>
    %191 = arith.select %188, %186, %190 : vector<49x256xi1>, vector<49x256xf32>
    %c0_72 = arith.constant 0 : index
    %c0_73 = arith.constant 0 : index
    %c0_74 = arith.constant 0 : index
    %192 = vector.load %arg9[%c0_72, %c0_73, %c0_74] : memref<2x49x256xf32, #tpu.memory_space<vmem>>, vector<1x49x256xf32>
    %193 = vector.shape_cast %192 : vector<1x49x256xf32> to vector<49x256xf32>
    %194 = vector.shape_cast %178 : vector<49x256xf32> to vector<1x49x256xf32>
    tpu.vector_store %arg9[%c0_72, %c0_73, %c0_74], %194 {strides = array<i32>} : memref<2x49x256xf32, #tpu.memory_space<vmem>>, vector<1x49x256xf32>,
    %c1_75 = arith.constant 1 : index
    %c0_76 = arith.constant 0 : index
    %c0_77 = arith.constant 0 : index
    %195 = vector.load %arg9[%c1_75, %c0_76, %c0_77] : memref<2x49x256xf32, #tpu.memory_space<vmem>>, vector<1x49x256xf32>
    %196 = vector.shape_cast %195 : vector<1x49x256xf32> to vector<49x256xf32>
    %197 = vector.shape_cast %191 : vector<49x256xf32> to vector<1x49x256xf32>
    tpu.vector_store %arg9[%c1_75, %c0_76, %c0_77], %197 {strides = array<i32>} : memref<2x49x256xf32, #tpu.memory_space<vmem>>, vector<1x49x256xf32>,
    return
  }
  func.func @transform_0(%arg0: i32) -> (i32, i32, i32) {
    %c0_i32 = arith.constant 0 : i32
    %c0_i32_0 = arith.constant 0 : i32
    %c0_i32_1 = arith.constant 0 : i32
    %c0_i32_2 = arith.constant 0 : i32
    return %c0_i32, %c0_i32_0, %c0_i32_1 : i32, i32, i32
  }
  func.func @transform_1(%arg0: i32) -> (i32, i32, i32, i32) {
    %c0_i32 = arith.constant 0 : i32
    %c0_i32_0 = arith.constant 0 : i32
    %c0_i32_1 = arith.constant 0 : i32
    %c0_i32_2 = arith.constant 0 : i32
    %c0_i32_3 = arith.constant 0 : i32
    return %c0_i32, %c0_i32_0, %c0_i32_1, %c0_i32_2 : i32, i32, i32, i32
  }
  func.func @transform_2(%arg0: i32) -> (i32, i32) {
    %c0_i32 = arith.constant 0 : i32
    %c0_i32_0 = arith.constant 0 : i32
    %c0_i32_1 = arith.constant 0 : i32
    return %c0_i32, %c0_i32_0 : i32, i32
  }
  func.func @transform_3(%arg0: i32) -> (i32, i32) {
    %c0_i32 = arith.constant 0 : i32
    %c0_i32_0 = arith.constant 0 : i32
    %c0_i32_1 = arith.constant 0 : i32
    return %c0_i32, %c0_i32_0 : i32, i32
  }
  func.func @transform_4(%arg0: i32) -> (i32, i32) {
    %c0_i32 = arith.constant 0 : i32
    %c0_i32_0 = arith.constant 0 : i32
    %c0_i32_1 = arith.constant 0 : i32
    return %c0_i32, %c0_i32_0 : i32, i32
  }
  func.func @transform_5(%arg0: i32) -> (i32, i32) {
    %c0_i32 = arith.constant 0 : i32
    %c0_i32_0 = arith.constant 0 : i32
    %c0_i32_1 = arith.constant 0 : i32
    return %c0_i32, %c0_i32_0 : i32, i32
  }
  func.func @transform_6(%arg0: i32) -> (i32, i32) {
    %c0_i32 = arith.constant 0 : i32
    %c0_i32_0 = arith.constant 0 : i32
    %c0_i32_1 = arith.constant 0 : i32
    return %c0_i32, %c0_i32_0 : i32, i32
  }
  func.func @transform_7(%arg0: i32) -> (i32, i32) {
    %c0_i32 = arith.constant 0 : i32
    %c0_i32_0 = arith.constant 0 : i32
    %c0_i32_1 = arith.constant 0 : i32
    return %c0_i32, %c0_i32_0 : i32, i32
  }
  func.func @transform_8(%arg0: i32) -> (i32, i32, i32) {
    %c0_i32 = arith.constant 0 : i32
    %c0_i32_0 = arith.constant 0 : i32
    %c0_i32_1 = arith.constant 0 : i32
    %c0_i32_2 = arith.constant 0 : i32
    return %c0_i32, %c0_i32_0, %c0_i32_1 : i32, i32, i32
  }
}

module attributes {stable_mosaic.version = 11 : i64} {
  func.func @_head_kernel(%arg0: i32, %arg1: memref<2x256xf32, #tpu.memory_space<vmem>>, %arg2: memref<256x10xbf16, #tpu.memory_space<vmem>>, %arg3: memref<1x10xf32, #tpu.memory_space<vmem>>, %arg4: memref<1x10xf32, #tpu.memory_space<vmem>>, %arg5: memref<1x10xf32, #tpu.memory_space<vmem>>, %arg6: memref<2x10xf32, #tpu.memory_space<vmem>>) attributes {dimension_semantics = [#tpu.dimension_semantics<arbitrary>], iteration_bounds = array<i64: 1>, scalar_prefetch = 0 : i64, scratch_operands = 0 : i64, tpu.core_type = #tpu.core_type<tc>, window_params = [{pipeline_mode = #tpu.pipeline_mode<synchronous>, transform_indices = @transform_0, window_bounds = array<i64: 2, 256>}, {pipeline_mode = #tpu.pipeline_mode<synchronous>, transform_indices = @transform_1, window_bounds = array<i64: 256, 10>}, {pipeline_mode = #tpu.pipeline_mode<synchronous>, transform_indices = @transform_2, window_bounds = array<i64: 1, 10>}, {pipeline_mode = #tpu.pipeline_mode<synchronous>, transform_indices = @transform_3, window_bounds = array<i64: 1, 10>}, {pipeline_mode = #tpu.pipeline_mode<synchronous>, transform_indices = @transform_4, window_bounds = array<i64: 1, 10>}, {pipeline_mode = #tpu.pipeline_mode<synchronous>, transform_indices = @transform_5, window_bounds = array<i64: 2, 10>}]} {
    %c0 = arith.constant 0 : index
    %c0_0 = arith.constant 0 : index
    %0 = vector.load %arg1[%c0, %c0_0] : memref<2x256xf32, #tpu.memory_space<vmem>>, vector<2x256xf32>
    %1 = arith.truncf %0 : vector<2x256xf32> to vector<2x256xbf16>
    %c0_1 = arith.constant 0 : index
    %c0_2 = arith.constant 0 : index
    %2 = vector.load %arg2[%c0_1, %c0_2] : memref<256x10xbf16, #tpu.memory_space<vmem>>, vector<256x10xbf16>
    %cst = arith.constant dense<0.000000e+00> : vector<2x10xf32>
    %3 = tpu.matmul %1, %2, %cst {dimension_numbers = #tpu.dot_dimension_numbers<[1], [0], [0], [1], [0, 0, 1, 1], [], []>} : vector<2x256xbf16>, vector<256x10xbf16>, vector<2x10xf32> -> vector<2x10xf32>
    %c0_3 = arith.constant 0 : index
    %c0_4 = arith.constant 0 : index
    %4 = vector.load %arg3[%c0_3, %c0_4] : memref<1x10xf32, #tpu.memory_space<vmem>>, vector<1x10xf32>
    %5 = vector.broadcast %4 : vector<1x10xf32> to vector<2x10xf32>
    %6 = arith.addf %3, %5 : vector<2x10xf32>
    %cst_5 = arith.constant dense<0.000000e+00> : vector<10xf32>
    %7 = vector.multi_reduction <add>, %6, %cst_5 [0] : vector<2x10xf32> to vector<10xf32>
    %8 = vector.shape_cast %7 : vector<10xf32> to vector<1x10xf32>
    %cst_6 = arith.constant 2.000000e+00 : f32
    %9 = vector.broadcast %cst_6 : f32 to vector<1x10xf32>
    %10 = arith.divf %8, %9 : vector<1x10xf32>
    %11 = vector.broadcast %10 : vector<1x10xf32> to vector<2x10xf32>
    %12 = arith.subf %6, %11 : vector<2x10xf32>
    %13 = arith.mulf %12, %12 : vector<2x10xf32>
    %cst_7 = arith.constant dense<0.000000e+00> : vector<10xf32>
    %14 = vector.multi_reduction <add>, %13, %cst_7 [0] : vector<2x10xf32> to vector<10xf32>
    %15 = vector.shape_cast %14 : vector<10xf32> to vector<1x10xf32>
    %cst_8 = arith.constant 2.000000e+00 : f32
    %16 = vector.broadcast %cst_8 : f32 to vector<1x10xf32>
    %17 = arith.divf %15, %16 : vector<1x10xf32>
    %18 = vector.broadcast %10 : vector<1x10xf32> to vector<2x10xf32>
    %19 = arith.subf %6, %18 : vector<2x10xf32>
    %cst_9 = arith.constant 9.99999974E-6 : f32
    %20 = vector.broadcast %cst_9 : f32 to vector<1x10xf32>
    %21 = arith.addf %17, %20 : vector<1x10xf32>
    %22 = math.rsqrt %21 : vector<1x10xf32>
    %23 = vector.broadcast %22 : vector<1x10xf32> to vector<2x10xf32>
    %24 = arith.mulf %19, %23 : vector<2x10xf32>
    %c0_10 = arith.constant 0 : index
    %c0_11 = arith.constant 0 : index
    %25 = vector.load %arg4[%c0_10, %c0_11] : memref<1x10xf32, #tpu.memory_space<vmem>>, vector<1x10xf32>
    %26 = vector.broadcast %25 : vector<1x10xf32> to vector<2x10xf32>
    %27 = arith.mulf %24, %26 : vector<2x10xf32>
    %c0_12 = arith.constant 0 : index
    %c0_13 = arith.constant 0 : index
    %28 = vector.load %arg5[%c0_12, %c0_13] : memref<1x10xf32, #tpu.memory_space<vmem>>, vector<1x10xf32>
    %29 = vector.broadcast %28 : vector<1x10xf32> to vector<2x10xf32>
    %30 = arith.addf %27, %29 : vector<2x10xf32>
    %c0_14 = arith.constant 0 : index
    %c0_15 = arith.constant 0 : index
    %31 = vector.load %arg6[%c0_14, %c0_15] : memref<2x10xf32, #tpu.memory_space<vmem>>, vector<2x10xf32>
    tpu.vector_store %arg6[%c0_14, %c0_15], %30 {strides = array<i32>} : memref<2x10xf32, #tpu.memory_space<vmem>>, vector<2x10xf32>,
    return
  }
  func.func @transform_0(%arg0: i32) -> (i32, i32) {
    %c0_i32 = arith.constant 0 : i32
    %c0_i32_0 = arith.constant 0 : i32
    %c0_i32_1 = arith.constant 0 : i32
    return %c0_i32, %c0_i32_0 : i32, i32
  }
  func.func @transform_1(%arg0: i32) -> (i32, i32) {
    %c0_i32 = arith.constant 0 : i32
    %c0_i32_0 = arith.constant 0 : i32
    %c0_i32_1 = arith.constant 0 : i32
    return %c0_i32, %c0_i32_0 : i32, i32
  }
  func.func @transform_2(%arg0: i32) -> (i32, i32) {
    %c0_i32 = arith.constant 0 : i32
    %c0_i32_0 = arith.constant 0 : i32
    %c0_i32_1 = arith.constant 0 : i32
    return %c0_i32, %c0_i32_0 : i32, i32
  }
  func.func @transform_3(%arg0: i32) -> (i32, i32) {
    %c0_i32 = arith.constant 0 : i32
    %c0_i32_0 = arith.constant 0 : i32
    %c0_i32_1 = arith.constant 0 : i32
    return %c0_i32, %c0_i32_0 : i32, i32
  }
  func.func @transform_4(%arg0: i32) -> (i32, i32) {
    %c0_i32 = arith.constant 0 : i32
    %c0_i32_0 = arith.constant 0 : i32
    %c0_i32_1 = arith.constant 0 : i32
    return %c0_i32, %c0_i32_0 : i32, i32
  }
  func.func @transform_5(%arg0: i32) -> (i32, i32) {
    %c0_i32 = arith.constant 0 : i32
    %c0_i32_0 = arith.constant 0 : i32
    %c0_i32_1 = arith.constant 0 : i32
    return %c0_i32, %c0_i32_0 : i32, i32
  }
}

</mosaic_0001>

<llo_original>
// kernel: graph_network_forward.3
$region0: #{graph_network_forward.3}
  #allocation0 [shape = 'u32[]', space=smem, size = 0x4, offset = 0x4, fixed_abs, tag = 'smem constant byte address 0x4 - core index']
  #allocation1 [shape = 'u32[144,128]{1,0:T(1,128)}', space=vmem, size = 0x12000, scoped, tag = 'internal scratch']
  %s0 = inlined_call_operand.vmem [shape: f32[98,256], index: 0, kind: input, shape index: {}]
  %s1 = inlined_call_operand.vmem [shape: bf16[256,256], index: 1, kind: input, shape index: {}]
  %s2 = inlined_call_operand.vmem [shape: f32[98,256], index: 2, kind: output, shape index: {}]
  %s3 = sld [smem:[#allocation0]]
  $region18: #{graph_network_forward.3} parent=0
    _
  %s5 = ssub.s32 1, %s3
  %s6 = scalar_select 0, %s5, %s3
  // Predicated region
  $region2: #{graph_network_forward.3} parent=0 // pred_check
    _
  $region3: #{graph_network_forward.3} parent=0 // pred_check_branch
    %8 = sbr.rel (0) target = $region5
  $region4: #{graph_network_forward.3} parent=0 // pred_region
    _
  $region5: #{graph_network_forward.3} parent=0 // pred_fallthru
    _
  // Predicated region
  $region6: #{graph_network_forward.3} parent=0 // pred_check
    _
  $region7: #{graph_network_forward.3} parent=0 // pred_check_branch
    %10 = sbr.rel (0) target = $region9
  $region8: #{graph_network_forward.3} parent=0 // pred_region
    _
  $region9: #{graph_network_forward.3} parent=0 // pred_fallthru
    _
  %v11 = vld [vmem:[%s0] sm:$0xff]
  %v12 = vld [vmem:[%s0 + $0x8] sm:$0xff]
  %v13 = vld [vmem:[%s0 + $0x10] sm:$0xff]
  %v14 = vld [vmem:[%s0 + $0x18] sm:$0xff]
  %v15 = vld [vmem:[%s0 + $0x20] sm:$0xff]
  %v16 = vld [vmem:[%s0 + $0x28] sm:$0xff]
  %v17 = vld [vmem:[%s0 + $0x30] sm:$0xff]
  %v18 = vld [vmem:[%s0 + $0x38] sm:$0xff]
  %v19 = vld [vmem:[%s0 + $0x40] sm:$0xff]
  %v20 = vld [vmem:[%s0 + $0x48] sm:$0xff]
  %v21 = vld [vmem:[%s0 + $0x50] sm:$0xff]
  %v22 = vld [vmem:[%s0 + $0x58] sm:$0xff]
  %v23 = vld [vmem:[%s0 + $0x60] sm:$0xff]
  %v24 = vld [vmem:[%s0 + $0x68] sm:$0xff]
  %v25 = vld [vmem:[%s0 + $0x70] sm:$0xff]
  %v26 = vld [vmem:[%s0 + $0x78] sm:$0xff]
  %v27 = vld [vmem:[%s0 + $0x80] sm:$0xff]
  %v28 = vld [vmem:[%s0 + $0x88] sm:$0xff]
  %v29 = vld [vmem:[%s0 + $0x90] sm:$0xff]
  %v30 = vld [vmem:[%s0 + $0x98] sm:$0xff]
  %v31 = vld [vmem:[%s0 + $0xa0] sm:$0xff]
  %v32 = vld [vmem:[%s0 + $0xa8] sm:$0xff]
  %v33 = vld [vmem:[%s0 + $0xb0] sm:$0xff]
  %v34 = vld [vmem:[%s0 + $0xb8] sm:$0xff]
  %v35 = vld [vmem:[%s0 + $0xc0] sm:$0x3]
  %v36 = vld [vmem:[%s0 + $0xc8] sm:$0x3]
  %v37 = vpack.c.bf16 %v13, %v11
  %v38 = vpack.c.bf16 %v14, %v12
  %v39 = vpack.c.bf16 %v17, %v15
  %v40 = vpack.c.bf16 %v18, %v16
  %v41 = vpack.c.bf16 %v21, %v19
  %v42 = vpack.c.bf16 %v22, %v20
  %v43 = vpack.c.bf16 %v25, %v23
  %v44 = vpack.c.bf16 %v26, %v24
  %v45 = vpack.c.bf16 %v29, %v27
  %v46 = vpack.c.bf16 %v30, %v28
  %v47 = vpack.c.bf16 %v33, %v31
  %v48 = vpack.c.bf16 %v34, %v32
  %v49 = vpack.c.bf16 %v35, %v35
  %v50 = vpack.c.bf16 %v36, %v36
  %v51 = vld [vmem:[%s1] sm:$0xff]
  %v52 = vld [vmem:[%s1 + $0x8] sm:$0xff]
  %v53 = vld [vmem:[%s1 + $0x10] sm:$0xff]
  %v54 = vld [vmem:[%s1 + $0x18] sm:$0xff]
  %v55 = vld [vmem:[%s1 + $0x20] sm:$0xff]
  %v56 = vld [vmem:[%s1 + $0x28] sm:$0xff]
  %v57 = vld [vmem:[%s1 + $0x30] sm:$0xff]
  %v58 = vld [vmem:[%s1 + $0x38] sm:$0xff]
  %v59 = vld [vmem:[%s1 + $0x40] sm:$0xff]
  %v60 = vld [vmem:[%s1 + $0x48] sm:$0xff]
  %v61 = vld [vmem:[%s1 + $0x50] sm:$0xff]
  %v62 = vld [vmem:[%s1 + $0x58] sm:$0xff]
  %v63 = vld [vmem:[%s1 + $0x60] sm:$0xff]
  %v64 = vld [vmem:[%s1 + $0x68] sm:$0xff]
  %v65 = vld [vmem:[%s1 + $0x70] sm:$0xff]
  %v66 = vld [vmem:[%s1 + $0x78] sm:$0xff]
  %v67 = vld [vmem:[%s1 + $0x80] sm:$0xff]
  %v68 = vld [vmem:[%s1 + $0x88] sm:$0xff]
  %v69 = vld [vmem:[%s1 + $0x90] sm:$0xff]
  %v70 = vld [vmem:[%s1 + $0x98] sm:$0xff]
  %v71 = vld [vmem:[%s1 + $0xa0] sm:$0xff]
  %v72 = vld [vmem:[%s1 + $0xa8] sm:$0xff]
  %v73 = vld [vmem:[%s1 + $0xb0] sm:$0xff]
  %v74 = vld [vmem:[%s1 + $0xb8] sm:$0xff]
  %v75 = vld [vmem:[%s1 + $0xc0] sm:$0xff]
  %v76 = vld [vmem:[%s1 + $0xc8] sm:$0xff]
  %v77 = vld [vmem:[%s1 + $0xd0] sm:$0xff]
  %v78 = vld [vmem:[%s1 + $0xd8] sm:$0xff]
  %v79 = vld [vmem:[%s1 + $0xe0] sm:$0xff]
  %v80 = vld [vmem:[%s1 + $0xe8] sm:$0xff]
  %v81 = vld [vmem:[%s1 + $0xf0] sm:$0xff]
  %v82 = vld [vmem:[%s1 + $0xf8] sm:$0xff]
  %v115 = vunpack.c.l.b16 %v51
  %v116 = vunpack.c.h.b16 %v51
  %v117 = vunpack.c.l.b16 %v52
  %v118 = vunpack.c.h.b16 %v52
  %v119 = vunpack.c.l.b16 %v53
  %v120 = vunpack.c.h.b16 %v53
  %v121 = vunpack.c.l.b16 %v54
  %v122 = vunpack.c.h.b16 %v54
  %v123 = vunpack.c.l.b16 %v55
  %v124 = vunpack.c.h.b16 %v55
  %v125 = vunpack.c.l.b16 %v56
  %v126 = vunpack.c.h.b16 %v56
  %v127 = vunpack.c.l.b16 %v57
  %v128 = vunpack.c.h.b16 %v57
  %v129 = vunpack.c.l.b16 %v58
  %v130 = vunpack.c.h.b16 %v58
  %v131 = vunpack.c.l.b16 %v59
  %v132 = vunpack.c.h.b16 %v59
  %v133 = vunpack.c.l.b16 %v60
  %v134 = vunpack.c.h.b16 %v60
  %v135 = vunpack.c.l.b16 %v61
  %v136 = vunpack.c.h.b16 %v61
  %v137 = vunpack.c.l.b16 %v62
  %v138 = vunpack.c.h.b16 %v62
  %v139 = vunpack.c.l.b16 %v63
  %v140 = vunpack.c.h.b16 %v63
  %v141 = vunpack.c.l.b16 %v64
  %v142 = vunpack.c.h.b16 %v64
  %v143 = vunpack.c.l.b16 %v65
  %v144 = vunpack.c.h.b16 %v65
  %v145 = vunpack.c.l.b16 %v66
  %v146 = vunpack.c.h.b16 %v66
  %v147 = vunpack.c.l.b16 %v67
  %v148 = vunpack.c.h.b16 %v67
  %v149 = vunpack.c.l.b16 %v68
  %v150 = vunpack.c.h.b16 %v68
  %v151 = vunpack.c.l.b16 %v69
  %v152 = vunpack.c.h.b16 %v69
  %v153 = vunpack.c.l.b16 %v70
  %v154 = vunpack.c.h.b16 %v70
  %v155 = vunpack.c.l.b16 %v71
  %v156 = vunpack.c.h.b16 %v71
  %v157 = vunpack.c.l.b16 %v72
  %v158 = vunpack.c.h.b16 %v72
  %v159 = vunpack.c.l.b16 %v73
  %v160 = vunpack.c.h.b16 %v73
  %v161 = vunpack.c.l.b16 %v74
  %v162 = vunpack.c.h.b16 %v74
  %v163 = vunpack.c.l.b16 %v75
  %v164 = vunpack.c.h.b16 %v75
  %v165 = vunpack.c.l.b16 %v76
  %v166 = vunpack.c.h.b16 %v76
  %v167 = vunpack.c.l.b16 %v77
  %v168 = vunpack.c.h.b16 %v77
  %v169 = vunpack.c.l.b16 %v78
  %v170 = vunpack.c.h.b16 %v78
  %v171 = vunpack.c.l.b16 %v79
  %v172 = vunpack.c.h.b16 %v79
  %v173 = vunpack.c.l.b16 %v80
  %v174 = vunpack.c.h.b16 %v80
  %v175 = vunpack.c.l.b16 %v81
  %v176 = vunpack.c.h.b16 %v81
  %v177 = vunpack.c.l.b16 %v82
  %v178 = vunpack.c.h.b16 %v82
  %v179 = vpack.c.b16 %v117, %v115
  %v180 = vpack.c.b16 %v118, %v116
  %v181 = vpack.c.b16 %v121, %v119
  %v182 = vpack.c.b16 %v122, %v120
  %v183 = vpack.c.b16 %v125, %v123
  %v184 = vpack.c.b16 %v126, %v124
  %v185 = vpack.c.b16 %v129, %v127
  %v186 = vpack.c.b16 %v130, %v128
  %v187 = vpack.c.b16 %v133, %v131
  %v188 = vpack.c.b16 %v134, %v132
  %v189 = vpack.c.b16 %v137, %v135
  %v190 = vpack.c.b16 %v138, %v136
  %v191 = vpack.c.b16 %v141, %v139
  %v192 = vpack.c.b16 %v142, %v140
  %v193 = vpack.c.b16 %v145, %v143
  %v194 = vpack.c.b16 %v146, %v144
  %v195 = vpack.c.b16 %v149, %v147
  %v196 = vpack.c.b16 %v150, %v148
  %v197 = vpack.c.b16 %v153, %v151
  %v198 = vpack.c.b16 %v154, %v152
  %v199 = vpack.c.b16 %v157, %v155
  %v200 = vpack.c.b16 %v158, %v156
  %v201 = vpack.c.b16 %v161, %v159
  %v202 = vpack.c.b16 %v162, %v160
  %v203 = vpack.c.b16 %v165, %v163
  %v204 = vpack.c.b16 %v166, %v164
  %v205 = vpack.c.b16 %v169, %v167
  %v206 = vpack.c.b16 %v170, %v168
  %v207 = vpack.c.b16 %v173, %v171
  %v208 = vpack.c.b16 %v174, %v172
  %v209 = vpack.c.b16 %v177, %v175
  %v210 = vpack.c.b16 %v178, %v176
  %243 = vmatprep.subr.bf16.mxu0 %v194
  %244 = vmatpush1.bf16.msra.mxu0 %v193
  %245 = vmatprep.subr.bf16.mxu0 %v192
  %246 = vmatpush1.bf16.msra.mxu0 %v191
  %247 = vmatprep.subr.bf16.mxu0 %v190
  %248 = vmatpush1.bf16.msra.mxu0 %v189
  %249 = vmatprep.subr.bf16.mxu0 %v188
  %250 = vmatpush1.bf16.msra.mxu0 %v187
  %251 = vmatprep.subr.bf16.mxu0 %v186
  %252 = vmatpush1.bf16.msra.mxu0 %v185
  %253 = vmatprep.subr.bf16.mxu0 %v184
  %254 = vmatpush1.bf16.msra.mxu0 %v183
  %255 = vmatprep.subr.bf16.mxu0 %v182
  %256 = vmatpush1.bf16.msra.mxu0 %v181
  %257 = vmatprep.subr.bf16.mxu0 %v180
  %258 = vmatpush1.bf16.msra.mxu0 %v179
  %259 = vmatprep.subr.bf16.mxu0 %v210
  %260 = vmatpush2.bf16.msra.mxu0 %v209
  %261 = vmatprep.subr.bf16.mxu0 %v208
  %262 = vmatpush2.bf16.msra.mxu0 %v207
  %263 = vmatprep.subr.bf16.mxu0 %v206
  %264 = vmatpush2.bf16.msra.mxu0 %v205
  %265 = vmatprep.subr.bf16.mxu0 %v204
  %266 = vmatpush2.bf16.msra.mxu0 %v203
  %267 = vmatprep.subr.bf16.mxu0 %v202
  %268 = vmatpush2.bf16.msra.mxu0 %v201
  %269 = vmatprep.subr.bf16.mxu0 %v200
  %270 = vmatpush2.bf16.msra.mxu0 %v199
  %271 = vmatprep.subr.bf16.mxu0 %v198
  %272 = vmatpush2.bf16.msra.mxu0 %v197
  %273 = vmatprep.subr.bf16.mxu0 %v196
  %274 = vmatpush2.bf16.msra.mxu0 %v195
  %275 = vmatprep.mubr.bf16.mxu0 %v38
  %276 = vmatmul.mubr.bf16.gmra.mxu0 %v37
  %v277 = vpop.f32.mrf.mxu0
  %v278 = vadd.f32 0.0, %v277
  %v279 = vpop.f32.mrf.mxu0
  %v280 = vadd.f32 0.0, %v279
  %v281 = vpop.f32.mrf.mxu0
  %v282 = vadd.f32 0.0, %v281
  %v283 = vpop.f32.mrf.mxu0
  %v284 = vadd.f32 0.0, %v283
  %285 = vmatprep.mubr.bf16.mxu0 %v40
  %286 = vmatmul.mubr.bf16.gmra.mxu0 %v39
  %v287 = vpop.f32.mrf.mxu0
  %v288 = vadd.f32 0.0, %v287
  %v289 = vpop.f32.mrf.mxu0
  %v290 = vadd.f32 0.0, %v289
  %v291 = vpop.f32.mrf.mxu0
  %v292 = vadd.f32 0.0, %v291
  %v293 = vpop.f32.mrf.mxu0
  %v294 = vadd.f32 0.0, %v293
  %295 = vmatprep.mubr.bf16.mxu0 %v42
  %296 = vmatmul.mubr.bf16.gmra.mxu0 %v41
  %v297 = vpop.f32.mrf.mxu0
  %v298 = vadd.f32 0.0, %v297
  %v299 = vpop.f32.mrf.mxu0
  %v300 = vadd.f32 0.0, %v299
  %v301 = vpop.f32.mrf.mxu0
  %v302 = vadd.f32 0.0, %v301
  %v303 = vpop.f32.mrf.mxu0
  %v304 = vadd.f32 0.0, %v303
  %305 = vmatprep.mubr.bf16.mxu0 %v44
  %306 = vmatmul.mubr.bf16.gmra.mxu0 %v43
  %v307 = vpop.f32.mrf.mxu0
  %v308 = vadd.f32 0.0, %v307
  %v309 = vpop.f32.mrf.mxu0
  %v310 = vadd.f32 0.0, %v309
  %v311 = vpop.f32.mrf.mxu0
  %v312 = vadd.f32 0.0, %v311
  %v313 = vpop.f32.mrf.mxu0
  %v314 = vadd.f32 0.0, %v313
  %315 = vmatprep.mubr.bf16.mxu0 %v46
  %316 = vmatmul.mubr.bf16.gmra.mxu0 %v45
  %v317 = vpop.f32.mrf.mxu0
  %v318 = vadd.f32 0.0, %v317
  %v319 = vpop.f32.mrf.mxu0
  %v320 = vadd.f32 0.0, %v319
  %v321 = vpop.f32.mrf.mxu0
  %v322 = vadd.f32 0.0, %v321
  %v323 = vpop.f32.mrf.mxu0
  %v324 = vadd.f32 0.0, %v323
  %325 = vmatprep.mubr.bf16.mxu0 %v48
  %326 = vmatmul.mubr.bf16.gmra.mxu0 %v47
  %v327 = vpop.f32.mrf.mxu0
  %v328 = vadd.f32 0.0, %v327
  %v329 = vpop.f32.mrf.mxu0
  %v330 = vadd.f32 0.0, %v329
  %v331 = vpop.f32.mrf.mxu0
  %v332 = vadd.f32 0.0, %v331
  %v333 = vpop.f32.mrf.mxu0
  %v334 = vadd.f32 0.0, %v333
  %335 = vmatprep.mubr.bf16.mxu0 %v50
  %336 = vmatmul.mubr.bf16.gmra.mxu0 %v49
  %v337 = vpop.f32.mrf.mxu0
  %v338 = vadd.f32 0.0, %v337
  %v339 = vpop.f32.mrf.mxu0
  %v340 = vadd.f32 0.0, %v339
  %v341 = vpop.f32.mrf.mxu0
  %v342 = vpop.f32.mrf.mxu0
  %343 = vdwg.mxu0
  %344 = vst [vmem:[%s2] sm:$0xff] %v278
  %345 = vst [vmem:[%s2 + $0x8] sm:$0xff] %v280
  %346 = vst [vmem:[%s2 + $0x10] sm:$0xff] %v282
  %347 = vst [vmem:[%s2 + $0x18] sm:$0xff] %v284
  %348 = vst [vmem:[%s2 + $0x20] sm:$0xff] %v288
  %349 = vst [vmem:[%s2 + $0x28] sm:$0xff] %v290
  %350 = vst [vmem:[%s2 + $0x30] sm:$0xff] %v292
  %351 = vst [vmem:[%s2 + $0x38] sm:$0xff] %v294
  %352 = vst [vmem:[%s2 + $0x40] sm:$0xff] %v298
  %353 = vst [vmem:[%s2 + $0x48] sm:$0xff] %v300
  %354 = vst [vmem:[%s2 + $0x50] sm:$0xff] %v302
  %355 = vst [vmem:[%s2 + $0x58] sm:$0xff] %v304
  %356 = vst [vmem:[%s2 + $0x60] sm:$0xff] %v308
  %357 = vst [vmem:[%s2 + $0x68] sm:$0xff] %v310
  %358 = vst [vmem:[%s2 + $0x70] sm:$0xff] %v312
  %359 = vst [vmem:[%s2 + $0x78] sm:$0xff] %v314
  %360 = vst [vmem:[%s2 + $0x80] sm:$0xff] %v318
  %361 = vst [vmem:[%s2 + $0x88] sm:$0xff] %v320
  %362 = vst [vmem:[%s2 + $0x90] sm:$0xff] %v322
  %363 = vst [vmem:[%s2 + $0x98] sm:$0xff] %v324
  %364 = vst [vmem:[%s2 + $0xa0] sm:$0xff] %v328
  %365 = vst [vmem:[%s2 + $0xa8] sm:$0xff] %v330
  %366 = vst [vmem:[%s2 + $0xb0] sm:$0xff] %v332
  %367 = vst [vmem:[%s2 + $0xb8] sm:$0xff] %v334
  %368 = vst [vmem:[%s2 + $0xc0] sm:$0x3] %v338
  %369 = vst [vmem:[%s2 + $0xc8] sm:$0x3] %v340
  // Predicated region
  $region10: #{graph_network_forward.3} parent=0 // pred_check
    _
  $region11: #{graph_network_forward.3} parent=0 // pred_check_branch
    %371 = sbr.rel (0) target = $region13
  $region12: #{graph_network_forward.3} parent=0 // pred_region
    _
  $region13: #{graph_network_forward.3} parent=0 // pred_fallthru
    _
  // Predicated region
  $region14: #{graph_network_forward.3} parent=0 // pred_check
    _
  $region15: #{graph_network_forward.3} parent=0 // pred_check_branch
    %373 = sbr.rel (0) target = $region17
  $region16: #{graph_network_forward.3} parent=0 // pred_region
    _
  $region17: #{graph_network_forward.3} parent=0 // pred_fallthru
    _

// kernel: graph_network_forward.5
$region0: #{graph_network_forward.5}
  #allocation0 [shape = 'u32[]', space=smem, size = 0x4, offset = 0x4, fixed_abs, tag = 'smem constant byte address 0x4 - core index']
  #allocation1 [shape = 'u32[144,128]{1,0:T(1,128)}', space=vmem, size = 0x12000, scoped, tag = 'internal scratch']
  %s0 = inlined_call_operand.vmem [shape: f32[2,256], index: 0, kind: input, shape index: {}]
  %s1 = inlined_call_operand.vmem [shape: bf16[256,10], index: 1, kind: input, shape index: {}]
  %s2 = inlined_call_operand.vmem [shape: f32[1,10], index: 2, kind: input, shape index: {}]
  %s3 = inlined_call_operand.vmem [shape: f32[1,10], index: 3, kind: input, shape index: {}]
  %s4 = inlined_call_operand.vmem [shape: f32[1,10], index: 4, kind: input, shape index: {}]
  %s5 = inlined_call_operand.hbm [shape: f32[2,10], index: 5, kind: output, shape index: {}]
  %s6 = sld [smem:[#allocation0]]
  $region30: #{graph_network_forward.5} parent=0
    _
  %s8 = ssub.s32 1, %s6
  %s9 = scalar_select 0, %s8, %s6
  $region1: #{graph_network_forward.5} parent=0
    #allocation2 [shape = 'u8[1024]{0}', space=vmem, size = 0x400, scoped, tag = 'output window, operand 0, single buffered']
    #allocation3 [shape = 's32[1]{0}', space=sflag, size = 0x4, scoped, tag = 'scoped memory for graph_network_forward.5']
    %10 = vsyncpa [#allocation3], 0
    // Predicated region
    $region2: #{graph_network_forward.5} parent=1 // pred_check
      _
    $region3: #{graph_network_forward.5} parent=1 // pred_check_branch
      %12 = sbr.rel (0) target = $region5
    $region4: #{graph_network_forward.5} parent=1 // pred_region
      _
    $region5: #{graph_network_forward.5} parent=1 // pred_fallthru
      _
    // Predicated region
    $region6: #{graph_network_forward.5} parent=1 // pred_check
      _
    $region7: #{graph_network_forward.5} parent=1 // pred_check_branch
      %14 = sbr.rel (0) target = $region9
    $region8: #{graph_network_forward.5} parent=1 // pred_region
      _
    $region9: #{graph_network_forward.5} parent=1 // pred_fallthru
      _
    // Predicated region
    $region10: #{graph_network_forward.5} parent=1 // pred_check
      _
    $region11: #{graph_network_forward.5} parent=1 // pred_check_branch
      %16 = sbr.rel (0) target = $region13
    $region12: #{graph_network_forward.5} parent=1 // pred_region
      _
    $region13: #{graph_network_forward.5} parent=1 // pred_fallthru
      _
    // Predicated region
    $region14: #{graph_network_forward.5} parent=1 // pred_check
      _
    $region15: #{graph_network_forward.5} parent=1 // pred_check_branch
      %18 = sbr.rel (0) target = $region17
    $region16: #{graph_network_forward.5} parent=1 // pred_region
      _
    $region17: #{graph_network_forward.5} parent=1 // pred_fallthru
      _
    // Predicated region
    $region18: #{graph_network_forward.5} parent=1 // pred_check
      _
    $region19: #{graph_network_forward.5} parent=1 // pred_check_branch
      %20 = sbr.rel (0) target = $region21
    $region20: #{graph_network_forward.5} parent=1 // pred_region
      _
    $region21: #{graph_network_forward.5} parent=1 // pred_fallthru
      _
    %v22 = vld [vmem:[%s0] sm:$0xf]
    %v25 = vunpack.c.l.s4 1983009808
    %v26 = vunpack.c.0.s8 %v25
    %v27 = vlaneseq
    %v28 = vshrl.u32 %v27, 7
    %v29 = vsub.s32 %v26, %v28
    %v30 = vrot.slane %v22, %v29
    %v31 = vcombine.high %v30, %v30
    %v34 = vpack.c.bf16 %v30, %v30
    %v35 = vpack.c.bf16 %v31, %v31
    %v36 = vld [vmem:[%s1] sm:$0xf]
    %v37 = vld [vmem:[%s1 + $0x4] sm:$0xf]
    %v38 = vld [vmem:[%s1 + $0x8] sm:$0xf]
    %v39 = vld [vmem:[%s1 + $0xc] sm:$0xf]
    %v40 = vld [vmem:[%s1 + $0x10] sm:$0xf]
    %v41 = vld [vmem:[%s1 + $0x14] sm:$0xf]
    %v42 = vld [vmem:[%s1 + $0x18] sm:$0xf]
    %v43 = vld [vmem:[%s1 + $0x1c] sm:$0xf]
    %v44 = vld [vmem:[%s1 + $0x20] sm:$0xf]
    %v45 = vld [vmem:[%s1 + $0x24] sm:$0xf]
    %v46 = vld [vmem:[%s1 + $0x28] sm:$0xf]
    %v47 = vld [vmem:[%s1 + $0x2c] sm:$0xf]
    %v48 = vld [vmem:[%s1 + $0x30] sm:$0xf]
    %v49 = vld [vmem:[%s1 + $0x34] sm:$0xf]
    %v50 = vld [vmem:[%s1 + $0x38] sm:$0xf]
    %v51 = vld [vmem:[%s1 + $0x3c] sm:$0xf]
    %v52 = vld [vmem:[%s1 + $0x40] sm:$0xf]
    %v53 = vld [vmem:[%s1 + $0x44] sm:$0xf]
    %v54 = vld [vmem:[%s1 + $0x48] sm:$0xf]
    %v55 = vld [vmem:[%s1 + $0x4c] sm:$0xf]
    %v56 = vld [vmem:[%s1 + $0x50] sm:$0xf]
    %v57 = vld [vmem:[%s1 + $0x54] sm:$0xf]
    %v58 = vld [vmem:[%s1 + $0x58] sm:$0xf]
    %v59 = vld [vmem:[%s1 + $0x5c] sm:$0xf]
    %v60 = vld [vmem:[%s1 + $0x60] sm:$0xf]
    %v61 = vld [vmem:[%s1 + $0x64] sm:$0xf]
    %v62 = vld [vmem:[%s1 + $0x68] sm:$0xf]
    %v63 = vld [vmem:[%s1 + $0x6c] sm:$0xf]
    %v64 = vld [vmem:[%s1 + $0x70] sm:$0xf]
    %v65 = vld [vmem:[%s1 + $0x74] sm:$0xf]
    %v66 = vld [vmem:[%s1 + $0x78] sm:$0xf]
    %v67 = vld [vmem:[%s1 + $0x7c] sm:$0xf]
    %v68 = vld [vmem:[%s2] sm:$0x1]
    %v70 = vlaneseq
    %v71 = vshrl.u32 %v70, 7
    %v72 = vsub.s32 0, %v71
    %v73 = vrot.slane %v68, %v72
    %v107 = vunpack.c.l.b16 %v36
    %v108 = vunpack.c.l.b16 %v37
    %v109 = vunpack.c.l.b16 %v38
    %v110 = vunpack.c.l.b16 %v39
    %v111 = vunpack.c.l.b16 %v40
    %v112 = vunpack.c.l.b16 %v41
    %v113 = vunpack.c.l.b16 %v42
    %v114 = vunpack.c.l.b16 %v43
    %v115 = vunpack.c.l.b16 %v44
    %v116 = vunpack.c.l.b16 %v45
    %v117 = vunpack.c.l.b16 %v46
    %v118 = vunpack.c.l.b16 %v47
    %v119 = vunpack.c.l.b16 %v48
    %v120 = vunpack.c.l.b16 %v49
    %v121 = vunpack.c.l.b16 %v50
    %v122 = vunpack.c.l.b16 %v51
    %v123 = vunpack.c.l.b16 %v52
    %v124 = vunpack.c.l.b16 %v53
    %v125 = vunpack.c.l.b16 %v54
    %v126 = vunpack.c.l.b16 %v55
    %v127 = vunpack.c.l.b16 %v56
    %v128 = vunpack.c.l.b16 %v57
    %v129 = vunpack.c.l.b16 %v58
    %v130 = vunpack.c.l.b16 %v59
    %v131 = vunpack.c.l.b16 %v60
    %v132 = vunpack.c.l.b16 %v61
    %v133 = vunpack.c.l.b16 %v62
    %v134 = vunpack.c.l.b16 %v63
    %v135 = vunpack.c.l.b16 %v64
    %v136 = vunpack.c.l.b16 %v65
    %v137 = vunpack.c.l.b16 %v66
    %v138 = vunpack.c.l.b16 %v67
    %v139 = vpack.c.b16 %v108, %v107
    %v140 = vpack.c.b16 %v110, %v109
    %v141 = vpack.c.b16 %v112, %v111
    %v142 = vpack.c.b16 %v114, %v113
    %v143 = vpack.c.b16 %v116, %v115
    %v144 = vpack.c.b16 %v118, %v117
    %v145 = vpack.c.b16 %v120, %v119
    %v146 = vpack.c.b16 %v122, %v121
    %v147 = vpack.c.b16 %v124, %v123
    %v148 = vpack.c.b16 %v126, %v125
    %v149 = vpack.c.b16 %v128, %v127
    %v150 = vpack.c.b16 %v130, %v129
    %v151 = vpack.c.b16 %v132, %v131
    %v152 = vpack.c.b16 %v134, %v133
    %v153 = vpack.c.b16 %v136, %v135
    %v154 = vpack.c.b16 %v138, %v137
    %171 = vmatprep.subr.bf16.mxu0 0
    %172 = vmatpush1.bf16.msra.mxu0 %v146
    %173 = vmatprep.subr.bf16.mxu0 0
    %174 = vmatpush1.bf16.msra.mxu0 %v145
    %175 = vmatprep.subr.bf16.mxu0 0
    %176 = vmatpush1.bf16.msra.mxu0 %v144
    %177 = vmatprep.subr.bf16.mxu0 0
    %178 = vmatpush1.bf16.msra.mxu0 %v143
    %179 = vmatprep.subr.bf16.mxu0 0
    %180 = vmatpush1.bf16.msra.mxu0 %v142
    %181 = vmatprep.subr.bf16.mxu0 0
    %182 = vmatpush1.bf16.msra.mxu0 %v141
    %183 = vmatprep.subr.bf16.mxu0 0
    %184 = vmatpush1.bf16.msra.mxu0 %v140
    %185 = vmatprep.subr.bf16.mxu0 0
    %186 = vmatpush1.bf16.msra.mxu0 %v139
    %187 = vmatprep.subr.bf16.mxu0 0
    %188 = vmatpush2.bf16.msra.mxu0 %v154
    %189 = vmatprep.subr.bf16.mxu0 0
    %190 = vmatpush2.bf16.msra.mxu0 %v153
    %191 = vmatprep.subr.bf16.mxu0 0
    %192 = vmatpush2.bf16.msra.mxu0 %v152
    %193 = vmatprep.subr.bf16.mxu0 0
    %194 = vmatpush2.bf16.msra.mxu0 %v151
    %195 = vmatprep.subr.bf16.mxu0 0
    %196 = vmatpush2.bf16.msra.mxu0 %v150
    %197 = vmatprep.subr.bf16.mxu0 0
    %198 = vmatpush2.bf16.msra.mxu0 %v149
    %199 = vmatprep.subr.bf16.mxu0 0
    %200 = vmatpush2.bf16.msra.mxu0 %v148
    %201 = vmatprep.subr.bf16.mxu0 0
    %202 = vmatpush2.bf16.msra.mxu0 %v147
    %203 = vmatprep.mubr.bf16.mxu0 %v35
    %204 = vmatmul.mubr.bf16.gmra.mxu0 %v34
    %v205 = vpop.f32.mrf.mxu0
    %v206 = vadd.f32 %v73, %v205
    %v207 = vpop.f32.mrf.mxu0
    %v208 = vpop.f32.mrf.mxu0
    %v209 = vpop.f32.mrf.mxu0
    %210 = vdwg.mxu0
    %vm211 = vcmask 74752
    %v212 = vsel %vm211, %v206, 0.0
    %v213 = vrot.slane %v212, 4
    %v214 = vadd.f32 %v212, %v213
    %v215 = vrot.slane %v214, 2
    %v216 = vadd.f32 %v214, %v215
    %v217 = vrot.slane %v216, 1
    %v218 = vadd.f32 %v216, %v217
    %v219 = vrcp.pop 2.0
    %v220 = vmul.f32 %v218, %v219
    %v221 = vsub.f32 %v206, %v220
    %v222 = vmul.f32 %v221, %v221
    %v223 = vsel %vm211, %v222, 0.0
    %v224 = vrot.slane %v223, 4
    %v225 = vadd.f32 %v223, %v224
    %v226 = vrot.slane %v225, 2
    %v227 = vadd.f32 %v225, %v226
    %v228 = vrot.slane %v227, 1
    %v229 = vadd.f32 %v227, %v228
    %v230 = vmul.f32 %v229, %v219
    %v231 = vadd.f32 %v230, 1e-05
    %v232 = vrsqrt.pop %v231
    %v233 = vmul.f32 %v221, %v232
    %v234 = vld [vmem:[%s3] sm:$0x1]
    %v236 = vlaneseq
    %v237 = vshrl.u32 %v236, 7
    %v238 = vsub.s32 0, %v237
    %v239 = vrot.slane %v234, %v238
    %v241 = vmul.f32 %v233, %v239
    %v242 = vld [vmem:[%s4] sm:$0x1]
    %v244 = vlaneseq
    %v245 = vshrl.u32 %v244, 7
    %v246 = vsub.s32 0, %v245
    %v247 = vrot.slane %v242, %v246
    %v249 = vadd.f32 %v241, %v247
    %250 = vst.msk [vmem:[#allocation2] sm:$0x3] %vm211, %v249
    // Predicated region
    $region22: #{graph_network_forward.5} parent=1 // pred_check
      _
    $region23: #{graph_network_forward.5} parent=1 // pred_check_branch
      %252 = sbr.rel (0) target = $region25
    $region24: #{graph_network_forward.5} parent=1 // pred_region
      %s254 = ssub.s32 32, 32
      %255 = vsyncadd [#allocation3], %s254
      %s257 = sshll.u32 [#allocation2], 4
      %s258 = int_to_ptr.vmem [resolvable:$true] %s257
      %260 = dma.vmem_to_hbm [thread:$0]  %s258, 32, %s5, [#allocation3]
    $region25: #{graph_network_forward.5} parent=1 // pred_fallthru
      _
    // Predicated region
    $region26: #{graph_network_forward.5} parent=1 // pred_check
      _
    $region27: #{graph_network_forward.5} parent=1 // pred_check_branch
      %262 = sbr.rel (0) target = $region29
    $region28: #{graph_network_forward.5} parent=1 // pred_region
      %263 = dma.done [#allocation3], 32
    $region29: #{graph_network_forward.5} parent=1 // pred_fallthru
      _
    %264 = vsyncpa [#allocation3], 1

// kernel: graph_network_forward.4
$region0: #{graph_network_forward.4}
  #allocation0 [shape = 'u32[]', space=smem, size = 0x4, offset = 0x4, fixed_abs, tag = 'smem constant byte address 0x4 - core index']
  #allocation1 [shape = 'u32[144,128]{1,0:T(1,128)}', space=vmem, size = 0x12000, scoped, tag = 'internal scratch']
  %s0 = inlined_call_operand.vmem [shape: f32[2,49,256], index: 0, kind: input, shape index: {}]
  %s1 = inlined_call_operand.vmem [shape: f32[2,2,49,49], index: 1, kind: input, shape index: {}]
  %s2 = inlined_call_operand.vmem [shape: bf16[768,512], index: 2, kind: input, shape index: {}]
  %s3 = inlined_call_operand.vmem [shape: f32[1,512], index: 3, kind: input, shape index: {}]
  %s4 = inlined_call_operand.vmem [shape: f32[1,512], index: 4, kind: input, shape index: {}]
  %s5 = inlined_call_operand.vmem [shape: bf16[512,256], index: 5, kind: input, shape index: {}]
  %s6 = inlined_call_operand.vmem [shape: f32[1,256], index: 6, kind: input, shape index: {}]
  %s7 = inlined_call_operand.vmem [shape: f32[1,256], index: 7, kind: input, shape index: {}]
  %s8 = inlined_call_operand.vmem [shape: f32[2,49,256], index: 8, kind: output, shape index: {}]
  %s9 = sld [smem:[#allocation0]]
  $region42: #{graph_network_forward.4} parent=0
    _
  %s11 = ssub.s32 1, %s9
  %s12 = scalar_select 0, %s11, %s9
  // Predicated region
  $region2: #{graph_network_forward.4} parent=0 // pred_check
    _
  $region3: #{graph_network_forward.4} parent=0 // pred_check_branch
    %14 = sbr.rel (0) target = $region5
  $region4: #{graph_network_forward.4} parent=0 // pred_region
    _
  $region5: #{graph_network_forward.4} parent=0 // pred_fallthru
    _
  // Predicated region
  $region6: #{graph_network_forward.4} parent=0 // pred_check
    _
  $region7: #{graph_network_forward.4} parent=0 // pred_check_branch
    %16 = sbr.rel (0) target = $region9
  $region8: #{graph_network_forward.4} parent=0 // pred_region
    _
  $region9: #{graph_network_forward.4} parent=0 // pred_fallthru
    _
  // Predicated region
  $region10: #{graph_network_forward.4} parent=0 // pred_check
    _
  $region11: #{graph_network_forward.4} parent=0 // pred_check_branch
    %18 = sbr.rel (0) target = $region13
  $region12: #{graph_network_forward.4} parent=0 // pred_region
    _
  $region13: #{graph_network_forward.4} parent=0 // pred_fallthru
    _
  // Predicated region
  $region14: #{graph_network_forward.4} parent=0 // pred_check
    _
  $region15: #{graph_network_forward.4} parent=0 // pred_check_branch
    %20 = sbr.rel (0) target = $region17
  $region16: #{graph_network_forward.4} parent=0 // pred_region
    _
  $region17: #{graph_network_forward.4} parent=0 // pred_fallthru
    _
  // Predicated region
  $region18: #{graph_network_forward.4} parent=0 // pred_check
    _
  $region19: #{graph_network_forward.4} parent=0 // pred_check_branch
    %22 = sbr.rel (0) target = $region21
  $region20: #{graph_network_forward.4} parent=0 // pred_region
    _
  $region21: #{graph_network_forward.4} parent=0 // pred_fallthru
    _
  // Predicated region
  $region22: #{graph_network_forward.4} parent=0 // pred_check
    _
  $region23: #{graph_network_forward.4} parent=0 // pred_check_branch
    %24 = sbr.rel (0) target = $region25
  $region24: #{graph_network_forward.4} parent=0 // pred_region
    _
  $region25: #{graph_network_forward.4} parent=0 // pred_fallthru
    _
  // Predicated region
  $region26: #{graph_network_forward.4} parent=0 // pred_check
    _
  $region27: #{graph_network_forward.4} parent=0 // pred_check_branch
    %26 = sbr.rel (0) target = $region29
  $region28: #{graph_network_forward.4} parent=0 // pred_region
    _
  $region29: #{graph_network_forward.4} parent=0 // pred_fallthru
    _
  // Predicated region
  $region30: #{graph_network_forward.4} parent=0 // pred_check
    _
  $region31: #{graph_network_forward.4} parent=0 // pred_check_branch
    %28 = sbr.rel (0) target = $region33
  $region32: #{graph_network_forward.4} parent=0 // pred_region
    _
  $region33: #{graph_network_forward.4} parent=0 // pred_fallthru
    _
  %v30 = vlaneseq
  %v31 = vshrl.u32 %v30, 7
  %v32 = vadd.s32 %v31, 8
  %v33 = vadd.s32 %v31, 16
  %v34 = vadd.s32 %v31, 24
  %v35 = vadd.s32 %v31, 32
  %v36 = vadd.s32 %v31, 40
  %v37 = vadd.s32 %v31, 48
  %v38 = vlaneseq
  %v39 = vand.u32 %v38, 127
  %vm40 = vcmp.eq.s32.totalorder %v31, %v39
  %vm41 = vcmp.eq.s32.totalorder %v32, %v39
  %vm42 = vcmp.eq.s32.totalorder %v33, %v39
  %vm43 = vcmp.eq.s32.totalorder %v34, %v39
  %vm44 = vcmp.eq.s32.totalorder %v35, %v39
  %vm45 = vcmp.eq.s32.totalorder %v36, %v39
  %vm46 = vcmp.eq.s32.totalorder %v37, %v39
  %v47 = vsel %vm40, 1.0, 0.0
  %v48 = vsel %vm41, 1.0, 0.0
  %v49 = vsel %vm42, 1.0, 0.0
  %v50 = vsel %vm43, 1.0, 0.0
  %v51 = vsel %vm44, 1.0, 0.0
  %v52 = vsel %vm45, 1.0, 0.0
  %v53 = vsel %vm46, 1.0, 0.0
  %v54 = vsub.f32 1.0, %v47
  %v55 = vsub.f32 1.0, %v48
  %v56 = vsub.f32 1.0, %v49
  %v57 = vsub.f32 1.0, %v50
  %v58 = vsub.f32 1.0, %v51
  %v59 = vsub.f32 1.0, %v52
  %v60 = vsub.f32 1.0, %v53
  %v61 = vld [vmem:[%s0] sm:$0xff]
  %v62 = vld [vmem:[%s0 + $0x8] sm:$0xff]
  %v63 = vld [vmem:[%s0 + $0x10] sm:$0xff]
  %v64 = vld [vmem:[%s0 + $0x18] sm:$0xff]
  %v65 = vld [vmem:[%s0 + $0x20] sm:$0xff]
  %v66 = vld [vmem:[%s0 + $0x28] sm:$0xff]
  %v67 = vld [vmem:[%s0 + $0x30] sm:$0xff]
  %v68 = vld [vmem:[%s0 + $0x38] sm:$0xff]
  %v69 = vld [vmem:[%s0 + $0x40] sm:$0xff]
  %v70 = vld [vmem:[%s0 + $0x48] sm:$0xff]
  %v71 = vld [vmem:[%s0 + $0x50] sm:$0xff]
  %v72 = vld [vmem:[%s0 + $0x58] sm:$0xff]
  %v73 = vld [vmem:[%s0 + $0x60] sm:$0x1]
  %v74 = vld [vmem:[%s0 + $0x68] sm:$0x1]
  %v75 = vld [vmem:[%s1] sm:$0xff]
  %v76 = vld [vmem:[%s1 + $0x8] sm:$0xff]
  %v77 = vld [vmem:[%s1 + $0x10] sm:$0xff]
  %v78 = vld [vmem:[%s1 + $0x18] sm:$0xff]
  %v79 = vld [vmem:[%s1 + $0x20] sm:$0xff]
  %v80 = vld [vmem:[%s1 + $0x28] sm:$0xff]
  %v81 = vld [vmem:[%s1 + $0x30] sm:$0x1]
  %v82 = vld [vmem:[%s1 + $0x38] sm:$0xff]
  %v83 = vld [vmem:[%s1 + $0x40] sm:$0xff]
  %v84 = vld [vmem:[%s1 + $0x48] sm:$0xff]
  %v85 = vld [vmem:[%s1 + $0x50] sm:$0xff]
  %v86 = vld [vmem:[%s1 + $0x58] sm:$0xff]
  %v87 = vld [vmem:[%s1 + $0x60] sm:$0xff]
  %v88 = vld [vmem:[%s1 + $0x68] sm:$0x1]
  %v89 = vmul.f32 %v75, %v54
  %v90 = vmul.f32 %v76, %v55
  %v91 = vmul.f32 %v77, %v56
  %v92 = vmul.f32 %v78, %v57
  %v93 = vmul.f32 %v79, %v58
  %v94 = vmul.f32 %v80, %v59
  %v95 = vmul.f32 %v81, %v60
  %v96 = vand.u32 2147483647, %v89
  %v97 = vand.u32 2147483647, %v90
  %v98 = vand.u32 2147483647, %v91
  %v99 = vand.u32 2147483647, %v92
  %v100 = vand.u32 2147483647, %v93
  %v101 = vand.u32 2147483647, %v94
  %v102 = vand.u32 2147483647, %v95
  %vm103 = vcmask 400384
  %v104 = vsel %vm103, %v96, 0.0
  %105 = vadd.xlane.f32.xlu0 %v104
  %v106 = vpop.xlane.xlu0 %105
  %v107 = vsel %vm103, %v97, 0.0
  %108 = vadd.xlane.f32.xlu0 %v107
  %v109 = vpop.xlane.xlu0 %108
  %v110 = vsel %vm103, %v98, 0.0
  %111 = vadd.xlane.f32.xlu0 %v110
  %v112 = vpop.xlane.xlu0 %111
  %v113 = vsel %vm103, %v99, 0.0
  %114 = vadd.xlane.f32.xlu0 %v113
  %v115 = vpop.xlane.xlu0 %114
  %v116 = vsel %vm103, %v100, 0.0
  %117 = vadd.xlane.f32.xlu0 %v116
  %v118 = vpop.xlane.xlu0 %117
  %v119 = vsel %vm103, %v101, 0.0
  %120 = vadd.xlane.f32.xlu0 %v119
  %v121 = vpop.xlane.xlu0 %120
  %vm122 = vcmask 393216
  %v123 = vsel %vm122, %v102, 0.0
  %124 = vadd.xlane.f32.xlu0 %v123
  %v125 = vpop.xlane.xlu0 %124
  %v126 = vmax.f32 %v106, 1e-12
  %v127 = vmax.f32 %v109, 1e-12
  %v128 = vmax.f32 %v112, 1e-12
  %v129 = vmax.f32 %v115, 1e-12
  %v130 = vmax.f32 %v118, 1e-12
  %v131 = vmax.f32 %v121, 1e-12
  %v132 = vmax.f32 %v125, 1e-12
  %v133 = vrcp.pop %v126
  %v134 = vmul.f32 %v89, %v133
  %v135 = vrcp.pop %v127
  %v136 = vmul.f32 %v90, %v135
  %v137 = vrcp.pop %v128
  %v138 = vmul.f32 %v91, %v137
  %v139 = vrcp.pop %v129
  %v140 = vmul.f32 %v92, %v139
  %v141 = vrcp.pop %v130
  %v142 = vmul.f32 %v93, %v141
  %v143 = vrcp.pop %v131
  %v144 = vmul.f32 %v94, %v143
  %v145 = vrcp.pop %v132
  %v146 = vmul.f32 %v95, %v145
  %v147 = vpack.c.bf16 %v136, %v134
  %v148 = vpack.c.bf16 %v140, %v138
  %v149 = vpack.c.bf16 %v144, %v142
  %v150 = vpack.c.bf16 %v146, %v146
  %v151 = vpack.c.bf16 %v63, %v61
  %v152 = vpack.c.bf16 %v64, %v62
  %v153 = vpack.c.bf16 %v67, %v65
  %v154 = vpack.c.bf16 %v68, %v66
  %v155 = vpack.c.bf16 %v71, %v69
  %v156 = vpack.c.bf16 %v72, %v70
  %v157 = vpack.c.bf16 %v73, %v73
  %v158 = vpack.c.bf16 %v74, %v74
  %v160 = vsel %vm103, %v147, 0
  %v163 = vsel %vm103, %v148, 0
  %v166 = vsel %vm103, %v149, 0
  %v169 = vsel %vm103, %v150, 0
  %vm171 = vcmask 1040384
  %v172 = vsel 0, 4294967295, 65535
  %v173 = vsel %vm171, %v172, 0
  %v175 = vand.u32 %v157, %v173
  %v178 = vand.u32 %v158, %v173
  %180 = vmatprep.subr.bf16.mxu0 0
  %181 = vmatpush1.bf16.msra.mxu0 0
  %182 = vmatprep.subr.bf16.mxu0 0
  %183 = vmatpush1.bf16.msra.mxu0 0
  %184 = vmatprep.subr.bf16.mxu0 0
  %185 = vmatpush1.bf16.msra.mxu0 0
  %186 = vmatprep.subr.bf16.mxu0 0
  %187 = vmatpush1.bf16.msra.mxu0 0
  %188 = vmatprep.subr.bf16.mxu0 %v178
  %189 = vmatpush1.bf16.msra.mxu0 %v175
  %190 = vmatprep.subr.bf16.mxu0 %v156
  %191 = vmatpush1.bf16.msra.mxu0 %v155
  %192 = vmatprep.subr.bf16.mxu0 %v154
  %193 = vmatpush1.bf16.msra.mxu0 %v153
  %194 = vmatprep.subr.bf16.mxu0 %v152
  %195 = vmatpush1.bf16.msra.mxu0 %v151
  %196 = vmatprep.subr.bf16.mxu0 0
  %197 = vmatpush2.bf16.msra.mxu0 0
  %198 = vmatprep.subr.bf16.mxu0 0
  %199 = vmatpush2.bf16.msra.mxu0 0
  %200 = vmatprep.subr.bf16.mxu0 0
  %201 = vmatpush2.bf16.msra.mxu0 0
  %202 = vmatprep.subr.bf16.mxu0 0
  %203 = vmatpush2.bf16.msra.mxu0 0
  %204 = vmatprep.subr.bf16.mxu0 0
  %205 = vmatpush2.bf16.msra.mxu0 0
  %206 = vmatprep.subr.bf16.mxu0 0
  %207 = vmatpush2.bf16.msra.mxu0 0
  %208 = vmatprep.subr.bf16.mxu0 0
  %209 = vmatpush2.bf16.msra.mxu0 0
  %210 = vmatprep.subr.bf16.mxu0 0
  %211 = vmatpush2.bf16.msra.mxu0 0
  %212 = vmatprep.mubr.bf16.mxu0 0
  %213 = vmatmul.mubr.bf16.gmra.mxu0 %v160
  %v214 = vpop.f32.mrf.mxu0
  %v215 = vadd.f32 0.0, %v214
  %v216 = vpop.f32.mrf.mxu0
  %v217 = vadd.f32 0.0, %v216
  %v218 = vpop.f32.mrf.mxu0
  %v219 = vadd.f32 0.0, %v218
  %v220 = vpop.f32.mrf.mxu0
  %v221 = vadd.f32 0.0, %v220
  %222 = vmatprep.mubr.bf16.mxu0 0
  %223 = vmatmul.mubr.bf16.gmra.mxu0 %v163
  %v224 = vpop.f32.mrf.mxu0
  %v225 = vadd.f32 0.0, %v224
  %v226 = vpop.f32.mrf.mxu0
  %v227 = vadd.f32 0.0, %v226
  %v228 = vpop.f32.mrf.mxu0
  %v229 = vadd.f32 0.0, %v228
  %v230 = vpop.f32.mrf.mxu0
  %v231 = vadd.f32 0.0, %v230
  %232 = vmatprep.mubr.bf16.mxu0 0
  %233 = vmatmul.mubr.bf16.gmra.mxu0 %v166
  %v234 = vpop.f32.mrf.mxu0
  %v235 = vadd.f32 0.0, %v234
  %v236 = vpop.f32.mrf.mxu0
  %v237 = vadd.f32 0.0, %v236
  %v238 = vpop.f32.mrf.mxu0
  %v239 = vadd.f32 0.0, %v238
  %v240 = vpop.f32.mrf.mxu0
  %v241 = vadd.f32 0.0, %v240
  %242 = vmatprep.mubr.bf16.mxu0 0
  %243 = vmatmul.mubr.bf16.gmra.mxu0 %v169
  %v244 = vpop.f32.mrf.mxu0
  %v245 = vadd.f32 0.0, %v244
  %v246 = vpop.f32.mrf.mxu0
  %v247 = vadd.f32 0.0, %v246
  %v248 = vpop.f32.mrf.mxu0
  %v249 = vpop.f32.mrf.mxu0
  %250 = vdwg.mxu0
  %v251 = vmul.f32 %v82, %v54
  %v252 = vmul.f32 %v83, %v55
  %v253 = vmul.f32 %v84, %v56
  %v254 = vmul.f32 %v85, %v57
  %v255 = vmul.f32 %v86, %v58
  %v256 = vmul.f32 %v87, %v59
  %v257 = vmul.f32 %v88, %v60
  %v258 = vand.u32 2147483647, %v251
  %v259 = vand.u32 2147483647, %v252
  %v260 = vand.u32 2147483647, %v253
  %v261 = vand.u32 2147483647, %v254
  %v262 = vand.u32 2147483647, %v255
  %v263 = vand.u32 2147483647, %v256
  %v264 = vand.u32 2147483647, %v257
  %v265 = vsel %vm103, %v258, 0.0
  %266 = vadd.xlane.f32.xlu0 %v265
  %v267 = vpop.xlane.xlu0 %266
  %v268 = vsel %vm103, %v259, 0.0
  %269 = vadd.xlane.f32.xlu0 %v268
  %v270 = vpop.xlane.xlu0 %269
  %v271 = vsel %vm103, %v260, 0.0
  %272 = vadd.xlane.f32.xlu0 %v271
  %v273 = vpop.xlane.xlu0 %272
  %v274 = vsel %vm103, %v261, 0.0
  %275 = vadd.xlane.f32.xlu0 %v274
  %v276 = vpop.xlane.xlu0 %275
  %v277 = vsel %vm103, %v262, 0.0
  %278 = vadd.xlane.f32.xlu0 %v277
  %v279 = vpop.xlane.xlu0 %278
  %v280 = vsel %vm103, %v263, 0.0
  %281 = vadd.xlane.f32.xlu0 %v280
  %v282 = vpop.xlane.xlu0 %281
  %v283 = vsel %vm122, %v264, 0.0
  %284 = vadd.xlane.f32.xlu0 %v283
  %v285 = vpop.xlane.xlu0 %284
  %v286 = vmax.f32 %v267, 1e-12
  %v287 = vmax.f32 %v270, 1e-12
  %v288 = vmax.f32 %v273, 1e-12
  %v289 = vmax.f32 %v276, 1e-12
  %v290 = vmax.f32 %v279, 1e-12
  %v291 = vmax.f32 %v282, 1e-12
  %v292 = vmax.f32 %v285, 1e-12
  %v293 = vrcp.pop %v286
  %v294 = vmul.f32 %v251, %v293
  %v295 = vrcp.pop %v287
  %v296 = vmul.f32 %v252, %v295
  %v297 = vrcp.pop %v288
  %v298 = vmul.f32 %v253, %v297
  %v299 = vrcp.pop %v289
  %v300 = vmul.f32 %v254, %v299
  %v301 = vrcp.pop %v290
  %v302 = vmul.f32 %v255, %v301
  %v303 = vrcp.pop %v291
  %v304 = vmul.f32 %v256, %v303
  %v305 = vrcp.pop %v292
  %v306 = vmul.f32 %v257, %v305
  %v307 = vpack.c.bf16 %v296, %v294
  %v308 = vpack.c.bf16 %v300, %v298
  %v309 = vpack.c.bf16 %v304, %v302
  %v310 = vpack.c.bf16 %v306, %v306
  %v312 = vsel %vm103, %v307, 0
  %v315 = vsel %vm103, %v308, 0
  %v318 = vsel %vm103, %v309, 0
  %v321 = vsel %vm103, %v310, 0
  %323 = vmatprep.subr.bf16.mxu0 0
  %324 = vmatpush1.bf16.msra.mxu0 0
  %325 = vmatprep.subr.bf16.mxu0 0
  %326 = vmatpush1.bf16.msra.mxu0 0
  %327 = vmatprep.subr.bf16.mxu0 0
  %328 = vmatpush1.bf16.msra.mxu0 0
  %329 = vmatprep.subr.bf16.mxu0 0
  %330 = vmatpush1.bf16.msra.mxu0 0
  %331 = vmatprep.subr.bf16.mxu0 %v178
  %332 = vmatpush1.bf16.msra.mxu0 %v175
  %333 = vmatprep.subr.bf16.mxu0 %v156
  %334 = vmatpush1.bf16.msra.mxu0 %v155
  %335 = vmatprep.subr.bf16.mxu0 %v154
  %336 = vmatpush1.bf16.msra.mxu0 %v153
  %337 = vmatprep.subr.bf16.mxu0 %v152
  %338 = vmatpush1.bf16.msra.mxu0 %v151
  %339 = vmatprep.subr.bf16.mxu0 0
  %340 = vmatpush2.bf16.msra.mxu0 0
  %341 = vmatprep.subr.bf16.mxu0 0
  %342 = vmatpush2.bf16.msra.mxu0 0
  %343 = vmatprep.subr.bf16.mxu0 0
  %344 = vmatpush2.bf16.msra.mxu0 0
  %345 = vmatprep.subr.bf16.mxu0 0
  %346 = vmatpush2.bf16.msra.mxu0 0
  %347 = vmatprep.subr.bf16.mxu0 0
  %348 = vmatpush2.bf16.msra.mxu0 0
  %349 = vmatprep.subr.bf16.mxu0 0
  %350 = vmatpush2.bf16.msra.mxu0 0
  %351 = vmatprep.subr.bf16.mxu0 0
  %352 = vmatpush2.bf16.msra.mxu0 0
  %353 = vmatprep.subr.bf16.mxu0 0
  %354 = vmatpush2.bf16.msra.mxu0 0
  %355 = vmatprep.mubr.bf16.mxu0 0
  %356 = vmatmul.mubr.bf16.gmra.mxu0 %v312
  %v357 = vpop.f32.mrf.mxu0
  %v358 = vadd.f32 0.0, %v357
  %v359 = vpop.f32.mrf.mxu0
  %v360 = vadd.f32 0.0, %v359
  %v361 = vpop.f32.mrf.mxu0
  %v362 = vadd.f32 0.0, %v361
  %v363 = vpop.f32.mrf.mxu0
  %v364 = vadd.f32 0.0, %v363
  %365 = vmatprep.mubr.bf16.mxu0 0
  %366 = vmatmul.mubr.bf16.gmra.mxu0 %v315
  %v367 = vpop.f32.mrf.mxu0
  %v368 = vadd.f32 0.0, %v367
  %v369 = vpop.f32.mrf.mxu0
  %v370 = vadd.f32 0.0, %v369
  %v371 = vpop.f32.mrf.mxu0
  %v372 = vadd.f32 0.0, %v371
  %v373 = vpop.f32.mrf.mxu0
  %v374 = vadd.f32 0.0, %v373
  %375 = vmatprep.mubr.bf16.mxu0 0
  %376 = vmatmul.mubr.bf16.gmra.mxu0 %v318
  %v377 = vpop.f32.mrf.mxu0
  %v378 = vadd.f32 0.0, %v377
  %v379 = vpop.f32.mrf.mxu0
  %v380 = vadd.f32 0.0, %v379
  %v381 = vpop.f32.mrf.mxu0
  %v382 = vadd.f32 0.0, %v381
  %v383 = vpop.f32.mrf.mxu0
  %v384 = vadd.f32 0.0, %v383
  %385 = vmatprep.mubr.bf16.mxu0 0
  %386 = vmatmul.mubr.bf16.gmra.mxu0 %v321
  %v387 = vpop.f32.mrf.mxu0
  %v388 = vadd.f32 0.0, %v387
  %v389 = vpop.f32.mrf.mxu0
  %v390 = vadd.f32 0.0, %v389
  %v391 = vpop.f32.mrf.mxu0
  %v392 = vpop.f32.mrf.mxu0
  %393 = vdwg.mxu0
  %s394 = scalar_lea.vmem %s0, 112
  %v395 = vld [vmem:[%s394] sm:$0xff]
  %v396 = vld [vmem:[%s394 + $0x8] sm:$0xff]
  %v397 = vld [vmem:[%s394 + $0x10] sm:$0xff]
  %v398 = vld [vmem:[%s394 + $0x18] sm:$0xff]
  %v399 = vld [vmem:[%s394 + $0x20] sm:$0xff]
  %v400 = vld [vmem:[%s394 + $0x28] sm:$0xff]
  %v401 = vld [vmem:[%s394 + $0x30] sm:$0xff]
  %v402 = vld [vmem:[%s394 + $0x38] sm:$0xff]
  %v403 = vld [vmem:[%s394 + $0x40] sm:$0xff]
  %v404 = vld [vmem:[%s394 + $0x48] sm:$0xff]
  %v405 = vld [vmem:[%s394 + $0x50] sm:$0xff]
  %v406 = vld [vmem:[%s394 + $0x58] sm:$0xff]
  %v407 = vld [vmem:[%s394 + $0x60] sm:$0x1]
  %v408 = vld [vmem:[%s394 + $0x68] sm:$0x1]
  %s409 = scalar_lea.vmem %s1, 112
  %v410 = vld [vmem:[%s409] sm:$0xff]
  %v411 = vld [vmem:[%s409 + $0x8] sm:$0xff]
  %v412 = vld [vmem:[%s409 + $0x10] sm:$0xff]
  %v413 = vld [vmem:[%s409 + $0x18] sm:$0xff]
  %v414 = vld [vmem:[%s409 + $0x20] sm:$0xff]
  %v415 = vld [vmem:[%s409 + $0x28] sm:$0xff]
  %v416 = vld [vmem:[%s409 + $0x30] sm:$0x1]
  %v417 = vld [vmem:[%s409 + $0x38] sm:$0xff]
  %v418 = vld [vmem:[%s409 + $0x40] sm:$0xff]
  %v419 = vld [vmem:[%s409 + $0x48] sm:$0xff]
  %v420 = vld [vmem:[%s409 + $0x50] sm:$0xff]
  %v421 = vld [vmem:[%s409 + $0x58] sm:$0xff]
  %v422 = vld [vmem:[%s409 + $0x60] sm:$0xff]
  %v423 = vld [vmem:[%s409 + $0x68] sm:$0x1]
  %v424 = vmul.f32 %v410, %v54
  %v425 = vmul.f32 %v411, %v55
  %v426 = vmul.f32 %v412, %v56
  %v427 = vmul.f32 %v413, %v57
  %v428 = vmul.f32 %v414, %v58
  %v429 = vmul.f32 %v415, %v59
  %v430 = vmul.f32 %v416, %v60
  %v431 = vand.u32 2147483647, %v424
  %v432 = vand.u32 2147483647, %v425
  %v433 = vand.u32 2147483647, %v426
  %v434 = vand.u32 2147483647, %v427
  %v435 = vand.u32 2147483647, %v428
  %v436 = vand.u32 2147483647, %v429
  %v437 = vand.u32 2147483647, %v430
  %v438 = vsel %vm103, %v431, 0.0
  %439 = vadd.xlane.f32.xlu0 %v438
  %v440 = vpop.xlane.xlu0 %439
  %v441 = vsel %vm103, %v432, 0.0
  %442 = vadd.xlane.f32.xlu0 %v441
  %v443 = vpop.xlane.xlu0 %442
  %v444 = vsel %vm103, %v433, 0.0
  %445 = vadd.xlane.f32.xlu0 %v444
  %v446 = vpop.xlane.xlu0 %445
  %v447 = vsel %vm103, %v434, 0.0
  %448 = vadd.xlane.f32.xlu0 %v447
  %v449 = vpop.xlane.xlu0 %448
  %v450 = vsel %vm103, %v435, 0.0
  %451 = vadd.xlane.f32.xlu0 %v450
  %v452 = vpop.xlane.xlu0 %451
  %v453 = vsel %vm103, %v436, 0.0
  %454 = vadd.xlane.f32.xlu0 %v453
  %v455 = vpop.xlane.xlu0 %454
  %v456 = vsel %vm122, %v437, 0.0
  %457 = vadd.xlane.f32.xlu0 %v456
  %v458 = vpop.xlane.xlu0 %457
  %v459 = vmax.f32 %v440, 1e-12
  %v460 = vmax.f32 %v443, 1e-12
  %v461 = vmax.f32 %v446, 1e-12
  %v462 = vmax.f32 %v449, 1e-12
  %v463 = vmax.f32 %v452, 1e-12
  %v464 = vmax.f32 %v455, 1e-12
  %v465 = vmax.f32 %v458, 1e-12
  %v466 = vrcp.pop %v459
  %v467 = vmul.f32 %v424, %v466
  %v468 = vrcp.pop %v460
  %v469 = vmul.f32 %v425, %v468
  %v470 = vrcp.pop %v461
  %v471 = vmul.f32 %v426, %v470
  %v472 = vrcp.pop %v462
  %v473 = vmul.f32 %v427, %v472
  %v474 = vrcp.pop %v463
  %v475 = vmul.f32 %v428, %v474
  %v476 = vrcp.pop %v464
  %v477 = vmul.f32 %v429, %v476
  %v478 = vrcp.pop %v465
  %v479 = vmul.f32 %v430, %v478
  %v480 = vpack.c.bf16 %v469, %v467
  %v481 = vpack.c.bf16 %v473, %v471
  %v482 = vpack.c.bf16 %v477, %v475
  %v483 = vpack.c.bf16 %v479, %v479
  %v484 = vpack.c.bf16 %v397, %v395
  %v485 = vpack.c.bf16 %v398, %v396
  %v486 = vpack.c.bf16 %v401, %v399
  %v487 = vpack.c.bf16 %v402, %v400
  %v488 = vpack.c.bf16 %v405, %v403
  %v489 = vpack.c.bf16 %v406, %v404
  %v490 = vpack.c.bf16 %v407, %v407
  %v491 = vpack.c.bf16 %v408, %v408
  %v493 = vsel %vm103, %v480, 0
  %v496 = vsel %vm103, %v481, 0
  %v499 = vsel %vm103, %v482, 0
  %v502 = vsel %vm103, %v483, 0
  %v505 = vand.u32 %v490, %v173
  %v508 = vand.u32 %v491, %v173
  %510 = vmatprep.subr.bf16.mxu0 0
  %511 = vmatpush1.bf16.msra.mxu0 0
  %512 = vmatprep.subr.bf16.mxu0 0
  %513 = vmatpush1.bf16.msra.mxu0 0
  %514 = vmatprep.subr.bf16.mxu0 0
  %515 = vmatpush1.bf16.msra.mxu0 0
  %516 = vmatprep.subr.bf16.mxu0 0
  %517 = vmatpush1.bf16.msra.mxu0 0
  %518 = vmatprep.subr.bf16.mxu0 %v508
  %519 = vmatpush1.bf16.msra.mxu0 %v505
  %520 = vmatprep.subr.bf16.mxu0 %v489
  %521 = vmatpush1.bf16.msra.mxu0 %v488
  %522 = vmatprep.subr.bf16.mxu0 %v487
  %523 = vmatpush1.bf16.msra.mxu0 %v486
  %524 = vmatprep.subr.bf16.mxu0 %v485
  %525 = vmatpush1.bf16.msra.mxu0 %v484
  %526 = vmatprep.subr.bf16.mxu0 0
  %527 = vmatpush2.bf16.msra.mxu0 0
  %528 = vmatprep.subr.bf16.mxu0 0
  %529 = vmatpush2.bf16.msra.mxu0 0
  %530 = vmatprep.subr.bf16.mxu0 0
  %531 = vmatpush2.bf16.msra.mxu0 0
  %532 = vmatprep.subr.bf16.mxu0 0
  %533 = vmatpush2.bf16.msra.mxu0 0
  %534 = vmatprep.subr.bf16.mxu0 0
  %535 = vmatpush2.bf16.msra.mxu0 0
  %536 = vmatprep.subr.bf16.mxu0 0
  %537 = vmatpush2.bf16.msra.mxu0 0
  %538 = vmatprep.subr.bf16.mxu0 0
  %539 = vmatpush2.bf16.msra.mxu0 0
  %540 = vmatprep.subr.bf16.mxu0 0
  %541 = vmatpush2.bf16.msra.mxu0 0
  %542 = vmatprep.mubr.bf16.mxu0 0
  %543 = vmatmul.mubr.bf16.gmra.mxu0 %v493
  %v544 = vpop.f32.mrf.mxu0
  %v545 = vadd.f32 0.0, %v544
  %v546 = vpop.f32.mrf.mxu0
  %v547 = vadd.f32 0.0, %v546
  %v548 = vpop.f32.mrf.mxu0
  %v549 = vadd.f32 0.0, %v548
  %v550 = vpop.f32.mrf.mxu0
  %v551 = vadd.f32 0.0, %v550
  %552 = vmatprep.mubr.bf16.mxu0 0
  %553 = vmatmul.mubr.bf16.gmra.mxu0 %v496
  %v554 = vpop.f32.mrf.mxu0
  %v555 = vadd.f32 0.0, %v554
  %v556 = vpop.f32.mrf.mxu0
  %v557 = vadd.f32 0.0, %v556
  %v558 = vpop.f32.mrf.mxu0
  %v559 = vadd.f32 0.0, %v558
  %v560 = vpop.f32.mrf.mxu0
  %v561 = vadd.f32 0.0, %v560
  %562 = vmatprep.mubr.bf16.mxu0 0
  %563 = vmatmul.mubr.bf16.gmra.mxu0 %v499
  %v564 = vpop.f32.mrf.mxu0
  %v565 = vadd.f32 0.0, %v564
  %v566 = vpop.f32.mrf.mxu0
  %v567 = vadd.f32 0.0, %v566
  %v568 = vpop.f32.mrf.mxu0
  %v569 = vadd.f32 0.0, %v568
  %v570 = vpop.f32.mrf.mxu0
  %v571 = vadd.f32 0.0, %v570
  %572 = vmatprep.mubr.bf16.mxu0 0
  %573 = vmatmul.mubr.bf16.gmra.mxu0 %v502
  %v574 = vpop.f32.mrf.mxu0
  %v575 = vadd.f32 0.0, %v574
  %v576 = vpop.f32.mrf.mxu0
  %v577 = vadd.f32 0.0, %v576
  %v578 = vpop.f32.mrf.mxu0
  %v579 = vpop.f32.mrf.mxu0
  %580 = vdwg.mxu0
  %v581 = vmul.f32 %v417, %v54
  %v582 = vmul.f32 %v418, %v55
  %v583 = vmul.f32 %v419, %v56
  %v584 = vmul.f32 %v420, %v57
  %v585 = vmul.f32 %v421, %v58
  %v586 = vmul.f32 %v422, %v59
  %v587 = vmul.f32 %v423, %v60
  %v588 = vand.u32 2147483647, %v581
  %v589 = vand.u32 2147483647, %v582
  %v590 = vand.u32 2147483647, %v583
  %v591 = vand.u32 2147483647, %v584
  %v592 = vand.u32 2147483647, %v585
  %v593 = vand.u32 2147483647, %v586
  %v594 = vand.u32 2147483647, %v587
  %v595 = vsel %vm103, %v588, 0.0
  %596 = vadd.xlane.f32.xlu0 %v595
  %v597 = vpop.xlane.xlu0 %596
  %v598 = vsel %vm103, %v589, 0.0
  %599 = vadd.xlane.f32.xlu0 %v598
  %v600 = vpop.xlane.xlu0 %599
  %v601 = vsel %vm103, %v590, 0.0
  %602 = vadd.xlane.f32.xlu0 %v601
  %v603 = vpop.xlane.xlu0 %602
  %v604 = vsel %vm103, %v591, 0.0
  %605 = vadd.xlane.f32.xlu0 %v604
  %v606 = vpop.xlane.xlu0 %605
  %v607 = vsel %vm103, %v592, 0.0
  %608 = vadd.xlane.f32.xlu0 %v607
  %v609 = vpop.xlane.xlu0 %608
  %v610 = vsel %vm103, %v593, 0.0
  %611 = vadd.xlane.f32.xlu0 %v610
  %v612 = vpop.xlane.xlu0 %611
  %v613 = vsel %vm122, %v594, 0.0
  %614 = vadd.xlane.f32.xlu0 %v613
  %v615 = vpop.xlane.xlu0 %614
  %v616 = vmax.f32 %v597, 1e-12
  %v617 = vmax.f32 %v600, 1e-12
  %v618 = vmax.f32 %v603, 1e-12
  %v619 = vmax.f32 %v606, 1e-12
  %v620 = vmax.f32 %v609, 1e-12
  %v621 = vmax.f32 %v612, 1e-12
  %v622 = vmax.f32 %v615, 1e-12
  %v623 = vrcp.pop %v616
  %v624 = vmul.f32 %v581, %v623
  %v625 = vrcp.pop %v617
  %v626 = vmul.f32 %v582, %v625
  %v627 = vrcp.pop %v618
  %v628 = vmul.f32 %v583, %v627
  %v629 = vrcp.pop %v619
  %v630 = vmul.f32 %v584, %v629
  %v631 = vrcp.pop %v620
  %v632 = vmul.f32 %v585, %v631
  %v633 = vrcp.pop %v621
  %v634 = vmul.f32 %v586, %v633
  %v635 = vrcp.pop %v622
  %v636 = vmul.f32 %v587, %v635
  %v637 = vpack.c.bf16 %v626, %v624
  %v638 = vpack.c.bf16 %v630, %v628
  %v639 = vpack.c.bf16 %v634, %v632
  %v640 = vpack.c.bf16 %v636, %v636
  %v642 = vsel %vm103, %v637, 0
  %v645 = vsel %vm103, %v638, 0
  %v648 = vsel %vm103, %v639, 0
  %v651 = vsel %vm103, %v640, 0
  %653 = vmatprep.subr.bf16.mxu0 0
  %654 = vmatpush1.bf16.msra.mxu0 0
  %655 = vmatprep.subr.bf16.mxu0 0
  %656 = vmatpush1.bf16.msra.mxu0 0
  %657 = vmatprep.subr.bf16.mxu0 0
  %658 = vmatpush1.bf16.msra.mxu0 0
  %659 = vmatprep.subr.bf16.mxu0 0
  %660 = vmatpush1.bf16.msra.mxu0 0
  %661 = vmatprep.subr.bf16.mxu0 %v508
  %662 = vmatpush1.bf16.msra.mxu0 %v505
  %663 = vmatprep.subr.bf16.mxu0 %v489
  %664 = vmatpush1.bf16.msra.mxu0 %v488
  %665 = vmatprep.subr.bf16.mxu0 %v487
  %666 = vmatpush1.bf16.msra.mxu0 %v486
  %667 = vmatprep.subr.bf16.mxu0 %v485
  %668 = vmatpush1.bf16.msra.mxu0 %v484
  %669 = vmatprep.subr.bf16.mxu0 0
  %670 = vmatpush2.bf16.msra.mxu0 0
  %671 = vmatprep.subr.bf16.mxu0 0
  %672 = vmatpush2.bf16.msra.mxu0 0
  %673 = vmatprep.subr.bf16.mxu0 0
  %674 = vmatpush2.bf16.msra.mxu0 0
  %675 = vmatprep.subr.bf16.mxu0 0
  %676 = vmatpush2.bf16.msra.mxu0 0
  %677 = vmatprep.subr.bf16.mxu0 0
  %678 = vmatpush2.bf16.msra.mxu0 0
  %679 = vmatprep.subr.bf16.mxu0 0
  %680 = vmatpush2.bf16.msra.mxu0 0
  %681 = vmatprep.subr.bf16.mxu0 0
  %682 = vmatpush2.bf16.msra.mxu0 0
  %683 = vmatprep.subr.bf16.mxu0 0
  %684 = vmatpush2.bf16.msra.mxu0 0
  %685 = vmatprep.mubr.bf16.mxu0 0
  %686 = vmatmul.mubr.bf16.gmra.mxu0 %v642
  %v687 = vpop.f32.mrf.mxu0
  %v688 = vadd.f32 0.0, %v687
  %v689 = vpop.f32.mrf.mxu0
  %v690 = vadd.f32 0.0, %v689
  %v691 = vpop.f32.mrf.mxu0
  %v692 = vadd.f32 0.0, %v691
  %v693 = vpop.f32.mrf.mxu0
  %v694 = vadd.f32 0.0, %v693
  %695 = vmatprep.mubr.bf16.mxu0 0
  %696 = vmatmul.mubr.bf16.gmra.mxu0 %v645
  %v697 = vpop.f32.mrf.mxu0
  %v698 = vadd.f32 0.0, %v697
  %v699 = vpop.f32.mrf.mxu0
  %v700 = vadd.f32 0.0, %v699
  %v701 = vpop.f32.mrf.mxu0
  %v702 = vadd.f32 0.0, %v701
  %v703 = vpop.f32.mrf.mxu0
  %v704 = vadd.f32 0.0, %v703
  %705 = vmatprep.mubr.bf16.mxu0 0
  %706 = vmatmul.mubr.bf16.gmra.mxu0 %v648
  %v707 = vpop.f32.mrf.mxu0
  %v708 = vadd.f32 0.0, %v707
  %v709 = vpop.f32.mrf.mxu0
  %v710 = vadd.f32 0.0, %v709
  %v711 = vpop.f32.mrf.mxu0
  %v712 = vadd.f32 0.0, %v711
  %v713 = vpop.f32.mrf.mxu0
  %v714 = vadd.f32 0.0, %v713
  %715 = vmatprep.mubr.bf16.mxu0 0
  %716 = vmatmul.mubr.bf16.gmra.mxu0 %v651
  %v717 = vpop.f32.mrf.mxu0
  %v718 = vadd.f32 0.0, %v717
  %v719 = vpop.f32.mrf.mxu0
  %v720 = vadd.f32 0.0, %v719
  %v721 = vpop.f32.mrf.mxu0
  %v722 = vpop.f32.mrf.mxu0
  %723 = vdwg.mxu0
  %v724 = vpack.c.bf16 %v219, %v215
  %v725 = vpack.c.bf16 %v221, %v217
  %v726 = vpack.c.bf16 %v362, %v358
  %v727 = vpack.c.bf16 %v364, %v360
  %v728 = vpack.c.bf16 %v229, %v225
  %v729 = vpack.c.bf16 %v231, %v227
  %v730 = vpack.c.bf16 %v372, %v368
  %v731 = vpack.c.bf16 %v374, %v370
  %v732 = vpack.c.bf16 %v239, %v235
  %v733 = vpack.c.bf16 %v241, %v237
  %v734 = vpack.c.bf16 %v382, %v378
  %v735 = vpack.c.bf16 %v384, %v380
  %v736 = vpack.c.bf16 %v245, %v245
  %v737 = vpack.c.bf16 %v247, %v247
  %v738 = vpack.c.bf16 %v388, %v388
  %v739 = vpack.c.bf16 %v390, %v390
  %v740 = vld [vmem:[%s2] sm:$0xff]
  %v741 = vld [vmem:[%s2 + $0x8] sm:$0xff]
  %v742 = vld [vmem:[%s2 + $0x10] sm:$0xff]
  %v743 = vld [vmem:[%s2 + $0x18] sm:$0xff]
  %v744 = vld [vmem:[%s2 + $0x20] sm:$0xff]
  %v745 = vld [vmem:[%s2 + $0x28] sm:$0xff]
  %v746 = vld [vmem:[%s2 + $0x30] sm:$0xff]
  %v747 = vld [vmem:[%s2 + $0x38] sm:$0xff]
  %v748 = vld [vmem:[%s2 + $0x40] sm:$0xff]
  %v749 = vld [vmem:[%s2 + $0x48] sm:$0xff]
  %v750 = vld [vmem:[%s2 + $0x50] sm:$0xff]
  %v751 = vld [vmem:[%s2 + $0x58] sm:$0xff]
  %v752 = vld [vmem:[%s2 + $0x60] sm:$0xff]
  %v753 = vld [vmem:[%s2 + $0x68] sm:$0xff]
  %v754 = vld [vmem:[%s2 + $0x70] sm:$0xff]
  %v755 = vld [vmem:[%s2 + $0x78] sm:$0xff]
  %v756 = vld [vmem:[%s2 + $0x80] sm:$0xff]
  %v757 = vld [vmem:[%s2 + $0x88] sm:$0xff]
  %v758 = vld [vmem:[%s2 + $0x90] sm:$0xff]
  %v759 = vld [vmem:[%s2 + $0x98] sm:$0xff]
  %v760 = vld [vmem:[%s2 + $0xa0] sm:$0xff]
  %v761 = vld [vmem:[%s2 + $0xa8] sm:$0xff]
  %v762 = vld [vmem:[%s2 + $0xb0] sm:$0xff]
  %v763 = vld [vmem:[%s2 + $0xb8] sm:$0xff]
  %v764 = vld [vmem:[%s2 + $0xc0] sm:$0xff]
  %v765 = vld [vmem:[%s2 + $0xc8] sm:$0xff]
  %v766 = vld [vmem:[%s2 + $0xd0] sm:$0xff]
  %v767 = vld [vmem:[%s2 + $0xd8] sm:$0xff]
  %v768 = vld [vmem:[%s2 + $0xe0] sm:$0xff]
  %v769 = vld [vmem:[%s2 + $0xe8] sm:$0xff]
  %v770 = vld [vmem:[%s2 + $0xf0] sm:$0xff]
  %v771 = vld [vmem:[%s2 + $0xf8] sm:$0xff]
  %v772 = vld [vmem:[%s2 + $0x100] sm:$0xff]
  %v773 = vld [vmem:[%s2 + $0x108] sm:$0xff]
  %v774 = vld [vmem:[%s2 + $0x110] sm:$0xff]
  %v775 = vld [vmem:[%s2 + $0x118] sm:$0xff]
  %v776 = vld [vmem:[%s2 + $0x120] sm:$0xff]
  %v777 = vld [vmem:[%s2 + $0x128] sm:$0xff]
  %v778 = vld [vmem:[%s2 + $0x130] sm:$0xff]
  %v779 = vld [vmem:[%s2 + $0x138] sm:$0xff]
  %v780 = vld [vmem:[%s2 + $0x140] sm:$0xff]
  %v781 = vld [vmem:[%s2 + $0x148] sm:$0xff]
  %v782 = vld [vmem:[%s2 + $0x150] sm:$0xff]
  %v783 = vld [vmem:[%s2 + $0x158] sm:$0xff]
  %v784 = vld [vmem:[%s2 + $0x160] sm:$0xff]
  %v785 = vld [vmem:[%s2 + $0x168] sm:$0xff]
  %v786 = vld [vmem:[%s2 + $0x170] sm:$0xff]
  %v787 = vld [vmem:[%s2 + $0x178] sm:$0xff]
  %v788 = vld [vmem:[%s2 + $0x180] sm:$0xff]
  %v789 = vld [vmem:[%s2 + $0x188] sm:$0xff]
  %v790 = vld [vmem:[%s2 + $0x190] sm:$0xff]
  %v791 = vld [vmem:[%s2 + $0x198] sm:$0xff]
  %v792 = vld [vmem:[%s2 + $0x1a0] sm:$0xff]
  %v793 = vld [vmem:[%s2 + $0x1a8] sm:$0xff]
  %v794 = vld [vmem:[%s2 + $0x1b0] sm:$0xff]
  %v795 = vld [vmem:[%s2 + $0x1b8] sm:$0xff]
  %v796 = vld [vmem:[%s2 + $0x1c0] sm:$0xff]
  %v797 = vld [vmem:[%s2 + $0x1c8] sm:$0xff]
  %v798 = vld [vmem:[%s2 + $0x1d0] sm:$0xff]
  %v799 = vld [vmem:[%s2 + $0x1d8] sm:$0xff]
  %v800 = vld [vmem:[%s2 + $0x1e0] sm:$0xff]
  %v801 = vld [vmem:[%s2 + $0x1e8] sm:$0xff]
  %v802 = vld [vmem:[%s2 + $0x1f0] sm:$0xff]
  %v803 = vld [vmem:[%s2 + $0x1f8] sm:$0xff]
  %v804 = vld [vmem:[%s2 + $0x200] sm:$0xff]
  %v805 = vld [vmem:[%s2 + $0x208] sm:$0xff]
  %v806 = vld [vmem:[%s2 + $0x210] sm:$0xff]
  %v807 = vld [vmem:[%s2 + $0x218] sm:$0xff]
  %v808 = vld [vmem:[%s2 + $0x220] sm:$0xff]
  %v809 = vld [vmem:[%s2 + $0x228] sm:$0xff]
  %v810 = vld [vmem:[%s2 + $0x230] sm:$0xff]
  %v811 = vld [vmem:[%s2 + $0x238] sm:$0xff]
  %v812 = vld [vmem:[%s2 + $0x240] sm:$0xff]
  %v813 = vld [vmem:[%s2 + $0x248] sm:$0xff]
  %v814 = vld [vmem:[%s2 + $0x250] sm:$0xff]
  %v815 = vld [vmem:[%s2 + $0x258] sm:$0xff]
  %v816 = vld [vmem:[%s2 + $0x260] sm:$0xff]
  %v817 = vld [vmem:[%s2 + $0x268] sm:$0xff]
  %v818 = vld [vmem:[%s2 + $0x270] sm:$0xff]
  %v819 = vld [vmem:[%s2 + $0x278] sm:$0xff]
  %v820 = vld [vmem:[%s2 + $0x280] sm:$0xff]
  %v821 = vld [vmem:[%s2 + $0x288] sm:$0xff]
  %v822 = vld [vmem:[%s2 + $0x290] sm:$0xff]
  %v823 = vld [vmem:[%s2 + $0x298] sm:$0xff]
  %v824 = vld [vmem:[%s2 + $0x2a0] sm:$0xff]
  %v825 = vld [vmem:[%s2 + $0x2a8] sm:$0xff]
  %v826 = vld [vmem:[%s2 + $0x2b0] sm:$0xff]
  %v827 = vld [vmem:[%s2 + $0x2b8] sm:$0xff]
  %v828 = vld [vmem:[%s2 + $0x2c0] sm:$0xff]
  %v829 = vld [vmem:[%s2 + $0x2c8] sm:$0xff]
  %v830 = vld [vmem:[%s2 + $0x2d0] sm:$0xff]
  %v831 = vld [vmem:[%s2 + $0x2d8] sm:$0xff]
  %v832 = vld [vmem:[%s2 + $0x2e0] sm:$0xff]
  %v833 = vld [vmem:[%s2 + $0x2e8] sm:$0xff]
  %v834 = vld [vmem:[%s2 + $0x2f0] sm:$0xff]
  %v835 = vld [vmem:[%s2 + $0x2f8] sm:$0xff]
  %v836 = vld [vmem:[%s2 + $0x300] sm:$0xff]
  %v837 = vld [vmem:[%s2 + $0x308] sm:$0xff]
  %v838 = vld [vmem:[%s2 + $0x310] sm:$0xff]
  %v839 = vld [vmem:[%s2 + $0x318] sm:$0xff]
  %v840 = vld [vmem:[%s2 + $0x320] sm:$0xff]
  %v841 = vld [vmem:[%s2 + $0x328] sm:$0xff]
  %v842 = vld [vmem:[%s2 + $0x330] sm:$0xff]
  %v843 = vld [vmem:[%s2 + $0x338] sm:$0xff]
  %v844 = vld [vmem:[%s2 + $0x340] sm:$0xff]
  %v845 = vld [vmem:[%s2 + $0x348] sm:$0xff]
  %v846 = vld [vmem:[%s2 + $0x350] sm:$0xff]
  %v847 = vld [vmem:[%s2 + $0x358] sm:$0xff]
  %v848 = vld [vmem:[%s2 + $0x360] sm:$0xff]
  %v849 = vld [vmem:[%s2 + $0x368] sm:$0xff]
  %v850 = vld [vmem:[%s2 + $0x370] sm:$0xff]
  %v851 = vld [vmem:[%s2 + $0x378] sm:$0xff]
  %v852 = vld [vmem:[%s2 + $0x380] sm:$0xff]
  %v853 = vld [vmem:[%s2 + $0x388] sm:$0xff]
  %v854 = vld [vmem:[%s2 + $0x390] sm:$0xff]
  %v855 = vld [vmem:[%s2 + $0x398] sm:$0xff]
  %v856 = vld [vmem:[%s2 + $0x3a0] sm:$0xff]
  %v857 = vld [vmem:[%s2 + $0x3a8] sm:$0xff]
  %v858 = vld [vmem:[%s2 + $0x3b0] sm:$0xff]
  %v859 = vld [vmem:[%s2 + $0x3b8] sm:$0xff]
  %v860 = vld [vmem:[%s2 + $0x3c0] sm:$0xff]
  %v861 = vld [vmem:[%s2 + $0x3c8] sm:$0xff]
  %v862 = vld [vmem:[%s2 + $0x3d0] sm:$0xff]
  %v863 = vld [vmem:[%s2 + $0x3d8] sm:$0xff]
  %v864 = vld [vmem:[%s2 + $0x3e0] sm:$0xff]
  %v865 = vld [vmem:[%s2 + $0x3e8] sm:$0xff]
  %v866 = vld [vmem:[%s2 + $0x3f0] sm:$0xff]
  %v867 = vld [vmem:[%s2 + $0x3f8] sm:$0xff]
  %v868 = vld [vmem:[%s2 + $0x400] sm:$0xff]
  %v869 = vld [vmem:[%s2 + $0x408] sm:$0xff]
  %v870 = vld [vmem:[%s2 + $0x410] sm:$0xff]
  %v871 = vld [vmem:[%s2 + $0x418] sm:$0xff]
  %v872 = vld [vmem:[%s2 + $0x420] sm:$0xff]
  %v873 = vld [vmem:[%s2 + $0x428] sm:$0xff]
  %v874 = vld [vmem:[%s2 + $0x430] sm:$0xff]
  %v875 = vld [vmem:[%s2 + $0x438] sm:$0xff]
  %v876 = vld [vmem:[%s2 + $0x440] sm:$0xff]
  %v877 = vld [vmem:[%s2 + $0x448] sm:$0xff]
  %v878 = vld [vmem:[%s2 + $0x450] sm:$0xff]
  %v879 = vld [vmem:[%s2 + $0x458] sm:$0xff]
  %v880 = vld [vmem:[%s2 + $0x460] sm:$0xff]
  %v881 = vld [vmem:[%s2 + $0x468] sm:$0xff]
  %v882 = vld [vmem:[%s2 + $0x470] sm:$0xff]
  %v883 = vld [vmem:[%s2 + $0x478] sm:$0xff]
  %v884 = vld [vmem:[%s2 + $0x480] sm:$0xff]
  %v885 = vld [vmem:[%s2 + $0x488] sm:$0xff]
  %v886 = vld [vmem:[%s2 + $0x490] sm:$0xff]
  %v887 = vld [vmem:[%s2 + $0x498] sm:$0xff]
  %v888 = vld [vmem:[%s2 + $0x4a0] sm:$0xff]
  %v889 = vld [vmem:[%s2 + $0x4a8] sm:$0xff]
  %v890 = vld [vmem:[%s2 + $0x4b0] sm:$0xff]
  %v891 = vld [vmem:[%s2 + $0x4b8] sm:$0xff]
  %v892 = vld [vmem:[%s2 + $0x4c0] sm:$0xff]
  %v893 = vld [vmem:[%s2 + $0x4c8] sm:$0xff]
  %v894 = vld [vmem:[%s2 + $0x4d0] sm:$0xff]
  %v895 = vld [vmem:[%s2 + $0x4d8] sm:$0xff]
  %v896 = vld [vmem:[%s2 + $0x4e0] sm:$0xff]
  %v897 = vld [vmem:[%s2 + $0x4e8] sm:$0xff]
  %v898 = vld [vmem:[%s2 + $0x4f0] sm:$0xff]
  %v899 = vld [vmem:[%s2 + $0x4f8] sm:$0xff]
  %v900 = vld [vmem:[%s2 + $0x500] sm:$0xff]
  %v901 = vld [vmem:[%s2 + $0x508] sm:$0xff]
  %v902 = vld [vmem:[%s2 + $0x510] sm:$0xff]
  %v903 = vld [vmem:[%s2 + $0x518] sm:$0xff]
  %v904 = vld [vmem:[%s2 + $0x520] sm:$0xff]
  %v905 = vld [vmem:[%s2 + $0x528] sm:$0xff]
  %v906 = vld [vmem:[%s2 + $0x530] sm:$0xff]
  %v907 = vld [vmem:[%s2 + $0x538] sm:$0xff]
  %v908 = vld [vmem:[%s2 + $0x540] sm:$0xff]
  %v909 = vld [vmem:[%s2 + $0x548] sm:$0xff]
  %v910 = vld [vmem:[%s2 + $0x550] sm:$0xff]
  %v911 = vld [vmem:[%s2 + $0x558] sm:$0xff]
  %v912 = vld [vmem:[%s2 + $0x560] sm:$0xff]
  %v913 = vld [vmem:[%s2 + $0x568] sm:$0xff]
  %v914 = vld [vmem:[%s2 + $0x570] sm:$0xff]
  %v915 = vld [vmem:[%s2 + $0x578] sm:$0xff]
  %v916 = vld [vmem:[%s2 + $0x580] sm:$0xff]
  %v917 = vld [vmem:[%s2 + $0x588] sm:$0xff]
  %v918 = vld [vmem:[%s2 + $0x590] sm:$0xff]
  %v919 = vld [vmem:[%s2 + $0x598] sm:$0xff]
  %v920 = vld [vmem:[%s2 + $0x5a0] sm:$0xff]
  %v921 = vld [vmem:[%s2 + $0x5a8] sm:$0xff]
  %v922 = vld [vmem:[%s2 + $0x5b0] sm:$0xff]
  %v923 = vld [vmem:[%s2 + $0x5b8] sm:$0xff]
  %v924 = vld [vmem:[%s2 + $0x5c0] sm:$0xff]
  %v925 = vld [vmem:[%s2 + $0x5c8] sm:$0xff]
  %v926 = vld [vmem:[%s2 + $0x5d0] sm:$0xff]
  %v927 = vld [vmem:[%s2 + $0x5d8] sm:$0xff]
  %v928 = vld [vmem:[%s2 + $0x5e0] sm:$0xff]
  %v929 = vld [vmem:[%s2 + $0x5e8] sm:$0xff]
  %v930 = vld [vmem:[%s2 + $0x5f0] sm:$0xff]
  %v931 = vld [vmem:[%s2 + $0x5f8] sm:$0xff]
  %v1124 = vunpack.c.l.b16 %v740
  %v1125 = vunpack.c.h.b16 %v740
  %v1126 = vunpack.c.l.b16 %v741
  %v1127 = vunpack.c.h.b16 %v741
  %v1128 = vunpack.c.l.b16 %v742
  %v1129 = vunpack.c.h.b16 %v742
  %v1130 = vunpack.c.l.b16 %v743
  %v1131 = vunpack.c.h.b16 %v743
  %v1132 = vunpack.c.l.b16 %v744
  %v1133 = vunpack.c.h.b16 %v744
  %v1134 = vunpack.c.l.b16 %v745
  %v1135 = vunpack.c.h.b16 %v745
  %v1136 = vunpack.c.l.b16 %v746
  %v1137 = vunpack.c.h.b16 %v746
  %v1138 = vunpack.c.l.b16 %v747
  %v1139 = vunpack.c.h.b16 %v747
  %v1140 = vunpack.c.l.b16 %v748
  %v1141 = vunpack.c.h.b16 %v748
  %v1142 = vunpack.c.l.b16 %v749
  %v1143 = vunpack.c.h.b16 %v749
  %v1144 = vunpack.c.l.b16 %v750
  %v1145 = vunpack.c.h.b16 %v750
  %v1146 = vunpack.c.l.b16 %v751
  %v1147 = vunpack.c.h.b16 %v751
  %v1148 = vunpack.c.l.b16 %v752
  %v1149 = vunpack.c.h.b16 %v752
  %v1150 = vunpack.c.l.b16 %v753
  %v1151 = vunpack.c.h.b16 %v753
  %v1152 = vunpack.c.l.b16 %v754
  %v1153 = vunpack.c.h.b16 %v754
  %v1154 = vunpack.c.l.b16 %v755
  %v1155 = vunpack.c.h.b16 %v755
  %v1156 = vunpack.c.l.b16 %v756
  %v1157 = vunpack.c.h.b16 %v756
  %v1158 = vunpack.c.l.b16 %v757
  %v1159 = vunpack.c.h.b16 %v757
  %v1160 = vunpack.c.l.b16 %v758
  %v1161 = vunpack.c.h.b16 %v758
  %v1162 = vunpack.c.l.b16 %v759
  %v1163 = vunpack.c.h.b16 %v759
  %v1164 = vunpack.c.l.b16 %v760
  %v1165 = vunpack.c.h.b16 %v760
  %v1166 = vunpack.c.l.b16 %v761
  %v1167 = vunpack.c.h.b16 %v761
  %v1168 = vunpack.c.l.b16 %v762
  %v1169 = vunpack.c.h.b16 %v762
  %v1170 = vunpack.c.l.b16 %v763
  %v1171 = vunpack.c.h.b16 %v763
  %v1172 = vunpack.c.l.b16 %v764
  %v1173 = vunpack.c.h.b16 %v764
  %v1174 = vunpack.c.l.b16 %v765
  %v1175 = vunpack.c.h.b16 %v765
  %v1176 = vunpack.c.l.b16 %v766
  %v1177 = vunpack.c.h.b16 %v766
  %v1178 = vunpack.c.l.b16 %v767
  %v1179 = vunpack.c.h.b16 %v767
  %v1180 = vunpack.c.l.b16 %v768
  %v1181 = vunpack.c.h.b16 %v768
  %v1182 = vunpack.c.l.b16 %v769
  %v1183 = vunpack.c.h.b16 %v769
  %v1184 = vunpack.c.l.b16 %v770
  %v1185 = vunpack.c.h.b16 %v770
  %v1186 = vunpack.c.l.b16 %v771
  %v1187 = vunpack.c.h.b16 %v771
  %v1188 = vunpack.c.l.b16 %v772
  %v1189 = vunpack.c.h.b16 %v772
  %v1190 = vunpack.c.l.b16 %v773
  %v1191 = vunpack.c.h.b16 %v773
  %v1192 = vunpack.c.l.b16 %v774
  %v1193 = vunpack.c.h.b16 %v774
  %v1194 = vunpack.c.l.b16 %v775
  %v1195 = vunpack.c.h.b16 %v775
  %v1196 = vunpack.c.l.b16 %v776
  %v1197 = vunpack.c.h.b16 %v776
  %v1198 = vunpack.c.l.b16 %v777
  %v1199 = vunpack.c.h.b16 %v777
  %v1200 = vunpack.c.l.b16 %v778
  %v1201 = vunpack.c.h.b16 %v778
  %v1202 = vunpack.c.l.b16 %v779
  %v1203 = vunpack.c.h.b16 %v779
  %v1204 = vunpack.c.l.b16 %v780
  %v1205 = vunpack.c.h.b16 %v780
  %v1206 = vunpack.c.l.b16 %v781
  %v1207 = vunpack.c.h.b16 %v781
  %v1208 = vunpack.c.l.b16 %v782
  %v1209 = vunpack.c.h.b16 %v782
  %v1210 = vunpack.c.l.b16 %v783
  %v1211 = vunpack.c.h.b16 %v783
  %v1212 = vunpack.c.l.b16 %v784
  %v1213 = vunpack.c.h.b16 %v784
  %v1214 = vunpack.c.l.b16 %v785
  %v1215 = vunpack.c.h.b16 %v785
  %v1216 = vunpack.c.l.b16 %v786
  %v1217 = vunpack.c.h.b16 %v786
  %v1218 = vunpack.c.l.b16 %v787
  %v1219 = vunpack.c.h.b16 %v787
  %v1220 = vunpack.c.l.b16 %v788
  %v1221 = vunpack.c.h.b16 %v788
  %v1222 = vunpack.c.l.b16 %v789
  %v1223 = vunpack.c.h.b16 %v789
  %v1224 = vunpack.c.l.b16 %v790
  %v1225 = vunpack.c.h.b16 %v790
  %v1226 = vunpack.c.l.b16 %v791
  %v1227 = vunpack.c.h.b16 %v791
  %v1228 = vunpack.c.l.b16 %v792
  %v1229 = vunpack.c.h.b16 %v792
  %v1230 = vunpack.c.l.b16 %v793
  %v1231 = vunpack.c.h.b16 %v793
  %v1232 = vunpack.c.l.b16 %v794
  %v1233 = vunpack.c.h.b16 %v794
  %v1234 = vunpack.c.l.b16 %v795
  %v1235 = vunpack.c.h.b16 %v795
  %v1236 = vunpack.c.l.b16 %v796
  %v1237 = vunpack.c.h.b16 %v796
  %v1238 = vunpack.c.l.b16 %v797
  %v1239 = vunpack.c.h.b16 %v797
  %v1240 = vunpack.c.l.b16 %v798
  %v1241 = vunpack.c.h.b16 %v798
  %v1242 = vunpack.c.l.b16 %v799
  %v1243 = vunpack.c.h.b16 %v799
  %v1244 = vunpack.c.l.b16 %v800
  %v1245 = vunpack.c.h.b16 %v800
  %v1246 = vunpack.c.l.b16 %v801
  %v1247 = vunpack.c.h.b16 %v801
  %v1248 = vunpack.c.l.b16 %v802
  %v1249 = vunpack.c.h.b16 %v802
  %v1250 = vunpack.c.l.b16 %v803
  %v1251 = vunpack.c.h.b16 %v803
  %v1252 = vunpack.c.l.b16 %v804
  %v1253 = vunpack.c.h.b16 %v804
  %v1254 = vunpack.c.l.b16 %v805
  %v1255 = vunpack.c.h.b16 %v805
  %v1256 = vunpack.c.l.b16 %v806
  %v1257 = vunpack.c.h.b16 %v806
  %v1258 = vunpack.c.l.b16 %v807
  %v1259 = vunpack.c.h.b16 %v807
  %v1260 = vunpack.c.l.b16 %v808
  %v1261 = vunpack.c.h.b16 %v808
  %v1262 = vunpack.c.l.b16 %v809
  %v1263 = vunpack.c.h.b16 %v809
  %v1264 = vunpack.c.l.b16 %v810
  %v1265 = vunpack.c.h.b16 %v810
  %v1266 = vunpack.c.l.b16 %v811
  %v1267 = vunpack.c.h.b16 %v811
  %v1268 = vunpack.c.l.b16 %v812
  %v1269 = vunpack.c.h.b16 %v812
  %v1270 = vunpack.c.l.b16 %v813
  %v1271 = vunpack.c.h.b16 %v813
  %v1272 = vunpack.c.l.b16 %v814
  %v1273 = vunpack.c.h.b16 %v814
  %v1274 = vunpack.c.l.b16 %v815
  %v1275 = vunpack.c.h.b16 %v815
  %v1276 = vunpack.c.l.b16 %v816
  %v1277 = vunpack.c.h.b16 %v816
  %v1278 = vunpack.c.l.b16 %v817
  %v1279 = vunpack.c.h.b16 %v817
  %v1280 = vunpack.c.l.b16 %v818
  %v1281 = vunpack.c.h.b16 %v818
  %v1282 = vunpack.c.l.b16 %v819
  %v1283 = vunpack.c.h.b16 %v819
  %v1284 = vunpack.c.l.b16 %v820
  %v1285 = vunpack.c.h.b16 %v820
  %v1286 = vunpack.c.l.b16 %v821
  %v1287 = vunpack.c.h.b16 %v821
  %v1288 = vunpack.c.l.b16 %v822
  %v1289 = vunpack.c.h.b16 %v822
  %v1290 = vunpack.c.l.b16 %v823
  %v1291 = vunpack.c.h.b16 %v823
  %v1292 = vunpack.c.l.b16 %v824
  %v1293 = vunpack.c.h.b16 %v824
  %v1294 = vunpack.c.l.b16 %v825
  %v1295 = vunpack.c.h.b16 %v825
  %v1296 = vunpack.c.l.b16 %v826
  %v1297 = vunpack.c.h.b16 %v826
  %v1298 = vunpack.c.l.b16 %v827
  %v1299 = vunpack.c.h.b16 %v827
  %v1300 = vunpack.c.l.b16 %v828
  %v1301 = vunpack.c.h.b16 %v828
  %v1302 = vunpack.c.l.b16 %v829
  %v1303 = vunpack.c.h.b16 %v829
  %v1304 = vunpack.c.l.b16 %v830
  %v1305 = vunpack.c.h.b16 %v830
  %v1306 = vunpack.c.l.b16 %v831
  %v1307 = vunpack.c.h.b16 %v831
  %v1308 = vunpack.c.l.b16 %v832
  %v1309 = vunpack.c.h.b16 %v832
  %v1310 = vunpack.c.l.b16 %v833
  %v1311 = vunpack.c.h.b16 %v833
  %v1312 = vunpack.c.l.b16 %v834
  %v1313 = vunpack.c.h.b16 %v834
  %v1314 = vunpack.c.l.b16 %v835
  %v1315 = vunpack.c.h.b16 %v835
  %v1316 = vunpack.c.l.b16 %v836
  %v1317 = vunpack.c.h.b16 %v836
  %v1318 = vunpack.c.l.b16 %v837
  %v1319 = vunpack.c.h.b16 %v837
  %v1320 = vunpack.c.l.b16 %v838
  %v1321 = vunpack.c.h.b16 %v838
  %v1322 = vunpack.c.l.b16 %v839
  %v1323 = vunpack.c.h.b16 %v839
  %v1324 = vunpack.c.l.b16 %v840
  %v1325 = vunpack.c.h.b16 %v840
  %v1326 = vunpack.c.l.b16 %v841
  %v1327 = vunpack.c.h.b16 %v841
  %v1328 = vunpack.c.l.b16 %v842
  %v1329 = vunpack.c.h.b16 %v842
  %v1330 = vunpack.c.l.b16 %v843
  %v1331 = vunpack.c.h.b16 %v843
  %v1332 = vunpack.c.l.b16 %v844
  %v1333 = vunpack.c.h.b16 %v844
  %v1334 = vunpack.c.l.b16 %v845
  %v1335 = vunpack.c.h.b16 %v845
  %v1336 = vunpack.c.l.b16 %v846
  %v1337 = vunpack.c.h.b16 %v846
  %v1338 = vunpack.c.l.b16 %v847
  %v1339 = vunpack.c.h.b16 %v847
  %v1340 = vunpack.c.l.b16 %v848
  %v1341 = vunpack.c.h.b16 %v848
  %v1342 = vunpack.c.l.b16 %v849
  %v1343 = vunpack.c.h.b16 %v849
  %v1344 = vunpack.c.l.b16 %v850
  %v1345 = vunpack.c.h.b16 %v850
  %v1346 = vunpack.c.l.b16 %v851
  %v1347 = vunpack.c.h.b16 %v851
  %v1348 = vunpack.c.l.b16 %v852
  %v1349 = vunpack.c.h.b16 %v852
  %v1350 = vunpack.c.l.b16 %v853
  %v1351 = vunpack.c.h.b16 %v853
  %v1352 = vunpack.c.l.b16 %v854
  %v1353 = vunpack.c.h.b16 %v854
  %v1354 = vunpack.c.l.b16 %v855
  %v1355 = vunpack.c.h.b16 %v855
  %v1356 = vunpack.c.l.b16 %v856
  %v1357 = vunpack.c.h.b16 %v856
  %v1358 = vunpack.c.l.b16 %v857
  %v1359 = vunpack.c.h.b16 %v857
  %v1360 = vunpack.c.l.b16 %v858
  %v1361 = vunpack.c.h.b16 %v858
  %v1362 = vunpack.c.l.b16 %v859
  %v1363 = vunpack.c.h.b16 %v859
  %v1364 = vunpack.c.l.b16 %v860
  %v1365 = vunpack.c.h.b16 %v860
  %v1366 = vunpack.c.l.b16 %v861
  %v1367 = vunpack.c.h.b16 %v861
  %v1368 = vunpack.c.l.b16 %v862
  %v1369 = vunpack.c.h.b16 %v862
  %v1370 = vunpack.c.l.b16 %v863
  %v1371 = vunpack.c.h.b16 %v863
  %v1372 = vunpack.c.l.b16 %v864
  %v1373 = vunpack.c.h.b16 %v864
  %v1374 = vunpack.c.l.b16 %v865
  %v1375 = vunpack.c.h.b16 %v865
  %v1376 = vunpack.c.l.b16 %v866
  %v1377 = vunpack.c.h.b16 %v866
  %v1378 = vunpack.c.l.b16 %v867
  %v1379 = vunpack.c.h.b16 %v867
  %v1380 = vunpack.c.l.b16 %v868
  %v1381 = vunpack.c.h.b16 %v868
  %v1382 = vunpack.c.l.b16 %v869
  %v1383 = vunpack.c.h.b16 %v869
  %v1384 = vunpack.c.l.b16 %v870
  %v1385 = vunpack.c.h.b16 %v870
  %v1386 = vunpack.c.l.b16 %v871
  %v1387 = vunpack.c.h.b16 %v871
  %v1388 = vunpack.c.l.b16 %v872
  %v1389 = vunpack.c.h.b16 %v872
  %v1390 = vunpack.c.l.b16 %v873
  %v1391 = vunpack.c.h.b16 %v873
  %v1392 = vunpack.c.l.b16 %v874
  %v1393 = vunpack.c.h.b16 %v874
  %v1394 = vunpack.c.l.b16 %v875
  %v1395 = vunpack.c.h.b16 %v875
  %v1396 = vunpack.c.l.b16 %v876
  %v1397 = vunpack.c.h.b16 %v876
  %v1398 = vunpack.c.l.b16 %v877
  %v1399 = vunpack.c.h.b16 %v877
  %v1400 = vunpack.c.l.b16 %v878
  %v1401 = vunpack.c.h.b16 %v878
  %v1402 = vunpack.c.l.b16 %v879
  %v1403 = vunpack.c.h.b16 %v879
  %v1404 = vunpack.c.l.b16 %v880
  %v1405 = vunpack.c.h.b16 %v880
  %v1406 = vunpack.c.l.b16 %v881
  %v1407 = vunpack.c.h.b16 %v881
  %v1408 = vunpack.c.l.b16 %v882
  %v1409 = vunpack.c.h.b16 %v882
  %v1410 = vunpack.c.l.b16 %v883
  %v1411 = vunpack.c.h.b16 %v883
  %v1412 = vunpack.c.l.b16 %v884
  %v1413 = vunpack.c.h.b16 %v884
  %v1414 = vunpack.c.l.b16 %v885
  %v1415 = vunpack.c.h.b16 %v885
  %v1416 = vunpack.c.l.b16 %v886
  %v1417 = vunpack.c.h.b16 %v886
  %v1418 = vunpack.c.l.b16 %v887
  %v1419 = vunpack.c.h.b16 %v887
  %v1420 = vunpack.c.l.b16 %v888
  %v1421 = vunpack.c.h.b16 %v888
  %v1422 = vunpack.c.l.b16 %v889
  %v1423 = vunpack.c.h.b16 %v889
  %v1424 = vunpack.c.l.b16 %v890
  %v1425 = vunpack.c.h.b16 %v890
  %v1426 = vunpack.c.l.b16 %v891
  %v1427 = vunpack.c.h.b16 %v891
  %v1428 = vunpack.c.l.b16 %v892
  %v1429 = vunpack.c.h.b16 %v892
  %v1430 = vunpack.c.l.b16 %v893
  %v1431 = vunpack.c.h.b16 %v893
  %v1432 = vunpack.c.l.b16 %v894
  %v1433 = vunpack.c.h.b16 %v894
  %v1434 = vunpack.c.l.b16 %v895
  %v1435 = vunpack.c.h.b16 %v895
  %v1436 = vunpack.c.l.b16 %v896
  %v1437 = vunpack.c.h.b16 %v896
  %v1438 = vunpack.c.l.b16 %v897
  %v1439 = vunpack.c.h.b16 %v897
  %v1440 = vunpack.c.l.b16 %v898
  %v1441 = vunpack.c.h.b16 %v898
  %v1442 = vunpack.c.l.b16 %v899
  %v1443 = vunpack.c.h.b16 %v899
  %v1444 = vunpack.c.l.b16 %v900
  %v1445 = vunpack.c.h.b16 %v900
  %v1446 = vunpack.c.l.b16 %v901
  %v1447 = vunpack.c.h.b16 %v901
  %v1448 = vunpack.c.l.b16 %v902
  %v1449 = vunpack.c.h.b16 %v902
  %v1450 = vunpack.c.l.b16 %v903
  %v1451 = vunpack.c.h.b16 %v903
  %v1452 = vunpack.c.l.b16 %v904
  %v1453 = vunpack.c.h.b16 %v904
  %v1454 = vunpack.c.l.b16 %v905
  %v1455 = vunpack.c.h.b16 %v905
  %v1456 = vunpack.c.l.b16 %v906
  %v1457 = vunpack.c.h.b16 %v906
  %v1458 = vunpack.c.l.b16 %v907
  %v1459 = vunpack.c.h.b16 %v907
  %v1460 = vunpack.c.l.b16 %v908
  %v1461 = vunpack.c.h.b16 %v908
  %v1462 = vunpack.c.l.b16 %v909
  %v1463 = vunpack.c.h.b16 %v909
  %v1464 = vunpack.c.l.b16 %v910
  %v1465 = vunpack.c.h.b16 %v910
  %v1466 = vunpack.c.l.b16 %v911
  %v1467 = vunpack.c.h.b16 %v911
  %v1468 = vunpack.c.l.b16 %v912
  %v1469 = vunpack.c.h.b16 %v912
  %v1470 = vunpack.c.l.b16 %v913
  %v1471 = vunpack.c.h.b16 %v913
  %v1472 = vunpack.c.l.b16 %v914
  %v1473 = vunpack.c.h.b16 %v914
  %v1474 = vunpack.c.l.b16 %v915
  %v1475 = vunpack.c.h.b16 %v915
  %v1476 = vunpack.c.l.b16 %v916
  %v1477 = vunpack.c.h.b16 %v916
  %v1478 = vunpack.c.l.b16 %v917
  %v1479 = vunpack.c.h.b16 %v917
  %v1480 = vunpack.c.l.b16 %v918
  %v1481 = vunpack.c.h.b16 %v918
  %v1482 = vunpack.c.l.b16 %v919
  %v1483 = vunpack.c.h.b16 %v919
  %v1484 = vunpack.c.l.b16 %v920
  %v1485 = vunpack.c.h.b16 %v920
  %v1486 = vunpack.c.l.b16 %v921
  %v1487 = vunpack.c.h.b16 %v921
  %v1488 = vunpack.c.l.b16 %v922
  %v1489 = vunpack.c.h.b16 %v922
  %v1490 = vunpack.c.l.b16 %v923
  %v1491 = vunpack.c.h.b16 %v923
  %v1492 = vunpack.c.l.b16 %v924
  %v1493 = vunpack.c.h.b16 %v924
  %v1494 = vunpack.c.l.b16 %v925
  %v1495 = vunpack.c.h.b16 %v925
  %v1496 = vunpack.c.l.b16 %v926
  %v1497 = vunpack.c.h.b16 %v926
  %v1498 = vunpack.c.l.b16 %v927
  %v1499 = vunpack.c.h.b16 %v927
  %v1500 = vunpack.c.l.b16 %v928
  %v1501 = vunpack.c.h.b16 %v928
  %v1502 = vunpack.c.l.b16 %v929
  %v1503 = vunpack.c.h.b16 %v929
  %v1504 = vunpack.c.l.b16 %v930
  %v1505 = vunpack.c.h.b16 %v930
  %v1506 = vunpack.c.l.b16 %v931
  %v1507 = vunpack.c.h.b16 %v931
  %v1508 = vpack.c.b16 %v1128, %v1124
  %v1509 = vpack.c.b16 %v1129, %v1125
  %v1510 = vpack.c.b16 %v1130, %v1126
  %v1511 = vpack.c.b16 %v1131, %v1127
  %v1512 = vpack.c.b16 %v1136, %v1132
  %v1513 = vpack.c.b16 %v1137, %v1133
  %v1514 = vpack.c.b16 %v1138, %v1134
  %v1515 = vpack.c.b16 %v1139, %v1135
  %v1516 = vpack.c.b16 %v1144, %v1140
  %v1517 = vpack.c.b16 %v1145, %v1141
  %v1518 = vpack.c.b16 %v1146, %v1142
  %v1519 = vpack.c.b16 %v1147, %v1143
  %v1520 = vpack.c.b16 %v1152, %v1148
  %v1521 = vpack.c.b16 %v1153, %v1149
  %v1522 = vpack.c.b16 %v1154, %v1150
  %v1523 = vpack.c.b16 %v1155, %v1151
  %v1524 = vpack.c.b16 %v1160, %v1156
  %v1525 = vpack.c.b16 %v1161, %v1157
  %v1526 = vpack.c.b16 %v1162, %v1158
  %v1527 = vpack.c.b16 %v1163, %v1159
  %v1528 = vpack.c.b16 %v1168, %v1164
  %v1529 = vpack.c.b16 %v1169, %v1165
  %v1530 = vpack.c.b16 %v1170, %v1166
  %v1531 = vpack.c.b16 %v1171, %v1167
  %v1532 = vpack.c.b16 %v1176, %v1172
  %v1533 = vpack.c.b16 %v1177, %v1173
  %v1534 = vpack.c.b16 %v1178, %v1174
  %v1535 = vpack.c.b16 %v1179, %v1175
  %v1536 = vpack.c.b16 %v1184, %v1180
  %v1537 = vpack.c.b16 %v1185, %v1181
  %v1538 = vpack.c.b16 %v1186, %v1182
  %v1539 = vpack.c.b16 %v1187, %v1183
  %v1540 = vpack.c.b16 %v1192, %v1188
  %v1541 = vpack.c.b16 %v1193, %v1189
  %v1542 = vpack.c.b16 %v1194, %v1190
  %v1543 = vpack.c.b16 %v1195, %v1191
  %v1544 = vpack.c.b16 %v1200, %v1196
  %v1545 = vpack.c.b16 %v1201, %v1197
  %v1546 = vpack.c.b16 %v1202, %v1198
  %v1547 = vpack.c.b16 %v1203, %v1199
  %v1548 = vpack.c.b16 %v1208, %v1204
  %v1549 = vpack.c.b16 %v1209, %v1205
  %v1550 = vpack.c.b16 %v1210, %v1206
  %v1551 = vpack.c.b16 %v1211, %v1207
  %v1552 = vpack.c.b16 %v1216, %v1212
  %v1553 = vpack.c.b16 %v1217, %v1213
  %v1554 = vpack.c.b16 %v1218, %v1214
  %v1555 = vpack.c.b16 %v1219, %v1215
  %v1556 = vpack.c.b16 %v1224, %v1220
  %v1557 = vpack.c.b16 %v1225, %v1221
  %v1558 = vpack.c.b16 %v1226, %v1222
  %v1559 = vpack.c.b16 %v1227, %v1223
  %v1560 = vpack.c.b16 %v1232, %v1228
  %v1561 = vpack.c.b16 %v1233, %v1229
  %v1562 = vpack.c.b16 %v1234, %v1230
  %v1563 = vpack.c.b16 %v1235, %v1231
  %v1564 = vpack.c.b16 %v1240, %v1236
  %v1565 = vpack.c.b16 %v1241, %v1237
  %v1566 = vpack.c.b16 %v1242, %v1238
  %v1567 = vpack.c.b16 %v1243, %v1239
  %v1568 = vpack.c.b16 %v1248, %v1244
  %v1569 = vpack.c.b16 %v1249, %v1245
  %v1570 = vpack.c.b16 %v1250, %v1246
  %v1571 = vpack.c.b16 %v1251, %v1247
  %v1572 = vpack.c.b16 %v1256, %v1252
  %v1573 = vpack.c.b16 %v1257, %v1253
  %v1574 = vpack.c.b16 %v1258, %v1254
  %v1575 = vpack.c.b16 %v1259, %v1255
  %v1576 = vpack.c.b16 %v1264, %v1260
  %v1577 = vpack.c.b16 %v1265, %v1261
  %v1578 = vpack.c.b16 %v1266, %v1262
  %v1579 = vpack.c.b16 %v1267, %v1263
  %v1580 = vpack.c.b16 %v1272, %v1268
  %v1581 = vpack.c.b16 %v1273, %v1269
  %v1582 = vpack.c.b16 %v1274, %v1270
  %v1583 = vpack.c.b16 %v1275, %v1271
  %v1584 = vpack.c.b16 %v1280, %v1276
  %v1585 = vpack.c.b16 %v1281, %v1277
  %v1586 = vpack.c.b16 %v1282, %v1278
  %v1587 = vpack.c.b16 %v1283, %v1279
  %v1588 = vpack.c.b16 %v1288, %v1284
  %v1589 = vpack.c.b16 %v1289, %v1285
  %v1590 = vpack.c.b16 %v1290, %v1286
  %v1591 = vpack.c.b16 %v1291, %v1287
  %v1592 = vpack.c.b16 %v1296, %v1292
  %v1593 = vpack.c.b16 %v1297, %v1293
  %v1594 = vpack.c.b16 %v1298, %v1294
  %v1595 = vpack.c.b16 %v1299, %v1295
  %v1596 = vpack.c.b16 %v1304, %v1300
  %v1597 = vpack.c.b16 %v1305, %v1301
  %v1598 = vpack.c.b16 %v1306, %v1302
  %v1599 = vpack.c.b16 %v1307, %v1303
  %v1600 = vpack.c.b16 %v1312, %v1308
  %v1601 = vpack.c.b16 %v1313, %v1309
  %v1602 = vpack.c.b16 %v1314, %v1310
  %v1603 = vpack.c.b16 %v1315, %v1311
  %v1604 = vpack.c.b16 %v1320, %v1316
  %v1605 = vpack.c.b16 %v1321, %v1317
  %v1606 = vpack.c.b16 %v1322, %v1318
  %v1607 = vpack.c.b16 %v1323, %v1319
  %v1608 = vpack.c.b16 %v1328, %v1324
  %v1609 = vpack.c.b16 %v1329, %v1325
  %v1610 = vpack.c.b16 %v1330, %v1326
  %v1611 = vpack.c.b16 %v1331, %v1327
  %v1612 = vpack.c.b16 %v1336, %v1332
  %v1613 = vpack.c.b16 %v1337, %v1333
  %v1614 = vpack.c.b16 %v1338, %v1334
  %v1615 = vpack.c.b16 %v1339, %v1335
  %v1616 = vpack.c.b16 %v1344, %v1340
  %v1617 = vpack.c.b16 %v1345, %v1341
  %v1618 = vpack.c.b16 %v1346, %v1342
  %v1619 = vpack.c.b16 %v1347, %v1343
  %v1620 = vpack.c.b16 %v1352, %v1348
  %v1621 = vpack.c.b16 %v1353, %v1349
  %v1622 = vpack.c.b16 %v1354, %v1350
  %v1623 = vpack.c.b16 %v1355, %v1351
  %v1624 = vpack.c.b16 %v1360, %v1356
  %v1625 = vpack.c.b16 %v1361, %v1357
  %v1626 = vpack.c.b16 %v1362, %v1358
  %v1627 = vpack.c.b16 %v1363, %v1359
  %v1628 = vpack.c.b16 %v1368, %v1364
  %v1629 = vpack.c.b16 %v1369, %v1365
  %v1630 = vpack.c.b16 %v1370, %v1366
  %v1631 = vpack.c.b16 %v1371, %v1367
  %v1632 = vpack.c.b16 %v1376, %v1372
  %v1633 = vpack.c.b16 %v1377, %v1373
  %v1634 = vpack.c.b16 %v1378, %v1374
  %v1635 = vpack.c.b16 %v1379, %v1375
  %v1636 = vpack.c.b16 %v1384, %v1380
  %v1637 = vpack.c.b16 %v1385, %v1381
  %v1638 = vpack.c.b16 %v1386, %v1382
  %v1639 = vpack.c.b16 %v1387, %v1383
  %v1640 = vpack.c.b16 %v1392, %v1388
  %v1641 = vpack.c.b16 %v1393, %v1389
  %v1642 = vpack.c.b16 %v1394, %v1390
  %v1643 = vpack.c.b16 %v1395, %v1391
  %v1644 = vpack.c.b16 %v1400, %v1396
  %v1645 = vpack.c.b16 %v1401, %v1397
  %v1646 = vpack.c.b16 %v1402, %v1398
  %v1647 = vpack.c.b16 %v1403, %v1399
  %v1648 = vpack.c.b16 %v1408, %v1404
  %v1649 = vpack.c.b16 %v1409, %v1405
  %v1650 = vpack.c.b16 %v1410, %v1406
  %v1651 = vpack.c.b16 %v1411, %v1407
  %v1652 = vpack.c.b16 %v1416, %v1412
  %v1653 = vpack.c.b16 %v1417, %v1413
  %v1654 = vpack.c.b16 %v1418, %v1414
  %v1655 = vpack.c.b16 %v1419, %v1415
  %v1656 = vpack.c.b16 %v1424, %v1420
  %v1657 = vpack.c.b16 %v1425, %v1421
  %v1658 = vpack.c.b16 %v1426, %v1422
  %v1659 = vpack.c.b16 %v1427, %v1423
  %v1660 = vpack.c.b16 %v1432, %v1428
  %v1661 = vpack.c.b16 %v1433, %v1429
  %v1662 = vpack.c.b16 %v1434, %v1430
  %v1663 = vpack.c.b16 %v1435, %v1431
  %v1664 = vpack.c.b16 %v1440, %v1436
  %v1665 = vpack.c.b16 %v1441, %v1437
  %v1666 = vpack.c.b16 %v1442, %v1438
  %v1667 = vpack.c.b16 %v1443, %v1439
  %v1668 = vpack.c.b16 %v1448, %v1444
  %v1669 = vpack.c.b16 %v1449, %v1445
  %v1670 = vpack.c.b16 %v1450, %v1446
  %v1671 = vpack.c.b16 %v1451, %v1447
  %v1672 = vpack.c.b16 %v1456, %v1452
  %v1673 = vpack.c.b16 %v1457, %v1453
  %v1674 = vpack.c.b16 %v1458, %v1454
  %v1675 = vpack.c.b16 %v1459, %v1455
  %v1676 = vpack.c.b16 %v1464, %v1460
  %v1677 = vpack.c.b16 %v1465, %v1461
  %v1678 = vpack.c.b16 %v1466, %v1462
  %v1679 = vpack.c.b16 %v1467, %v1463
  %v1680 = vpack.c.b16 %v1472, %v1468
  %v1681 = vpack.c.b16 %v1473, %v1469
  %v1682 = vpack.c.b16 %v1474, %v1470
  %v1683 = vpack.c.b16 %v1475, %v1471
  %v1684 = vpack.c.b16 %v1480, %v1476
  %v1685 = vpack.c.b16 %v1481, %v1477
  %v1686 = vpack.c.b16 %v1482, %v1478
  %v1687 = vpack.c.b16 %v1483, %v1479
  %v1688 = vpack.c.b16 %v1488, %v1484
  %v1689 = vpack.c.b16 %v1489, %v1485
  %v1690 = vpack.c.b16 %v1490, %v1486
  %v1691 = vpack.c.b16 %v1491, %v1487
  %v1692 = vpack.c.b16 %v1496, %v1492
  %v1693 = vpack.c.b16 %v1497, %v1493
  %v1694 = vpack.c.b16 %v1498, %v1494
  %v1695 = vpack.c.b16 %v1499, %v1495
  %v1696 = vpack.c.b16 %v1504, %v1500
  %v1697 = vpack.c.b16 %v1505, %v1501
  %v1698 = vpack.c.b16 %v1506, %v1502
  %v1699 = vpack.c.b16 %v1507, %v1503
  %1892 = vmatprep.subr.bf16.mxu0 %v1537
  %1893 = vmatpush1.bf16.msra.mxu0 %v1536
  %1894 = vmatprep.subr.bf16.mxu0 %v1533
  %1895 = vmatpush1.bf16.msra.mxu0 %v1532
  %1896 = vmatprep.subr.bf16.mxu0 %v1529
  %1897 = vmatpush1.bf16.msra.mxu0 %v1528
  %1898 = vmatprep.subr.bf16.mxu0 %v1525
  %1899 = vmatpush1.bf16.msra.mxu0 %v1524
  %1900 = vmatprep.subr.bf16.mxu0 %v1521
  %1901 = vmatpush1.bf16.msra.mxu0 %v1520
  %1902 = vmatprep.subr.bf16.mxu0 %v1517
  %1903 = vmatpush1.bf16.msra.mxu0 %v1516
  %1904 = vmatprep.subr.bf16.mxu0 %v1513
  %1905 = vmatpush1.bf16.msra.mxu0 %v1512
  %1906 = vmatprep.subr.bf16.mxu0 %v1509
  %1907 = vmatpush1.bf16.msra.mxu0 %v1508
  %1908 = vmatprep.subr.bf16.mxu0 %v1569
  %1909 = vmatpush2.bf16.msra.mxu0 %v1568
  %1910 = vmatprep.subr.bf16.mxu0 %v1565
  %1911 = vmatpush2.bf16.msra.mxu0 %v1564
  %1912 = vmatprep.subr.bf16.mxu0 %v1561
  %1913 = vmatpush2.bf16.msra.mxu0 %v1560
  %1914 = vmatprep.subr.bf16.mxu0 %v1557
  %1915 = vmatpush2.bf16.msra.mxu0 %v1556
  %1916 = vmatprep.subr.bf16.mxu0 %v1553
  %1917 = vmatpush2.bf16.msra.mxu0 %v1552
  %1918 = vmatprep.subr.bf16.mxu0 %v1549
  %1919 = vmatpush2.bf16.msra.mxu0 %v1548
  %1920 = vmatprep.subr.bf16.mxu0 %v1545
  %1921 = vmatpush2.bf16.msra.mxu0 %v1544
  %1922 = vmatprep.subr.bf16.mxu0 %v1541
  %1923 = vmatpush2.bf16.msra.mxu0 %v1540
  %1924 = vmatprep.mubr.bf16.mxu0 %v152
  %1925 = vmatmul.mubr.bf16.gmra.mxu0 %v151
  %v1926 = vpop.f32.mrf.mxu0
  %v1927 = vadd.f32 0.0, %v1926
  %v1928 = vpop.f32.mrf.mxu0
  %v1929 = vadd.f32 0.0, %v1928
  %v1930 = vpop.f32.mrf.mxu0
  %v1931 = vadd.f32 0.0, %v1930
  %v1932 = vpop.f32.mrf.mxu0
  %v1933 = vadd.f32 0.0, %v1932
  %1934 = vmatprep.mubr.bf16.mxu0 %v154
  %1935 = vmatmul.mubr.bf16.gmra.mxu0 %v153
  %v1936 = vpop.f32.mrf.mxu0
  %v1937 = vadd.f32 0.0, %v1936
  %v1938 = vpop.f32.mrf.mxu0
  %v1939 = vadd.f32 0.0, %v1938
  %v1940 = vpop.f32.mrf.mxu0
  %v1941 = vadd.f32 0.0, %v1940
  %v1942 = vpop.f32.mrf.mxu0
  %v1943 = vadd.f32 0.0, %v1942
  %1944 = vmatprep.mubr.bf16.mxu0 %v156
  %1945 = vmatmul.mubr.bf16.gmra.mxu0 %v155
  %v1946 = vpop.f32.mrf.mxu0
  %v1947 = vadd.f32 0.0, %v1946
  %v1948 = vpop.f32.mrf.mxu0
  %v1949 = vadd.f32 0.0, %v1948
  %v1950 = vpop.f32.mrf.mxu0
  %v1951 = vadd.f32 0.0, %v1950
  %v1952 = vpop.f32.mrf.mxu0
  %v1953 = vadd.f32 0.0, %v1952
  %1954 = vmatprep.mubr.bf16.mxu0 %v158
  %1955 = vmatmul.mubr.bf16.gmra.mxu0 %v157
  %v1956 = vpop.f32.mrf.mxu0
  %v1957 = vadd.f32 0.0, %v1956
  %v1958 = vpop.f32.mrf.mxu0
  %v1959 = vadd.f32 0.0, %v1958
  %v1960 = vpop.f32.mrf.mxu0
  %v1961 = vpop.f32.mrf.mxu0
  %1962 = vdwg.mxu0
  %1963 = vmatprep.subr.bf16.mxu0 %v1601
  %1964 = vmatpush1.bf16.msra.mxu0 %v1600
  %1965 = vmatprep.subr.bf16.mxu0 %v1597
  %1966 = vmatpush1.bf16.msra.mxu0 %v1596
  %1967 = vmatprep.subr.bf16.mxu0 %v1593
  %1968 = vmatpush1.bf16.msra.mxu0 %v1592
  %1969 = vmatprep.subr.bf16.mxu0 %v1589
  %1970 = vmatpush1.bf16.msra.mxu0 %v1588
  %1971 = vmatprep.subr.bf16.mxu0 %v1585
  %1972 = vmatpush1.bf16.msra.mxu0 %v1584
  %1973 = vmatprep.subr.bf16.mxu0 %v1581
  %1974 = vmatpush1.bf16.msra.mxu0 %v1580
  %1975 = vmatprep.subr.bf16.mxu0 %v1577
  %1976 = vmatpush1.bf16.msra.mxu0 %v1576
  %1977 = vmatprep.subr.bf16.mxu0 %v1573
  %1978 = vmatpush1.bf16.msra.mxu0 %v1572
  %1979 = vmatprep.subr.bf16.mxu0 %v1633
  %1980 = vmatpush2.bf16.msra.mxu0 %v1632
  %1981 = vmatprep.subr.bf16.mxu0 %v1629
  %1982 = vmatpush2.bf16.msra.mxu0 %v1628
  %1983 = vmatprep.subr.bf16.mxu0 %v1625
  %1984 = vmatpush2.bf16.msra.mxu0 %v1624
  %1985 = vmatprep.subr.bf16.mxu0 %v1621
  %1986 = vmatpush2.bf16.msra.mxu0 %v1620
  %1987 = vmatprep.subr.bf16.mxu0 %v1617
  %1988 = vmatpush2.bf16.msra.mxu0 %v1616
  %1989 = vmatprep.subr.bf16.mxu0 %v1613
  %1990 = vmatpush2.bf16.msra.mxu0 %v1612
  %1991 = vmatprep.subr.bf16.mxu0 %v1609
  %1992 = vmatpush2.bf16.msra.mxu0 %v1608
  %1993 = vmatprep.subr.bf16.mxu0 %v1605
  %1994 = vmatpush2.bf16.msra.mxu0 %v1604
  %1995 = vmatprep.mubr.bf16.mxu0 %v725
  %1996 = vmatmul.mubr.bf16.gmra.mxu0 %v724
  %v1997 = vpop.f32.mrf.mxu0
  %v1998 = vadd.f32 %v1927, %v1997
  %v1999 = vpop.f32.mrf.mxu0
  %v2000 = vadd.f32 %v1929, %v1999
  %v2001 = vpop.f32.mrf.mxu0
  %v2002 = vadd.f32 %v1931, %v2001
  %v2003 = vpop.f32.mrf.mxu0
  %v2004 = vadd.f32 %v1933, %v2003
  %2005 = vmatprep.mubr.bf16.mxu0 %v729
  %2006 = vmatmul.mubr.bf16.gmra.mxu0 %v728
  %v2007 = vpop.f32.mrf.mxu0
  %v2008 = vadd.f32 %v1937, %v2007
  %v2009 = vpop.f32.mrf.mxu0
  %v2010 = vadd.f32 %v1939, %v2009
  %v2011 = vpop.f32.mrf.mxu0
  %v2012 = vadd.f32 %v1941, %v2011
  %v2013 = vpop.f32.mrf.mxu0
  %v2014 = vadd.f32 %v1943, %v2013
  %2015 = vmatprep.mubr.bf16.mxu0 %v733
  %2016 = vmatmul.mubr.bf16.gmra.mxu0 %v732
  %v2017 = vpop.f32.mrf.mxu0
  %v2018 = vadd.f32 %v1947, %v2017
  %v2019 = vpop.f32.mrf.mxu0
  %v2020 = vadd.f32 %v1949, %v2019
  %v2021 = vpop.f32.mrf.mxu0
  %v2022 = vadd.f32 %v1951, %v2021
  %v2023 = vpop.f32.mrf.mxu0
  %v2024 = vadd.f32 %v1953, %v2023
  %2025 = vmatprep.mubr.bf16.mxu0 %v737
  %2026 = vmatmul.mubr.bf16.gmra.mxu0 %v736
  %v2027 = vpop.f32.mrf.mxu0
  %v2028 = vadd.f32 %v1957, %v2027
  %v2029 = vpop.f32.mrf.mxu0
  %v2030 = vadd.f32 %v1959, %v2029
  %v2031 = vpop.f32.mrf.mxu0
  %v2032 = vpop.f32.mrf.mxu0
  %2033 = vdwg.mxu0
  %2034 = vmatprep.subr.bf16.mxu0 %v1665
  %2035 = vmatpush1.bf16.msra.mxu0 %v1664
  %2036 = vmatprep.subr.bf16.mxu0 %v1661
  %2037 = vmatpush1.bf16.msra.mxu0 %v1660
  %2038 = vmatprep.subr.bf16.mxu0 %v1657
  %2039 = vmatpush1.bf16.msra.mxu0 %v1656
  %2040 = vmatprep.subr.bf16.mxu0 %v1653
  %2041 = vmatpush1.bf16.msra.mxu0 %v1652
  %2042 = vmatprep.subr.bf16.mxu0 %v1649
  %2043 = vmatpush1.bf16.msra.mxu0 %v1648
  %2044 = vmatprep.subr.bf16.mxu0 %v1645
  %2045 = vmatpush1.bf16.msra.mxu0 %v1644
  %2046 = vmatprep.subr.bf16.mxu0 %v1641
  %2047 = vmatpush1.bf16.msra.mxu0 %v1640
  %2048 = vmatprep.subr.bf16.mxu0 %v1637
  %2049 = vmatpush1.bf16.msra.mxu0 %v1636
  %2050 = vmatprep.subr.bf16.mxu0 %v1697
  %2051 = vmatpush2.bf16.msra.mxu0 %v1696
  %2052 = vmatprep.subr.bf16.mxu0 %v1693
  %2053 = vmatpush2.bf16.msra.mxu0 %v1692
  %2054 = vmatprep.subr.bf16.mxu0 %v1689
  %2055 = vmatpush2.bf16.msra.mxu0 %v1688
  %2056 = vmatprep.subr.bf16.mxu0 %v1685
  %2057 = vmatpush2.bf16.msra.mxu0 %v1684
  %2058 = vmatprep.subr.bf16.mxu0 %v1681
  %2059 = vmatpush2.bf16.msra.mxu0 %v1680
  %2060 = vmatprep.subr.bf16.mxu0 %v1677
  %2061 = vmatpush2.bf16.msra.mxu0 %v1676
  %2062 = vmatprep.subr.bf16.mxu0 %v1673
  %2063 = vmatpush2.bf16.msra.mxu0 %v1672
  %2064 = vmatprep.subr.bf16.mxu0 %v1669
  %2065 = vmatpush2.bf16.msra.mxu0 %v1668
  %2066 = vmatprep.mubr.bf16.mxu0 %v727
  %2067 = vmatmul.mubr.bf16.gmra.mxu0 %v726
  %v2068 = vpop.f32.mrf.mxu0
  %v2069 = vadd.f32 %v1998, %v2068
  %v2070 = vpop.f32.mrf.mxu0
  %v2071 = vadd.f32 %v2000, %v2070
  %v2072 = vpop.f32.mrf.mxu0
  %v2073 = vadd.f32 %v2002, %v2072
  %v2074 = vpop.f32.mrf.mxu0
  %v2075 = vadd.f32 %v2004, %v2074
  %2076 = vmatprep.mubr.bf16.mxu0 %v731
  %2077 = vmatmul.mubr.bf16.gmra.mxu0 %v730
  %v2078 = vpop.f32.mrf.mxu0
  %v2079 = vadd.f32 %v2008, %v2078
  %v2080 = vpop.f32.mrf.mxu0
  %v2081 = vadd.f32 %v2010, %v2080
  %v2082 = vpop.f32.mrf.mxu0
  %v2083 = vadd.f32 %v2012, %v2082
  %v2084 = vpop.f32.mrf.mxu0
  %v2085 = vadd.f32 %v2014, %v2084
  %2086 = vmatprep.mubr.bf16.mxu0 %v735
  %2087 = vmatmul.mubr.bf16.gmra.mxu0 %v734
  %v2088 = vpop.f32.mrf.mxu0
  %v2089 = vadd.f32 %v2018, %v2088
  %v2090 = vpop.f32.mrf.mxu0
  %v2091 = vadd.f32 %v2020, %v2090
  %v2092 = vpop.f32.mrf.mxu0
  %v2093 = vadd.f32 %v2022, %v2092
  %v2094 = vpop.f32.mrf.mxu0
  %v2095 = vadd.f32 %v2024, %v2094
  %2096 = vmatprep.mubr.bf16.mxu0 %v739
  %2097 = vmatmul.mubr.bf16.gmra.mxu0 %v738
  %v2098 = vpop.f32.mrf.mxu0
  %v2099 = vadd.f32 %v2028, %v2098
  %v2100 = vpop.f32.mrf.mxu0
  %v2101 = vadd.f32 %v2030, %v2100
  %v2102 = vpop.f32.mrf.mxu0
  %v2103 = vpop.f32.mrf.mxu0
  %2104 = vdwg.mxu0
  %2105 = vmatprep.subr.bf16.mxu0 %v1539
  %2106 = vmatpush1.bf16.msra.mxu0 %v1538
  %2107 = vmatprep.subr.bf16.mxu0 %v1535
  %2108 = vmatpush1.bf16.msra.mxu0 %v1534
  %2109 = vmatprep.subr.bf16.mxu0 %v1531
  %2110 = vmatpush1.bf16.msra.mxu0 %v1530
  %2111 = vmatprep.subr.bf16.mxu0 %v1527
  %2112 = vmatpush1.bf16.msra.mxu0 %v1526
  %2113 = vmatprep.subr.bf16.mxu0 %v1523
  %2114 = vmatpush1.bf16.msra.mxu0 %v1522
  %2115 = vmatprep.subr.bf16.mxu0 %v1519
  %2116 = vmatpush1.bf16.msra.mxu0 %v1518
  %2117 = vmatprep.subr.bf16.mxu0 %v1515
  %2118 = vmatpush1.bf16.msra.mxu0 %v1514
  %2119 = vmatprep.subr.bf16.mxu0 %v1511
  %2120 = vmatpush1.bf16.msra.mxu0 %v1510
  %2121 = vmatprep.subr.bf16.mxu0 %v1571
  %2122 = vmatpush2.bf16.msra.mxu0 %v1570
  %2123 = vmatprep.subr.bf16.mxu0 %v1567
  %2124 = vmatpush2.bf16.msra.mxu0 %v1566
  %2125 = vmatprep.subr.bf16.mxu0 %v1563
  %2126 = vmatpush2.bf16.msra.mxu0 %v1562
  %2127 = vmatprep.subr.bf16.mxu0 %v1559
  %2128 = vmatpush2.bf16.msra.mxu0 %v1558
  %2129 = vmatprep.subr.bf16.mxu0 %v1555
  %2130 = vmatpush2.bf16.msra.mxu0 %v1554
  %2131 = vmatprep.subr.bf16.mxu0 %v1551
  %2132 = vmatpush2.bf16.msra.mxu0 %v1550
  %2133 = vmatprep.subr.bf16.mxu0 %v1547
  %2134 = vmatpush2.bf16.msra.mxu0 %v1546
  %2135 = vmatprep.subr.bf16.mxu0 %v1543
  %2136 = vmatpush2.bf16.msra.mxu0 %v1542
  %2137 = vmatprep.mubr.bf16.mxu0 %v152
  %2138 = vmatmul.mubr.bf16.gmra.mxu0 %v151
  %v2139 = vpop.f32.mrf.mxu0
  %v2140 = vadd.f32 0.0, %v2139
  %v2141 = vpop.f32.mrf.mxu0
  %v2142 = vadd.f32 0.0, %v2141
  %v2143 = vpop.f32.mrf.mxu0
  %v2144 = vadd.f32 0.0, %v2143
  %v2145 = vpop.f32.mrf.mxu0
  %v2146 = vadd.f32 0.0, %v2145
  %2147 = vmatprep.mubr.bf16.mxu0 %v154
  %2148 = vmatmul.mubr.bf16.gmra.mxu0 %v153
  %v2149 = vpop.f32.mrf.mxu0
  %v2150 = vadd.f32 0.0, %v2149
  %v2151 = vpop.f32.mrf.mxu0
  %v2152 = vadd.f32 0.0, %v2151
  %v2153 = vpop.f32.mrf.mxu0
  %v2154 = vadd.f32 0.0, %v2153
  %v2155 = vpop.f32.mrf.mxu0
  %v2156 = vadd.f32 0.0, %v2155
  %2157 = vmatprep.mubr.bf16.mxu0 %v156
  %2158 = vmatmul.mubr.bf16.gmra.mxu0 %v155
  %v2159 = vpop.f32.mrf.mxu0
  %v2160 = vadd.f32 0.0, %v2159
  %v2161 = vpop.f32.mrf.mxu0
  %v2162 = vadd.f32 0.0, %v2161
  %v2163 = vpop.f32.mrf.mxu0
  %v2164 = vadd.f32 0.0, %v2163
  %v2165 = vpop.f32.mrf.mxu0
  %v2166 = vadd.f32 0.0, %v2165
  %2167 = vmatprep.mubr.bf16.mxu0 %v158
  %2168 = vmatmul.mubr.bf16.gmra.mxu0 %v157
  %v2169 = vpop.f32.mrf.mxu0
  %v2170 = vadd.f32 0.0, %v2169
  %v2171 = vpop.f32.mrf.mxu0
  %v2172 = vadd.f32 0.0, %v2171
  %v2173 = vpop.f32.mrf.mxu0
  %v2174 = vpop.f32.mrf.mxu0
  %2175 = vdwg.mxu0
  %2176 = vmatprep.subr.bf16.mxu0 %v1603
  %2177 = vmatpush1.bf16.msra.mxu0 %v1602
  %2178 = vmatprep.subr.bf16.mxu0 %v1599
  %2179 = vmatpush1.bf16.msra.mxu0 %v1598
  %2180 = vmatprep.subr.bf16.mxu0 %v1595
  %2181 = vmatpush1.bf16.msra.mxu0 %v1594
  %2182 = vmatprep.subr.bf16.mxu0 %v1591
  %2183 = vmatpush1.bf16.msra.mxu0 %v1590
  %2184 = vmatprep.subr.bf16.mxu0 %v1587
  %2185 = vmatpush1.bf16.msra.mxu0 %v1586
  %2186 = vmatprep.subr.bf16.mxu0 %v1583
  %2187 = vmatpush1.bf16.msra.mxu0 %v1582
  %2188 = vmatprep.subr.bf16.mxu0 %v1579
  %2189 = vmatpush1.bf16.msra.mxu0 %v1578
  %2190 = vmatprep.subr.bf16.mxu0 %v1575
  %2191 = vmatpush1.bf16.msra.mxu0 %v1574
  %2192 = vmatprep.subr.bf16.mxu0 %v1635
  %2193 = vmatpush2.bf16.msra.mxu0 %v1634
  %2194 = vmatprep.subr.bf16.mxu0 %v1631
  %2195 = vmatpush2.bf16.msra.mxu0 %v1630
  %2196 = vmatprep.subr.bf16.mxu0 %v1627
  %2197 = vmatpush2.bf16.msra.mxu0 %v1626
  %2198 = vmatprep.subr.bf16.mxu0 %v1623
  %2199 = vmatpush2.bf16.msra.mxu0 %v1622
  %2200 = vmatprep.subr.bf16.mxu0 %v1619
  %2201 = vmatpush2.bf16.msra.mxu0 %v1618
  %2202 = vmatprep.subr.bf16.mxu0 %v1615
  %2203 = vmatpush2.bf16.msra.mxu0 %v1614
  %2204 = vmatprep.subr.bf16.mxu0 %v1611
  %2205 = vmatpush2.bf16.msra.mxu0 %v1610
  %2206 = vmatprep.subr.bf16.mxu0 %v1607
  %2207 = vmatpush2.bf16.msra.mxu0 %v1606
  %2208 = vmatprep.mubr.bf16.mxu0 %v725
  %2209 = vmatmul.mubr.bf16.gmra.mxu0 %v724
  %v2210 = vpop.f32.mrf.mxu0
  %v2211 = vadd.f32 %v2140, %v2210
  %v2212 = vpop.f32.mrf.mxu0
  %v2213 = vadd.f32 %v2142, %v2212
  %v2214 = vpop.f32.mrf.mxu0
  %v2215 = vadd.f32 %v2144, %v2214
  %v2216 = vpop.f32.mrf.mxu0
  %v2217 = vadd.f32 %v2146, %v2216
  %2218 = vmatprep.mubr.bf16.mxu0 %v729
  %2219 = vmatmul.mubr.bf16.gmra.mxu0 %v728
  %v2220 = vpop.f32.mrf.mxu0
  %v2221 = vadd.f32 %v2150, %v2220
  %v2222 = vpop.f32.mrf.mxu0
  %v2223 = vadd.f32 %v2152, %v2222
  %v2224 = vpop.f32.mrf.mxu0
  %v2225 = vadd.f32 %v2154, %v2224
  %v2226 = vpop.f32.mrf.mxu0
  %v2227 = vadd.f32 %v2156, %v2226
  %2228 = vmatprep.mubr.bf16.mxu0 %v733
  %2229 = vmatmul.mubr.bf16.gmra.mxu0 %v732
  %v2230 = vpop.f32.mrf.mxu0
  %v2231 = vadd.f32 %v2160, %v2230
  %v2232 = vpop.f32.mrf.mxu0
  %v2233 = vadd.f32 %v2162, %v2232
  %v2234 = vpop.f32.mrf.mxu0
  %v2235 = vadd.f32 %v2164, %v2234
  %v2236 = vpop.f32.mrf.mxu0
  %v2237 = vadd.f32 %v2166, %v2236
  %2238 = vmatprep.mubr.bf16.mxu0 %v737
  %2239 = vmatmul.mubr.bf16.gmra.mxu0 %v736
  %v2240 = vpop.f32.mrf.mxu0
  %v2241 = vadd.f32 %v2170, %v2240
  %v2242 = vpop.f32.mrf.mxu0
  %v2243 = vadd.f32 %v2172, %v2242
  %v2244 = vpop.f32.mrf.mxu0
  %v2245 = vpop.f32.mrf.mxu0
  %2246 = vdwg.mxu0
  %2247 = vmatprep.subr.bf16.mxu0 %v1667
  %2248 = vmatpush1.bf16.msra.mxu0 %v1666
  %2249 = vmatprep.subr.bf16.mxu0 %v1663
  %2250 = vmatpush1.bf16.msra.mxu0 %v1662
  %2251 = vmatprep.subr.bf16.mxu0 %v1659
  %2252 = vmatpush1.bf16.msra.mxu0 %v1658
  %2253 = vmatprep.subr.bf16.mxu0 %v1655
  %2254 = vmatpush1.bf16.msra.mxu0 %v1654
  %2255 = vmatprep.subr.bf16.mxu0 %v1651
  %2256 = vmatpush1.bf16.msra.mxu0 %v1650
  %2257 = vmatprep.subr.bf16.mxu0 %v1647
  %2258 = vmatpush1.bf16.msra.mxu0 %v1646
  %2259 = vmatprep.subr.bf16.mxu0 %v1643
  %2260 = vmatpush1.bf16.msra.mxu0 %v1642
  %2261 = vmatprep.subr.bf16.mxu0 %v1639
  %2262 = vmatpush1.bf16.msra.mxu0 %v1638
  %2263 = vmatprep.subr.bf16.mxu0 %v1699
  %2264 = vmatpush2.bf16.msra.mxu0 %v1698
  %2265 = vmatprep.subr.bf16.mxu0 %v1695
  %2266 = vmatpush2.bf16.msra.mxu0 %v1694
  %2267 = vmatprep.subr.bf16.mxu0 %v1691
  %2268 = vmatpush2.bf16.msra.mxu0 %v1690
  %2269 = vmatprep.subr.bf16.mxu0 %v1687
  %2270 = vmatpush2.bf16.msra.mxu0 %v1686
  %2271 = vmatprep.subr.bf16.mxu0 %v1683
  %2272 = vmatpush2.bf16.msra.mxu0 %v1682
  %2273 = vmatprep.subr.bf16.mxu0 %v1679
  %2274 = vmatpush2.bf16.msra.mxu0 %v1678
  %2275 = vmatprep.subr.bf16.mxu0 %v1675
  %2276 = vmatpush2.bf16.msra.mxu0 %v1674
  %2277 = vmatprep.subr.bf16.mxu0 %v1671
  %2278 = vmatpush2.bf16.msra.mxu0 %v1670
  %2279 = vmatprep.mubr.bf16.mxu0 %v727
  %2280 = vmatmul.mubr.bf16.gmra.mxu0 %v726
  %v2281 = vpop.f32.mrf.mxu0
  %v2282 = vadd.f32 %v2211, %v2281
  %v2283 = vpop.f32.mrf.mxu0
  %v2284 = vadd.f32 %v2213, %v2283
  %v2285 = vpop.f32.mrf.mxu0
  %v2286 = vadd.f32 %v2215, %v2285
  %v2287 = vpop.f32.mrf.mxu0
  %v2288 = vadd.f32 %v2217, %v2287
  %2289 = vmatprep.mubr.bf16.mxu0 %v731
  %2290 = vmatmul.mubr.bf16.gmra.mxu0 %v730
  %v2291 = vpop.f32.mrf.mxu0
  %v2292 = vadd.f32 %v2221, %v2291
  %v2293 = vpop.f32.mrf.mxu0
  %v2294 = vadd.f32 %v2223, %v2293
  %v2295 = vpop.f32.mrf.mxu0
  %v2296 = vadd.f32 %v2225, %v2295
  %v2297 = vpop.f32.mrf.mxu0
  %v2298 = vadd.f32 %v2227, %v2297
  %2299 = vmatprep.mubr.bf16.mxu0 %v735
  %2300 = vmatmul.mubr.bf16.gmra.mxu0 %v734
  %v2301 = vpop.f32.mrf.mxu0
  %v2302 = vadd.f32 %v2231, %v2301
  %v2303 = vpop.f32.mrf.mxu0
  %v2304 = vadd.f32 %v2233, %v2303
  %v2305 = vpop.f32.mrf.mxu0
  %v2306 = vadd.f32 %v2235, %v2305
  %v2307 = vpop.f32.mrf.mxu0
  %v2308 = vadd.f32 %v2237, %v2307
  %2309 = vmatprep.mubr.bf16.mxu0 %v739
  %2310 = vmatmul.mubr.bf16.gmra.mxu0 %v738
  %v2311 = vpop.f32.mrf.mxu0
  %v2312 = vadd.f32 %v2241, %v2311
  %v2313 = vpop.f32.mrf.mxu0
  %v2314 = vadd.f32 %v2243, %v2313
  %v2315 = vpop.f32.mrf.mxu0
  %v2316 = vpop.f32.mrf.mxu0
  %2317 = vdwg.mxu0
  %v2318 = vpack.c.bf16 %v549, %v545
  %v2319 = vpack.c.bf16 %v551, %v547
  %v2320 = vpack.c.bf16 %v692, %v688
  %v2321 = vpack.c.bf16 %v694, %v690
  %v2322 = vpack.c.bf16 %v559, %v555
  %v2323 = vpack.c.bf16 %v561, %v557
  %v2324 = vpack.c.bf16 %v702, %v698
  %v2325 = vpack.c.bf16 %v704, %v700
  %v2326 = vpack.c.bf16 %v569, %v565
  %v2327 = vpack.c.bf16 %v571, %v567
  %v2328 = vpack.c.bf16 %v712, %v708
  %v2329 = vpack.c.bf16 %v714, %v710
  %v2330 = vpack.c.bf16 %v575, %v575
  %v2331 = vpack.c.bf16 %v577, %v577
  %v2332 = vpack.c.bf16 %v718, %v718
  %v2333 = vpack.c.bf16 %v720, %v720
  %2334 = vmatprep.subr.bf16.mxu0 %v1537
  %2335 = vmatpush1.bf16.msra.mxu0 %v1536
  %2336 = vmatprep.subr.bf16.mxu0 %v1533
  %2337 = vmatpush1.bf16.msra.mxu0 %v1532
  %2338 = vmatprep.subr.bf16.mxu0 %v1529
  %2339 = vmatpush1.bf16.msra.mxu0 %v1528
  %2340 = vmatprep.subr.bf16.mxu0 %v1525
  %2341 = vmatpush1.bf16.msra.mxu0 %v1524
  %2342 = vmatprep.subr.bf16.mxu0 %v1521
  %2343 = vmatpush1.bf16.msra.mxu0 %v1520
  %2344 = vmatprep.subr.bf16.mxu0 %v1517
  %2345 = vmatpush1.bf16.msra.mxu0 %v1516
  %2346 = vmatprep.subr.bf16.mxu0 %v1513
  %2347 = vmatpush1.bf16.msra.mxu0 %v1512
  %2348 = vmatprep.subr.bf16.mxu0 %v1509
  %2349 = vmatpush1.bf16.msra.mxu0 %v1508
  %2350 = vmatprep.subr.bf16.mxu0 %v1569
  %2351 = vmatpush2.bf16.msra.mxu0 %v1568
  %2352 = vmatprep.subr.bf16.mxu0 %v1565
  %2353 = vmatpush2.bf16.msra.mxu0 %v1564
  %2354 = vmatprep.subr.bf16.mxu0 %v1561
  %2355 = vmatpush2.bf16.msra.mxu0 %v1560
  %2356 = vmatprep.subr.bf16.mxu0 %v1557
  %2357 = vmatpush2.bf16.msra.mxu0 %v1556
  %2358 = vmatprep.subr.bf16.mxu0 %v1553
  %2359 = vmatpush2.bf16.msra.mxu0 %v1552
  %2360 = vmatprep.subr.bf16.mxu0 %v1549
  %2361 = vmatpush2.bf16.msra.mxu0 %v1548
  %2362 = vmatprep.subr.bf16.mxu0 %v1545
  %2363 = vmatpush2.bf16.msra.mxu0 %v1544
  %2364 = vmatprep.subr.bf16.mxu0 %v1541
  %2365 = vmatpush2.bf16.msra.mxu0 %v1540
  %2366 = vmatprep.mubr.bf16.mxu0 %v485
  %2367 = vmatmul.mubr.bf16.gmra.mxu0 %v484
  %v2368 = vpop.f32.mrf.mxu0
  %v2369 = vadd.f32 0.0, %v2368
  %v2370 = vpop.f32.mrf.mxu0
  %v2371 = vadd.f32 0.0, %v2370
  %v2372 = vpop.f32.mrf.mxu0
  %v2373 = vadd.f32 0.0, %v2372
  %v2374 = vpop.f32.mrf.mxu0
  %v2375 = vadd.f32 0.0, %v2374
  %2376 = vmatprep.mubr.bf16.mxu0 %v487
  %2377 = vmatmul.mubr.bf16.gmra.mxu0 %v486
  %v2378 = vpop.f32.mrf.mxu0
  %v2379 = vadd.f32 0.0, %v2378
  %v2380 = vpop.f32.mrf.mxu0
  %v2381 = vadd.f32 0.0, %v2380
  %v2382 = vpop.f32.mrf.mxu0
  %v2383 = vadd.f32 0.0, %v2382
  %v2384 = vpop.f32.mrf.mxu0
  %v2385 = vadd.f32 0.0, %v2384
  %2386 = vmatprep.mubr.bf16.mxu0 %v489
  %2387 = vmatmul.mubr.bf16.gmra.mxu0 %v488
  %v2388 = vpop.f32.mrf.mxu0
  %v2389 = vadd.f32 0.0, %v2388
  %v2390 = vpop.f32.mrf.mxu0
  %v2391 = vadd.f32 0.0, %v2390
  %v2392 = vpop.f32.mrf.mxu0
  %v2393 = vadd.f32 0.0, %v2392
  %v2394 = vpop.f32.mrf.mxu0
  %v2395 = vadd.f32 0.0, %v2394
  %2396 = vmatprep.mubr.bf16.mxu0 %v491
  %2397 = vmatmul.mubr.bf16.gmra.mxu0 %v490
  %v2398 = vpop.f32.mrf.mxu0
  %v2399 = vadd.f32 0.0, %v2398
  %v2400 = vpop.f32.mrf.mxu0
  %v2401 = vadd.f32 0.0, %v2400
  %v2402 = vpop.f32.mrf.mxu0
  %v2403 = vpop.f32.mrf.mxu0
  %2404 = vdwg.mxu0
  %2405 = vmatprep.subr.bf16.mxu0 %v1601
  %2406 = vmatpush1.bf16.msra.mxu0 %v1600
  %2407 = vmatprep.subr.bf16.mxu0 %v1597
  %2408 = vmatpush1.bf16.msra.mxu0 %v1596
  %2409 = vmatprep.subr.bf16.mxu0 %v1593
  %2410 = vmatpush1.bf16.msra.mxu0 %v1592
  %2411 = vmatprep.subr.bf16.mxu0 %v1589
  %2412 = vmatpush1.bf16.msra.mxu0 %v1588
  %2413 = vmatprep.subr.bf16.mxu0 %v1585
  %2414 = vmatpush1.bf16.msra.mxu0 %v1584
  %2415 = vmatprep.subr.bf16.mxu0 %v1581
  %2416 = vmatpush1.bf16.msra.mxu0 %v1580
  %2417 = vmatprep.subr.bf16.mxu0 %v1577
  %2418 = vmatpush1.bf16.msra.mxu0 %v1576
  %2419 = vmatprep.subr.bf16.mxu0 %v1573
  %2420 = vmatpush1.bf16.msra.mxu0 %v1572
  %2421 = vmatprep.subr.bf16.mxu0 %v1633
  %2422 = vmatpush2.bf16.msra.mxu0 %v1632
  %2423 = vmatprep.subr.bf16.mxu0 %v1629
  %2424 = vmatpush2.bf16.msra.mxu0 %v1628
  %2425 = vmatprep.subr.bf16.mxu0 %v1625
  %2426 = vmatpush2.bf16.msra.mxu0 %v1624
  %2427 = vmatprep.subr.bf16.mxu0 %v1621
  %2428 = vmatpush2.bf16.msra.mxu0 %v1620
  %2429 = vmatprep.subr.bf16.mxu0 %v1617
  %2430 = vmatpush2.bf16.msra.mxu0 %v1616
  %2431 = vmatprep.subr.bf16.mxu0 %v1613
  %2432 = vmatpush2.bf16.msra.mxu0 %v1612
  %2433 = vmatprep.subr.bf16.mxu0 %v1609
  %2434 = vmatpush2.bf16.msra.mxu0 %v1608
  %2435 = vmatprep.subr.bf16.mxu0 %v1605
  %2436 = vmatpush2.bf16.msra.mxu0 %v1604
  %2437 = vmatprep.mubr.bf16.mxu0 %v2319
  %2438 = vmatmul.mubr.bf16.gmra.mxu0 %v2318
  %v2439 = vpop.f32.mrf.mxu0
  %v2440 = vadd.f32 %v2369, %v2439
  %v2441 = vpop.f32.mrf.mxu0
  %v2442 = vadd.f32 %v2371, %v2441
  %v2443 = vpop.f32.mrf.mxu0
  %v2444 = vadd.f32 %v2373, %v2443
  %v2445 = vpop.f32.mrf.mxu0
  %v2446 = vadd.f32 %v2375, %v2445
  %2447 = vmatprep.mubr.bf16.mxu0 %v2323
  %2448 = vmatmul.mubr.bf16.gmra.mxu0 %v2322
  %v2449 = vpop.f32.mrf.mxu0
  %v2450 = vadd.f32 %v2379, %v2449
  %v2451 = vpop.f32.mrf.mxu0
  %v2452 = vadd.f32 %v2381, %v2451
  %v2453 = vpop.f32.mrf.mxu0
  %v2454 = vadd.f32 %v2383, %v2453
  %v2455 = vpop.f32.mrf.mxu0
  %v2456 = vadd.f32 %v2385, %v2455
  %2457 = vmatprep.mubr.bf16.mxu0 %v2327
  %2458 = vmatmul.mubr.bf16.gmra.mxu0 %v2326
  %v2459 = vpop.f32.mrf.mxu0
  %v2460 = vadd.f32 %v2389, %v2459
  %v2461 = vpop.f32.mrf.mxu0
  %v2462 = vadd.f32 %v2391, %v2461
  %v2463 = vpop.f32.mrf.mxu0
  %v2464 = vadd.f32 %v2393, %v2463
  %v2465 = vpop.f32.mrf.mxu0
  %v2466 = vadd.f32 %v2395, %v2465
  %2467 = vmatprep.mubr.bf16.mxu0 %v2331
  %2468 = vmatmul.mubr.bf16.gmra.mxu0 %v2330
  %v2469 = vpop.f32.mrf.mxu0
  %v2470 = vadd.f32 %v2399, %v2469
  %v2471 = vpop.f32.mrf.mxu0
  %v2472 = vadd.f32 %v2401, %v2471
  %v2473 = vpop.f32.mrf.mxu0
  %v2474 = vpop.f32.mrf.mxu0
  %2475 = vdwg.mxu0
  %2476 = vmatprep.subr.bf16.mxu0 %v1665
  %2477 = vmatpush1.bf16.msra.mxu0 %v1664
  %2478 = vmatprep.subr.bf16.mxu0 %v1661
  %2479 = vmatpush1.bf16.msra.mxu0 %v1660
  %2480 = vmatprep.subr.bf16.mxu0 %v1657
  %2481 = vmatpush1.bf16.msra.mxu0 %v1656
  %2482 = vmatprep.subr.bf16.mxu0 %v1653
  %2483 = vmatpush1.bf16.msra.mxu0 %v1652
  %2484 = vmatprep.subr.bf16.mxu0 %v1649
  %2485 = vmatpush1.bf16.msra.mxu0 %v1648
  %2486 = vmatprep.subr.bf16.mxu0 %v1645
  %2487 = vmatpush1.bf16.msra.mxu0 %v1644
  %2488 = vmatprep.subr.bf16.mxu0 %v1641
  %2489 = vmatpush1.bf16.msra.mxu0 %v1640
  %2490 = vmatprep.subr.bf16.mxu0 %v1637
  %2491 = vmatpush1.bf16.msra.mxu0 %v1636
  %2492 = vmatprep.subr.bf16.mxu0 %v1697
  %2493 = vmatpush2.bf16.msra.mxu0 %v1696
  %2494 = vmatprep.subr.bf16.mxu0 %v1693
  %2495 = vmatpush2.bf16.msra.mxu0 %v1692
  %2496 = vmatprep.subr.bf16.mxu0 %v1689
  %2497 = vmatpush2.bf16.msra.mxu0 %v1688
  %2498 = vmatprep.subr.bf16.mxu0 %v1685
  %2499 = vmatpush2.bf16.msra.mxu0 %v1684
  %2500 = vmatprep.subr.bf16.mxu0 %v1681
  %2501 = vmatpush2.bf16.msra.mxu0 %v1680
  %2502 = vmatprep.subr.bf16.mxu0 %v1677
  %2503 = vmatpush2.bf16.msra.mxu0 %v1676
  %2504 = vmatprep.subr.bf16.mxu0 %v1673
  %2505 = vmatpush2.bf16.msra.mxu0 %v1672
  %2506 = vmatprep.subr.bf16.mxu0 %v1669
  %2507 = vmatpush2.bf16.msra.mxu0 %v1668
  %2508 = vmatprep.mubr.bf16.mxu0 %v2321
  %2509 = vmatmul.mubr.bf16.gmra.mxu0 %v2320
  %v2510 = vpop.f32.mrf.mxu0
  %v2511 = vadd.f32 %v2440, %v2510
  %v2512 = vpop.f32.mrf.mxu0
  %v2513 = vadd.f32 %v2442, %v2512
  %v2514 = vpop.f32.mrf.mxu0
  %v2515 = vadd.f32 %v2444, %v2514
  %v2516 = vpop.f32.mrf.mxu0
  %v2517 = vadd.f32 %v2446, %v2516
  %2518 = vmatprep.mubr.bf16.mxu0 %v2325
  %2519 = vmatmul.mubr.bf16.gmra.mxu0 %v2324
  %v2520 = vpop.f32.mrf.mxu0
  %v2521 = vadd.f32 %v2450, %v2520
  %v2522 = vpop.f32.mrf.mxu0
  %v2523 = vadd.f32 %v2452, %v2522
  %v2524 = vpop.f32.mrf.mxu0
  %v2525 = vadd.f32 %v2454, %v2524
  %v2526 = vpop.f32.mrf.mxu0
  %v2527 = vadd.f32 %v2456, %v2526
  %2528 = vmatprep.mubr.bf16.mxu0 %v2329
  %2529 = vmatmul.mubr.bf16.gmra.mxu0 %v2328
  %v2530 = vpop.f32.mrf.mxu0
  %v2531 = vadd.f32 %v2460, %v2530
  %v2532 = vpop.f32.mrf.mxu0
  %v2533 = vadd.f32 %v2462, %v2532
  %v2534 = vpop.f32.mrf.mxu0
  %v2535 = vadd.f32 %v2464, %v2534
  %v2536 = vpop.f32.mrf.mxu0
  %v2537 = vadd.f32 %v2466, %v2536
  %2538 = vmatprep.mubr.bf16.mxu0 %v2333
  %2539 = vmatmul.mubr.bf16.gmra.mxu0 %v2332
  %v2540 = vpop.f32.mrf.mxu0
  %v2541 = vadd.f32 %v2470, %v2540
  %v2542 = vpop.f32.mrf.mxu0
  %v2543 = vadd.f32 %v2472, %v2542
  %v2544 = vpop.f32.mrf.mxu0
  %v2545 = vpop.f32.mrf.mxu0
  %2546 = vdwg.mxu0
  %2547 = vmatprep.subr.bf16.mxu0 %v1539
  %2548 = vmatpush1.bf16.msra.mxu0 %v1538
  %2549 = vmatprep.subr.bf16.mxu0 %v1535
  %2550 = vmatpush1.bf16.msra.mxu0 %v1534
  %2551 = vmatprep.subr.bf16.mxu0 %v1531
  %2552 = vmatpush1.bf16.msra.mxu0 %v1530
  %2553 = vmatprep.subr.bf16.mxu0 %v1527
  %2554 = vmatpush1.bf16.msra.mxu0 %v1526
  %2555 = vmatprep.subr.bf16.mxu0 %v1523
  %2556 = vmatpush1.bf16.msra.mxu0 %v1522
  %2557 = vmatprep.subr.bf16.mxu0 %v1519
  %2558 = vmatpush1.bf16.msra.mxu0 %v1518
  %2559 = vmatprep.subr.bf16.mxu0 %v1515
  %2560 = vmatpush1.bf16.msra.mxu0 %v1514
  %2561 = vmatprep.subr.bf16.mxu0 %v1511
  %2562 = vmatpush1.bf16.msra.mxu0 %v1510
  %2563 = vmatprep.subr.bf16.mxu0 %v1571
  %2564 = vmatpush2.bf16.msra.mxu0 %v1570
  %2565 = vmatprep.subr.bf16.mxu0 %v1567
  %2566 = vmatpush2.bf16.msra.mxu0 %v1566
  %2567 = vmatprep.subr.bf16.mxu0 %v1563
  %2568 = vmatpush2.bf16.msra.mxu0 %v1562
  %2569 = vmatprep.subr.bf16.mxu0 %v1559
  %2570 = vmatpush2.bf16.msra.mxu0 %v1558
  %2571 = vmatprep.subr.bf16.mxu0 %v1555
  %2572 = vmatpush2.bf16.msra.mxu0 %v1554
  %2573 = vmatprep.subr.bf16.mxu0 %v1551
  %2574 = vmatpush2.bf16.msra.mxu0 %v1550
  %2575 = vmatprep.subr.bf16.mxu0 %v1547
  %2576 = vmatpush2.bf16.msra.mxu0 %v1546
  %2577 = vmatprep.subr.bf16.mxu0 %v1543
  %2578 = vmatpush2.bf16.msra.mxu0 %v1542
  %2579 = vmatprep.mubr.bf16.mxu0 %v485
  %2580 = vmatmul.mubr.bf16.gmra.mxu0 %v484
  %v2581 = vpop.f32.mrf.mxu0
  %v2582 = vadd.f32 0.0, %v2581
  %v2583 = vpop.f32.mrf.mxu0
  %v2584 = vadd.f32 0.0, %v2583
  %v2585 = vpop.f32.mrf.mxu0
  %v2586 = vadd.f32 0.0, %v2585
  %v2587 = vpop.f32.mrf.mxu0
  %v2588 = vadd.f32 0.0, %v2587
  %2589 = vmatprep.mubr.bf16.mxu0 %v487
  %2590 = vmatmul.mubr.bf16.gmra.mxu0 %v486
  %v2591 = vpop.f32.mrf.mxu0
  %v2592 = vadd.f32 0.0, %v2591
  %v2593 = vpop.f32.mrf.mxu0
  %v2594 = vadd.f32 0.0, %v2593
  %v2595 = vpop.f32.mrf.mxu0
  %v2596 = vadd.f32 0.0, %v2595
  %v2597 = vpop.f32.mrf.mxu0
  %v2598 = vadd.f32 0.0, %v2597
  %2599 = vmatprep.mubr.bf16.mxu0 %v489
  %2600 = vmatmul.mubr.bf16.gmra.mxu0 %v488
  %v2601 = vpop.f32.mrf.mxu0
  %v2602 = vadd.f32 0.0, %v2601
  %v2603 = vpop.f32.mrf.mxu0
  %v2604 = vadd.f32 0.0, %v2603
  %v2605 = vpop.f32.mrf.mxu0
  %v2606 = vadd.f32 0.0, %v2605
  %v2607 = vpop.f32.mrf.mxu0
  %v2608 = vadd.f32 0.0, %v2607
  %2609 = vmatprep.mubr.bf16.mxu0 %v491
  %2610 = vmatmul.mubr.bf16.gmra.mxu0 %v490
  %v2611 = vpop.f32.mrf.mxu0
  %v2612 = vadd.f32 0.0, %v2611
  %v2613 = vpop.f32.mrf.mxu0
  %v2614 = vadd.f32 0.0, %v2613
  %v2615 = vpop.f32.mrf.mxu0
  %v2616 = vpop.f32.mrf.mxu0
  %2617 = vdwg.mxu0
  %2618 = vmatprep.subr.bf16.mxu0 %v1603
  %2619 = vmatpush1.bf16.msra.mxu0 %v1602
  %2620 = vmatprep.subr.bf16.mxu0 %v1599
  %2621 = vmatpush1.bf16.msra.mxu0 %v1598
  %2622 = vmatprep.subr.bf16.mxu0 %v1595
  %2623 = vmatpush1.bf16.msra.mxu0 %v1594
  %2624 = vmatprep.subr.bf16.mxu0 %v1591
  %2625 = vmatpush1.bf16.msra.mxu0 %v1590
  %2626 = vmatprep.subr.bf16.mxu0 %v1587
  %2627 = vmatpush1.bf16.msra.mxu0 %v1586
  %2628 = vmatprep.subr.bf16.mxu0 %v1583
  %2629 = vmatpush1.bf16.msra.mxu0 %v1582
  %2630 = vmatprep.subr.bf16.mxu0 %v1579
  %2631 = vmatpush1.bf16.msra.mxu0 %v1578
  %2632 = vmatprep.subr.bf16.mxu0 %v1575
  %2633 = vmatpush1.bf16.msra.mxu0 %v1574
  %2634 = vmatprep.subr.bf16.mxu0 %v1635
  %2635 = vmatpush2.bf16.msra.mxu0 %v1634
  %2636 = vmatprep.subr.bf16.mxu0 %v1631
  %2637 = vmatpush2.bf16.msra.mxu0 %v1630
  %2638 = vmatprep.subr.bf16.mxu0 %v1627
  %2639 = vmatpush2.bf16.msra.mxu0 %v1626
  %2640 = vmatprep.subr.bf16.mxu0 %v1623
  %2641 = vmatpush2.bf16.msra.mxu0 %v1622
  %2642 = vmatprep.subr.bf16.mxu0 %v1619
  %2643 = vmatpush2.bf16.msra.mxu0 %v1618
  %2644 = vmatprep.subr.bf16.mxu0 %v1615
  %2645 = vmatpush2.bf16.msra.mxu0 %v1614
  %2646 = vmatprep.subr.bf16.mxu0 %v1611
  %2647 = vmatpush2.bf16.msra.mxu0 %v1610
  %2648 = vmatprep.subr.bf16.mxu0 %v1607
  %2649 = vmatpush2.bf16.msra.mxu0 %v1606
  %2650 = vmatprep.mubr.bf16.mxu0 %v2319
  %2651 = vmatmul.mubr.bf16.gmra.mxu0 %v2318
  %v2652 = vpop.f32.mrf.mxu0
  %v2653 = vadd.f32 %v2582, %v2652
  %v2654 = vpop.f32.mrf.mxu0
  %v2655 = vadd.f32 %v2584, %v2654
  %v2656 = vpop.f32.mrf.mxu0
  %v2657 = vadd.f32 %v2586, %v2656
  %v2658 = vpop.f32.mrf.mxu0
  %v2659 = vadd.f32 %v2588, %v2658
  %2660 = vmatprep.mubr.bf16.mxu0 %v2323
  %2661 = vmatmul.mubr.bf16.gmra.mxu0 %v2322
  %v2662 = vpop.f32.mrf.mxu0
  %v2663 = vadd.f32 %v2592, %v2662
  %v2664 = vpop.f32.mrf.mxu0
  %v2665 = vadd.f32 %v2594, %v2664
  %v2666 = vpop.f32.mrf.mxu0
  %v2667 = vadd.f32 %v2596, %v2666
  %v2668 = vpop.f32.mrf.mxu0
  %v2669 = vadd.f32 %v2598, %v2668
  %2670 = vmatprep.mubr.bf16.mxu0 %v2327
  %2671 = vmatmul.mubr.bf16.gmra.mxu0 %v2326
  %v2672 = vpop.f32.mrf.mxu0
  %v2673 = vadd.f32 %v2602, %v2672
  %v2674 = vpop.f32.mrf.mxu0
  %v2675 = vadd.f32 %v2604, %v2674
  %v2676 = vpop.f32.mrf.mxu0
  %v2677 = vadd.f32 %v2606, %v2676
  %v2678 = vpop.f32.mrf.mxu0
  %v2679 = vadd.f32 %v2608, %v2678
  %2680 = vmatprep.mubr.bf16.mxu0 %v2331
  %2681 = vmatmul.mubr.bf16.gmra.mxu0 %v2330
  %v2682 = vpop.f32.mrf.mxu0
  %v2683 = vadd.f32 %v2612, %v2682
  %v2684 = vpop.f32.mrf.mxu0
  %v2685 = vadd.f32 %v2614, %v2684
  %v2686 = vpop.f32.mrf.mxu0
  %v2687 = vpop.f32.mrf.mxu0
  %2688 = vdwg.mxu0
  %2689 = vmatprep.subr.bf16.mxu0 %v1667
  %2690 = vmatpush1.bf16.msra.mxu0 %v1666
  %2691 = vmatprep.subr.bf16.mxu0 %v1663
  %2692 = vmatpush1.bf16.msra.mxu0 %v1662
  %2693 = vmatprep.subr.bf16.mxu0 %v1659
  %2694 = vmatpush1.bf16.msra.mxu0 %v1658
  %2695 = vmatprep.subr.bf16.mxu0 %v1655
  %2696 = vmatpush1.bf16.msra.mxu0 %v1654
  %2697 = vmatprep.subr.bf16.mxu0 %v1651
  %2698 = vmatpush1.bf16.msra.mxu0 %v1650
  %2699 = vmatprep.subr.bf16.mxu0 %v1647
  %2700 = vmatpush1.bf16.msra.mxu0 %v1646
  %2701 = vmatprep.subr.bf16.mxu0 %v1643
  %2702 = vmatpush1.bf16.msra.mxu0 %v1642
  %2703 = vmatprep.subr.bf16.mxu0 %v1639
  %2704 = vmatpush1.bf16.msra.mxu0 %v1638
  %2705 = vmatprep.subr.bf16.mxu0 %v1699
  %2706 = vmatpush2.bf16.msra.mxu0 %v1698
  %2707 = vmatprep.subr.bf16.mxu0 %v1695
  %2708 = vmatpush2.bf16.msra.mxu0 %v1694
  %2709 = vmatprep.subr.bf16.mxu0 %v1691
  %2710 = vmatpush2.bf16.msra.mxu0 %v1690
  %2711 = vmatprep.subr.bf16.mxu0 %v1687
  %2712 = vmatpush2.bf16.msra.mxu0 %v1686
  %2713 = vmatprep.subr.bf16.mxu0 %v1683
  %2714 = vmatpush2.bf16.msra.mxu0 %v1682
  %2715 = vmatprep.subr.bf16.mxu0 %v1679
  %2716 = vmatpush2.bf16.msra.mxu0 %v1678
  %2717 = vmatprep.subr.bf16.mxu0 %v1675
  %2718 = vmatpush2.bf16.msra.mxu0 %v1674
  %2719 = vmatprep.subr.bf16.mxu0 %v1671
  %2720 = vmatpush2.bf16.msra.mxu0 %v1670
  %2721 = vmatprep.mubr.bf16.mxu0 %v2321
  %2722 = vmatmul.mubr.bf16.gmra.mxu0 %v2320
  %v2723 = vpop.f32.mrf.mxu0
  %v2724 = vadd.f32 %v2653, %v2723
  %v2725 = vpop.f32.mrf.mxu0
  %v2726 = vadd.f32 %v2655, %v2725
  %v2727 = vpop.f32.mrf.mxu0
  %v2728 = vadd.f32 %v2657, %v2727
  %v2729 = vpop.f32.mrf.mxu0
  %v2730 = vadd.f32 %v2659, %v2729
  %2731 = vmatprep.mubr.bf16.mxu0 %v2325
  %2732 = vmatmul.mubr.bf16.gmra.mxu0 %v2324
  %v2733 = vpop.f32.mrf.mxu0
  %v2734 = vadd.f32 %v2663, %v2733
  %v2735 = vpop.f32.mrf.mxu0
  %v2736 = vadd.f32 %v2665, %v2735
  %v2737 = vpop.f32.mrf.mxu0
  %v2738 = vadd.f32 %v2667, %v2737
  %v2739 = vpop.f32.mrf.mxu0
  %v2740 = vadd.f32 %v2669, %v2739
  %2741 = vmatprep.mubr.bf16.mxu0 %v2329
  %2742 = vmatmul.mubr.bf16.gmra.mxu0 %v2328
  %v2743 = vpop.f32.mrf.mxu0
  %v2744 = vadd.f32 %v2673, %v2743
  %v2745 = vpop.f32.mrf.mxu0
  %v2746 = vadd.f32 %v2675, %v2745
  %v2747 = vpop.f32.mrf.mxu0
  %v2748 = vadd.f32 %v2677, %v2747
  %v2749 = vpop.f32.mrf.mxu0
  %v2750 = vadd.f32 %v2679, %v2749
  %2751 = vmatprep.mubr.bf16.mxu0 %v2333
  %2752 = vmatmul.mubr.bf16.gmra.mxu0 %v2332
  %v2753 = vpop.f32.mrf.mxu0
  %v2754 = vadd.f32 %v2683, %v2753
  %v2755 = vpop.f32.mrf.mxu0
  %v2756 = vadd.f32 %v2685, %v2755
  %v2757 = vpop.f32.mrf.mxu0
  %v2758 = vpop.f32.mrf.mxu0
  %2759 = vdwg.mxu0
  %v2760 = vld [vmem:[%s3] sm:$0xf]
  %v2761 = vld [vmem:[%s4] sm:$0xf]
  %v2762 = vadd.f32 %v2069, %v2073
  %v2763 = vadd.f32 %v2762, %v2079
  %v2764 = vadd.f32 %v2763, %v2083
  %v2765 = vadd.f32 %v2764, %v2089
  %v2766 = vadd.f32 %v2765, %v2093
  %v2767 = vsel %vm171, %v2099, 0.0
  %v2768 = vadd.f32 %v2766, %v2767
  %v2769 = vrot.slane %v2768, 4
  %v2770 = vadd.f32 %v2768, %v2769
  %v2771 = vrot.slane %v2770, 2
  %v2772 = vadd.f32 %v2770, %v2771
  %v2773 = vrot.slane %v2772, 1
  %v2774 = vadd.f32 %v2772, %v2773
  %v2775 = vadd.f32 %v2071, %v2075
  %v2776 = vadd.f32 %v2775, %v2081
  %v2777 = vadd.f32 %v2776, %v2085
  %v2778 = vadd.f32 %v2777, %v2091
  %v2779 = vadd.f32 %v2778, %v2095
  %v2780 = vsel %vm171, %v2101, 0.0
  %v2781 = vadd.f32 %v2779, %v2780
  %v2782 = vrot.slane %v2781, 4
  %v2783 = vadd.f32 %v2781, %v2782
  %v2784 = vrot.slane %v2783, 2
  %v2785 = vadd.f32 %v2783, %v2784
  %v2786 = vrot.slane %v2785, 1
  %v2787 = vadd.f32 %v2785, %v2786
  %v2788 = vadd.f32 %v2282, %v2286
  %v2789 = vadd.f32 %v2788, %v2292
  %v2790 = vadd.f32 %v2789, %v2296
  %v2791 = vadd.f32 %v2790, %v2302
  %v2792 = vadd.f32 %v2791, %v2306
  %v2793 = vsel %vm171, %v2312, 0.0
  %v2794 = vadd.f32 %v2792, %v2793
  %v2795 = vrot.slane %v2794, 4
  %v2796 = vadd.f32 %v2794, %v2795
  %v2797 = vrot.slane %v2796, 2
  %v2798 = vadd.f32 %v2796, %v2797
  %v2799 = vrot.slane %v2798, 1
  %v2800 = vadd.f32 %v2798, %v2799
  %v2801 = vadd.f32 %v2284, %v2288
  %v2802 = vadd.f32 %v2801, %v2294
  %v2803 = vadd.f32 %v2802, %v2298
  %v2804 = vadd.f32 %v2803, %v2304
  %v2805 = vadd.f32 %v2804, %v2308
  %v2806 = vsel %vm171, %v2314, 0.0
  %v2807 = vadd.f32 %v2805, %v2806
  %v2808 = vrot.slane %v2807, 4
  %v2809 = vadd.f32 %v2807, %v2808
  %v2810 = vrot.slane %v2809, 2
  %v2811 = vadd.f32 %v2809, %v2810
  %v2812 = vrot.slane %v2811, 1
  %v2813 = vadd.f32 %v2811, %v2812
  %v2814 = vadd.f32 %v2774, 0.0
  %v2815 = vadd.f32 %v2787, 0.0
  %v2816 = vadd.f32 %v2800, 0.0
  %v2817 = vadd.f32 %v2813, 0.0
  %v2818 = vadd.f32 %v2511, %v2515
  %v2819 = vadd.f32 %v2818, %v2521
  %v2820 = vadd.f32 %v2819, %v2525
  %v2821 = vadd.f32 %v2820, %v2531
  %v2822 = vadd.f32 %v2821, %v2535
  %v2823 = vsel %vm171, %v2541, 0.0
  %v2824 = vadd.f32 %v2822, %v2823
  %v2825 = vrot.slane %v2824, 4
  %v2826 = vadd.f32 %v2824, %v2825
  %v2827 = vrot.slane %v2826, 2
  %v2828 = vadd.f32 %v2826, %v2827
  %v2829 = vrot.slane %v2828, 1
  %v2830 = vadd.f32 %v2828, %v2829
  %v2831 = vadd.f32 %v2513, %v2517
  %v2832 = vadd.f32 %v2831, %v2523
  %v2833 = vadd.f32 %v2832, %v2527
  %v2834 = vadd.f32 %v2833, %v2533
  %v2835 = vadd.f32 %v2834, %v2537
  %v2836 = vsel %vm171, %v2543, 0.0
  %v2837 = vadd.f32 %v2835, %v2836
  %v2838 = vrot.slane %v2837, 4
  %v2839 = vadd.f32 %v2837, %v2838
  %v2840 = vrot.slane %v2839, 2
  %v2841 = vadd.f32 %v2839, %v2840
  %v2842 = vrot.slane %v2841, 1
  %v2843 = vadd.f32 %v2841, %v2842
  %v2844 = vadd.f32 %v2724, %v2728
  %v2845 = vadd.f32 %v2844, %v2734
  %v2846 = vadd.f32 %v2845, %v2738
  %v2847 = vadd.f32 %v2846, %v2744
  %v2848 = vadd.f32 %v2847, %v2748
  %v2849 = vsel %vm171, %v2754, 0.0
  %v2850 = vadd.f32 %v2848, %v2849
  %v2851 = vrot.slane %v2850, 4
  %v2852 = vadd.f32 %v2850, %v2851
  %v2853 = vrot.slane %v2852, 2
  %v2854 = vadd.f32 %v2852, %v2853
  %v2855 = vrot.slane %v2854, 1
  %v2856 = vadd.f32 %v2854, %v2855
  %v2857 = vadd.f32 %v2726, %v2730
  %v2858 = vadd.f32 %v2857, %v2736
  %v2859 = vadd.f32 %v2858, %v2740
  %v2860 = vadd.f32 %v2859, %v2746
  %v2861 = vadd.f32 %v2860, %v2750
  %v2862 = vsel %vm171, %v2756, 0.0
  %v2863 = vadd.f32 %v2861, %v2862
  %v2864 = vrot.slane %v2863, 4
  %v2865 = vadd.f32 %v2863, %v2864
  %v2866 = vrot.slane %v2865, 2
  %v2867 = vadd.f32 %v2865, %v2866
  %v2868 = vrot.slane %v2867, 1
  %v2869 = vadd.f32 %v2867, %v2868
  %v2870 = vadd.f32 %v2814, %v2830
  %v2871 = vadd.f32 %v2815, %v2843
  %v2872 = vadd.f32 %v2816, %v2856
  %v2873 = vadd.f32 %v2817, %v2869
  %v2874 = vrcp.pop 98.0
  %v2875 = vmul.f32 %v2870, %v2874
  %v2876 = vmul.f32 %v2871, %v2874
  %v2877 = vmul.f32 %v2872, %v2874
  %v2878 = vmul.f32 %v2873, %v2874
  %v2879 = vsub.f32 %v2069, %v2875
  %v2880 = vsub.f32 %v2071, %v2876
  %v2881 = vsub.f32 %v2282, %v2877
  %v2882 = vsub.f32 %v2284, %v2878
  %v2883 = vsub.f32 %v2073, %v2875
  %v2884 = vsub.f32 %v2075, %v2876
  %v2885 = vsub.f32 %v2286, %v2877
  %v2886 = vsub.f32 %v2288, %v2878
  %v2887 = vsub.f32 %v2079, %v2875
  %v2888 = vsub.f32 %v2081, %v2876
  %v2889 = vsub.f32 %v2292, %v2877
  %v2890 = vsub.f32 %v2294, %v2878
  %v2891 = vsub.f32 %v2083, %v2875
  %v2892 = vsub.f32 %v2085, %v2876
  %v2893 = vsub.f32 %v2296, %v2877
  %v2894 = vsub.f32 %v2298, %v2878
  %v2895 = vsub.f32 %v2089, %v2875
  %v2896 = vsub.f32 %v2091, %v2876
  %v2897 = vsub.f32 %v2302, %v2877
  %v2898 = vsub.f32 %v2304, %v2878
  %v2899 = vsub.f32 %v2093, %v2875
  %v2900 = vsub.f32 %v2095, %v2876
  %v2901 = vsub.f32 %v2306, %v2877
  %v2902 = vsub.f32 %v2308, %v2878
  %v2903 = vsub.f32 %v2099, %v2875
  %v2904 = vsub.f32 %v2101, %v2876
  %v2905 = vsub.f32 %v2312, %v2877
  %v2906 = vsub.f32 %v2314, %v2878
  %v2907 = vmul.f32 %v2879, %v2879
  %v2908 = vmul.f32 %v2880, %v2880
  %v2909 = vmul.f32 %v2881, %v2881
  %v2910 = vmul.f32 %v2882, %v2882
  %v2911 = vmul.f32 %v2883, %v2883
  %v2912 = vmul.f32 %v2884, %v2884
  %v2913 = vmul.f32 %v2885, %v2885
  %v2914 = vmul.f32 %v2886, %v2886
  %v2915 = vmul.f32 %v2887, %v2887
  %v2916 = vmul.f32 %v2888, %v2888
  %v2917 = vmul.f32 %v2889, %v2889
  %v2918 = vmul.f32 %v2890, %v2890
  %v2919 = vmul.f32 %v2891, %v2891
  %v2920 = vmul.f32 %v2892, %v2892
  %v2921 = vmul.f32 %v2893, %v2893
  %v2922 = vmul.f32 %v2894, %v2894
  %v2923 = vmul.f32 %v2895, %v2895
  %v2924 = vmul.f32 %v2896, %v2896
  %v2925 = vmul.f32 %v2897, %v2897
  %v2926 = vmul.f32 %v2898, %v2898
  %v2927 = vmul.f32 %v2899, %v2899
  %v2928 = vmul.f32 %v2900, %v2900
  %v2929 = vmul.f32 %v2901, %v2901
  %v2930 = vmul.f32 %v2902, %v2902
  %v2931 = vmul.f32 %v2903, %v2903
  %v2932 = vmul.f32 %v2904, %v2904
  %v2933 = vmul.f32 %v2905, %v2905
  %v2934 = vmul.f32 %v2906, %v2906
  %v2935 = vadd.f32 %v2907, %v2911
  %v2936 = vadd.f32 %v2935, %v2915
  %v2937 = vadd.f32 %v2936, %v2919
  %v2938 = vadd.f32 %v2937, %v2923
  %v2939 = vadd.f32 %v2938, %v2927
  %v2940 = vsel %vm171, %v2931, 0.0
  %v2941 = vadd.f32 %v2939, %v2940
  %v2942 = vrot.slane %v2941, 4
  %v2943 = vadd.f32 %v2941, %v2942
  %v2944 = vrot.slane %v2943, 2
  %v2945 = vadd.f32 %v2943, %v2944
  %v2946 = vrot.slane %v2945, 1
  %v2947 = vadd.f32 %v2945, %v2946
  %v2948 = vadd.f32 %v2908, %v2912
  %v2949 = vadd.f32 %v2948, %v2916
  %v2950 = vadd.f32 %v2949, %v2920
  %v2951 = vadd.f32 %v2950, %v2924
  %v2952 = vadd.f32 %v2951, %v2928
  %v2953 = vsel %vm171, %v2932, 0.0
  %v2954 = vadd.f32 %v2952, %v2953
  %v2955 = vrot.slane %v2954, 4
  %v2956 = vadd.f32 %v2954, %v2955
  %v2957 = vrot.slane %v2956, 2
  %v2958 = vadd.f32 %v2956, %v2957
  %v2959 = vrot.slane %v2958, 1
  %v2960 = vadd.f32 %v2958, %v2959
  %v2961 = vadd.f32 %v2909, %v2913
  %v2962 = vadd.f32 %v2961, %v2917
  %v2963 = vadd.f32 %v2962, %v2921
  %v2964 = vadd.f32 %v2963, %v2925
  %v2965 = vadd.f32 %v2964, %v2929
  %v2966 = vsel %vm171, %v2933, 0.0
  %v2967 = vadd.f32 %v2965, %v2966
  %v2968 = vrot.slane %v2967, 4
  %v2969 = vadd.f32 %v2967, %v2968
  %v2970 = vrot.slane %v2969, 2
  %v2971 = vadd.f32 %v2969, %v2970
  %v2972 = vrot.slane %v2971, 1
  %v2973 = vadd.f32 %v2971, %v2972
  %v2974 = vadd.f32 %v2910, %v2914
  %v2975 = vadd.f32 %v2974, %v2918
  %v2976 = vadd.f32 %v2975, %v2922
  %v2977 = vadd.f32 %v2976, %v2926
  %v2978 = vadd.f32 %v2977, %v2930
  %v2979 = vsel %vm171, %v2934, 0.0
  %v2980 = vadd.f32 %v2978, %v2979
  %v2981 = vrot.slane %v2980, 4
  %v2982 = vadd.f32 %v2980, %v2981
  %v2983 = vrot.slane %v2982, 2
  %v2984 = vadd.f32 %v2982, %v2983
  %v2985 = vrot.slane %v2984, 1
  %v2986 = vadd.f32 %v2984, %v2985
  %v2987 = vadd.f32 %v2947, 0.0
  %v2988 = vadd.f32 %v2960, 0.0
  %v2989 = vadd.f32 %v2973, 0.0
  %v2990 = vadd.f32 %v2986, 0.0
  %v2991 = vsub.f32 %v2511, %v2875
  %v2992 = vsub.f32 %v2513, %v2876
  %v2993 = vsub.f32 %v2724, %v2877
  %v2994 = vsub.f32 %v2726, %v2878
  %v2995 = vsub.f32 %v2515, %v2875
  %v2996 = vsub.f32 %v2517, %v2876
  %v2997 = vsub.f32 %v2728, %v2877
  %v2998 = vsub.f32 %v2730, %v2878
  %v2999 = vsub.f32 %v2521, %v2875
  %v3000 = vsub.f32 %v2523, %v2876
  %v3001 = vsub.f32 %v2734, %v2877
  %v3002 = vsub.f32 %v2736, %v2878
  %v3003 = vsub.f32 %v2525, %v2875
  %v3004 = vsub.f32 %v2527, %v2876
  %v3005 = vsub.f32 %v2738, %v2877
  %v3006 = vsub.f32 %v2740, %v2878
  %v3007 = vsub.f32 %v2531, %v2875
  %v3008 = vsub.f32 %v2533, %v2876
  %v3009 = vsub.f32 %v2744, %v2877
  %v3010 = vsub.f32 %v2746, %v2878
  %v3011 = vsub.f32 %v2535, %v2875
  %v3012 = vsub.f32 %v2537, %v2876
  %v3013 = vsub.f32 %v2748, %v2877
  %v3014 = vsub.f32 %v2750, %v2878
  %v3015 = vsub.f32 %v2541, %v2875
  %v3016 = vsub.f32 %v2543, %v2876
  %v3017 = vsub.f32 %v2754, %v2877
  %v3018 = vsub.f32 %v2756, %v2878
  %v3019 = vmul.f32 %v2991, %v2991
  %v3020 = vmul.f32 %v2992, %v2992
  %v3021 = vmul.f32 %v2993, %v2993
  %v3022 = vmul.f32 %v2994, %v2994
  %v3023 = vmul.f32 %v2995, %v2995
  %v3024 = vmul.f32 %v2996, %v2996
  %v3025 = vmul.f32 %v2997, %v2997
  %v3026 = vmul.f32 %v2998, %v2998
  %v3027 = vmul.f32 %v2999, %v2999
  %v3028 = vmul.f32 %v3000, %v3000
  %v3029 = vmul.f32 %v3001, %v3001
  %v3030 = vmul.f32 %v3002, %v3002
  %v3031 = vmul.f32 %v3003, %v3003
  %v3032 = vmul.f32 %v3004, %v3004
  %v3033 = vmul.f32 %v3005, %v3005
  %v3034 = vmul.f32 %v3006, %v3006
  %v3035 = vmul.f32 %v3007, %v3007
  %v3036 = vmul.f32 %v3008, %v3008
  %v3037 = vmul.f32 %v3009, %v3009
  %v3038 = vmul.f32 %v3010, %v3010
  %v3039 = vmul.f32 %v3011, %v3011
  %v3040 = vmul.f32 %v3012, %v3012
  %v3041 = vmul.f32 %v3013, %v3013
  %v3042 = vmul.f32 %v3014, %v3014
  %v3043 = vmul.f32 %v3015, %v3015
  %v3044 = vmul.f32 %v3016, %v3016
  %v3045 = vmul.f32 %v3017, %v3017
  %v3046 = vmul.f32 %v3018, %v3018
  %v3047 = vadd.f32 %v3019, %v3023
  %v3048 = vadd.f32 %v3047, %v3027
  %v3049 = vadd.f32 %v3048, %v3031
  %v3050 = vadd.f32 %v3049, %v3035
  %v3051 = vadd.f32 %v3050, %v3039
  %v3052 = vsel %vm171, %v3043, 0.0
  %v3053 = vadd.f32 %v3051, %v3052
  %v3054 = vrot.slane %v3053, 4
  %v3055 = vadd.f32 %v3053, %v3054
  %v3056 = vrot.slane %v3055, 2
  %v3057 = vadd.f32 %v3055, %v3056
  %v3058 = vrot.slane %v3057, 1
  %v3059 = vadd.f32 %v3057, %v3058
  %v3060 = vadd.f32 %v3020, %v3024
  %v3061 = vadd.f32 %v3060, %v3028
  %v3062 = vadd.f32 %v3061, %v3032
  %v3063 = vadd.f32 %v3062, %v3036
  %v3064 = vadd.f32 %v3063, %v3040
  %v3065 = vsel %vm171, %v3044, 0.0
  %v3066 = vadd.f32 %v3064, %v3065
  %v3067 = vrot.slane %v3066, 4
  %v3068 = vadd.f32 %v3066, %v3067
  %v3069 = vrot.slane %v3068, 2
  %v3070 = vadd.f32 %v3068, %v3069
  %v3071 = vrot.slane %v3070, 1
  %v3072 = vadd.f32 %v3070, %v3071
  %v3073 = vadd.f32 %v3021, %v3025
  %v3074 = vadd.f32 %v3073, %v3029
  %v3075 = vadd.f32 %v3074, %v3033
  %v3076 = vadd.f32 %v3075, %v3037
  %v3077 = vadd.f32 %v3076, %v3041
  %v3078 = vsel %vm171, %v3045, 0.0
  %v3079 = vadd.f32 %v3077, %v3078
  %v3080 = vrot.slane %v3079, 4
  %v3081 = vadd.f32 %v3079, %v3080
  %v3082 = vrot.slane %v3081, 2
  %v3083 = vadd.f32 %v3081, %v3082
  %v3084 = vrot.slane %v3083, 1
  %v3085 = vadd.f32 %v3083, %v3084
  %v3086 = vadd.f32 %v3022, %v3026
  %v3087 = vadd.f32 %v3086, %v3030
  %v3088 = vadd.f32 %v3087, %v3034
  %v3089 = vadd.f32 %v3088, %v3038
  %v3090 = vadd.f32 %v3089, %v3042
  %v3091 = vsel %vm171, %v3046, 0.0
  %v3092 = vadd.f32 %v3090, %v3091
  %v3093 = vrot.slane %v3092, 4
  %v3094 = vadd.f32 %v3092, %v3093
  %v3095 = vrot.slane %v3094, 2
  %v3096 = vadd.f32 %v3094, %v3095
  %v3097 = vrot.slane %v3096, 1
  %v3098 = vadd.f32 %v3096, %v3097
  %v3099 = vadd.f32 %v2987, %v3059
  %v3100 = vadd.f32 %v2988, %v3072
  %v3101 = vadd.f32 %v2989, %v3085
  %v3102 = vadd.f32 %v2990, %v3098
  %v3103 = vmul.f32 %v3099, %v2874
  %v3104 = vmul.f32 %v3100, %v2874
  %v3105 = vmul.f32 %v3101, %v2874
  %v3106 = vmul.f32 %v3102, %v2874
  %v3107 = vadd.f32 %v3103, 1e-05
  %v3108 = vadd.f32 %v3104, 1e-05
  %v3109 = vadd.f32 %v3105, 1e-05
  %v3110 = vadd.f32 %v3106, 1e-05
  %v3111 = vrsqrt.pop %v3107
  %v3112 = vrsqrt.pop %v3108
  %v3113 = vrsqrt.pop %v3109
  %v3114 = vrsqrt.pop %v3110
  %v3115 = vmul.f32 %v2879, %v3111
  %v3116 = vmul.f32 %v2880, %v3112
  %v3117 = vmul.f32 %v2881, %v3113
  %v3118 = vmul.f32 %v2882, %v3114
  %v3119 = vmul.f32 %v2883, %v3111
  %v3120 = vmul.f32 %v2884, %v3112
  %v3121 = vmul.f32 %v2885, %v3113
  %v3122 = vmul.f32 %v2886, %v3114
  %v3123 = vmul.f32 %v2887, %v3111
  %v3124 = vmul.f32 %v2888, %v3112
  %v3125 = vmul.f32 %v2889, %v3113
  %v3126 = vmul.f32 %v2890, %v3114
  %v3127 = vmul.f32 %v2891, %v3111
  %v3128 = vmul.f32 %v2892, %v3112
  %v3129 = vmul.f32 %v2893, %v3113
  %v3130 = vmul.f32 %v2894, %v3114
  %v3131 = vmul.f32 %v2895, %v3111
  %v3132 = vmul.f32 %v2896, %v3112
  %v3133 = vmul.f32 %v2897, %v3113
  %v3134 = vmul.f32 %v2898, %v3114
  %v3135 = vmul.f32 %v2899, %v3111
  %v3136 = vmul.f32 %v2900, %v3112
  %v3137 = vmul.f32 %v2901, %v3113
  %v3138 = vmul.f32 %v2902, %v3114
  %v3139 = vmul.f32 %v2903, %v3111
  %v3140 = vmul.f32 %v2904, %v3112
  %v3141 = vmul.f32 %v2905, %v3113
  %v3142 = vmul.f32 %v2906, %v3114
  %v3144 = vlaneseq
  %v3145 = vshrl.u32 %v3144, 7
  %v3146 = vsub.s32 0, %v3145
  %v3147 = vrot.slane %v2760, %v3146
  %v3148 = vlaneseq
  %v3149 = vshrl.u32 %v3148, 7
  %v3150 = vsub.s32 1, %v3149
  %v3151 = vrot.slane %v2760, %v3150
  %v3152 = vlaneseq
  %v3153 = vshrl.u32 %v3152, 7
  %v3154 = vsub.s32 2, %v3153
  %v3155 = vrot.slane %v2760, %v3154
  %v3156 = vlaneseq
  %v3157 = vshrl.u32 %v3156, 7
  %v3158 = vsub.s32 3, %v3157
  %v3159 = vrot.slane %v2760, %v3158
  %v3164 = vmul.f32 %v3115, %v3147
  %v3165 = vmul.f32 %v3116, %v3151
  %v3166 = vmul.f32 %v3117, %v3155
  %v3167 = vmul.f32 %v3118, %v3159
  %v3168 = vmul.f32 %v3119, %v3147
  %v3169 = vmul.f32 %v3120, %v3151
  %v3170 = vmul.f32 %v3121, %v3155
  %v3171 = vmul.f32 %v3122, %v3159
  %v3172 = vmul.f32 %v3123, %v3147
  %v3173 = vmul.f32 %v3124, %v3151
  %v3174 = vmul.f32 %v3125, %v3155
  %v3175 = vmul.f32 %v3126, %v3159
  %v3176 = vmul.f32 %v3127, %v3147
  %v3177 = vmul.f32 %v3128, %v3151
  %v3178 = vmul.f32 %v3129, %v3155
  %v3179 = vmul.f32 %v3130, %v3159
  %v3180 = vmul.f32 %v3131, %v3147
  %v3181 = vmul.f32 %v3132, %v3151
  %v3182 = vmul.f32 %v3133, %v3155
  %v3183 = vmul.f32 %v3134, %v3159
  %v3184 = vmul.f32 %v3135, %v3147
  %v3185 = vmul.f32 %v3136, %v3151
  %v3186 = vmul.f32 %v3137, %v3155
  %v3187 = vmul.f32 %v3138, %v3159
  %v3188 = vmul.f32 %v3139, %v3147
  %v3189 = vmul.f32 %v3140, %v3151
  %v3190 = vmul.f32 %v3141, %v3155
  %v3191 = vmul.f32 %v3142, %v3159
  %v3193 = vlaneseq
  %v3194 = vshrl.u32 %v3193, 7
  %v3195 = vsub.s32 0, %v3194
  %v3196 = vrot.slane %v2761, %v3195
  %v3197 = vlaneseq
  %v3198 = vshrl.u32 %v3197, 7
  %v3199 = vsub.s32 1, %v3198
  %v3200 = vrot.slane %v2761, %v3199
  %v3201 = vlaneseq
  %v3202 = vshrl.u32 %v3201, 7
  %v3203 = vsub.s32 2, %v3202
  %v3204 = vrot.slane %v2761, %v3203
  %v3205 = vlaneseq
  %v3206 = vshrl.u32 %v3205, 7
  %v3207 = vsub.s32 3, %v3206
  %v3208 = vrot.slane %v2761, %v3207
  %v3213 = vadd.f32 %v3164, %v3196
  %v3214 = vadd.f32 %v3165, %v3200
  %v3215 = vadd.f32 %v3166, %v3204
  %v3216 = vadd.f32 %v3167, %v3208
  %v3217 = vadd.f32 %v3168, %v3196
  %v3218 = vadd.f32 %v3169, %v3200
  %v3219 = vadd.f32 %v3170, %v3204
  %v3220 = vadd.f32 %v3171, %v3208
  %v3221 = vadd.f32 %v3172, %v3196
  %v3222 = vadd.f32 %v3173, %v3200
  %v3223 = vadd.f32 %v3174, %v3204
  %v3224 = vadd.f32 %v3175, %v3208
  %v3225 = vadd.f32 %v3176, %v3196
  %v3226 = vadd.f32 %v3177, %v3200
  %v3227 = vadd.f32 %v3178, %v3204
  %v3228 = vadd.f32 %v3179, %v3208
  %v3229 = vadd.f32 %v3180, %v3196
  %v3230 = vadd.f32 %v3181, %v3200
  %v3231 = vadd.f32 %v3182, %v3204
  %v3232 = vadd.f32 %v3183, %v3208
  %v3233 = vadd.f32 %v3184, %v3196
  %v3234 = vadd.f32 %v3185, %v3200
  %v3235 = vadd.f32 %v3186, %v3204
  %v3236 = vadd.f32 %v3187, %v3208
  %v3237 = vadd.f32 %v3188, %v3196
  %v3238 = vadd.f32 %v3189, %v3200
  %v3239 = vadd.f32 %v3190, %v3204
  %v3240 = vadd.f32 %v3191, %v3208
  %vm3241 = vcmp.ge.f32.partialorder %v3213, 0.0
  %vm3242 = vcmp.ge.f32.partialorder %v3214, 0.0
  %vm3243 = vcmp.ge.f32.partialorder %v3215, 0.0
  %vm3244 = vcmp.ge.f32.partialorder %v3216, 0.0
  %vm3245 = vcmp.ge.f32.partialorder %v3217, 0.0
  %vm3246 = vcmp.ge.f32.partialorder %v3218, 0.0
  %vm3247 = vcmp.ge.f32.partialorder %v3219, 0.0
  %vm3248 = vcmp.ge.f32.partialorder %v3220, 0.0
  %vm3249 = vcmp.ge.f32.partialorder %v3221, 0.0
  %vm3250 = vcmp.ge.f32.partialorder %v3222, 0.0
  %vm3251 = vcmp.ge.f32.partialorder %v3223, 0.0
  %vm3252 = vcmp.ge.f32.partialorder %v3224, 0.0
  %vm3253 = vcmp.ge.f32.partialorder %v3225, 0.0
  %vm3254 = vcmp.ge.f32.partialorder %v3226, 0.0
  %vm3255 = vcmp.ge.f32.partialorder %v3227, 0.0
  %vm3256 = vcmp.ge.f32.partialorder %v3228, 0.0
  %vm3257 = vcmp.ge.f32.partialorder %v3229, 0.0
  %vm3258 = vcmp.ge.f32.partialorder %v3230, 0.0
  %vm3259 = vcmp.ge.f32.partialorder %v3231, 0.0
  %vm3260 = vcmp.ge.f32.partialorder %v3232, 0.0
  %vm3261 = vcmp.ge.f32.partialorder %v3233, 0.0
  %vm3262 = vcmp.ge.f32.partialorder %v3234, 0.0
  %vm3263 = vcmp.ge.f32.partialorder %v3235, 0.0
  %vm3264 = vcmp.ge.f32.partialorder %v3236, 0.0
  %vm3265 = vcmp.ge.f32.partialorder %v3237, 0.0
  %vm3266 = vcmp.ge.f32.partialorder %v3238, 0.0
  %vm3267 = vcmp.ge.f32.partialorder %v3239, 0.0
  %vm3268 = vcmp.ge.f32.partialorder %v3240, 0.0
  %v3269 = vmul.f32 %v3213, 0.01
  %v3270 = vmul.f32 %v3214, 0.01
  %v3271 = vmul.f32 %v3215, 0.01
  %v3272 = vmul.f32 %v3216, 0.01
  %v3273 = vmul.f32 %v3217, 0.01
  %v3274 = vmul.f32 %v3218, 0.01
  %v3275 = vmul.f32 %v3219, 0.01
  %v3276 = vmul.f32 %v3220, 0.01
  %v3277 = vmul.f32 %v3221, 0.01
  %v3278 = vmul.f32 %v3222, 0.01
  %v3279 = vmul.f32 %v3223, 0.01
  %v3280 = vmul.f32 %v3224, 0.01
  %v3281 = vmul.f32 %v3225, 0.01
  %v3282 = vmul.f32 %v3226, 0.01
  %v3283 = vmul.f32 %v3227, 0.01
  %v3284 = vmul.f32 %v3228, 0.01
  %v3285 = vmul.f32 %v3229, 0.01
  %v3286 = vmul.f32 %v3230, 0.01
  %v3287 = vmul.f32 %v3231, 0.01
  %v3288 = vmul.f32 %v3232, 0.01
  %v3289 = vmul.f32 %v3233, 0.01
  %v3290 = vmul.f32 %v3234, 0.01
  %v3291 = vmul.f32 %v3235, 0.01
  %v3292 = vmul.f32 %v3236, 0.01
  %v3293 = vmul.f32 %v3237, 0.01
  %v3294 = vmul.f32 %v3238, 0.01
  %v3295 = vmul.f32 %v3239, 0.01
  %v3296 = vmul.f32 %v3240, 0.01
  %v3297 = vsel %vm3241, %v3213, %v3269
  %v3298 = vsel %vm3242, %v3214, %v3270
  %v3299 = vsel %vm3243, %v3215, %v3271
  %v3300 = vsel %vm3244, %v3216, %v3272
  %v3301 = vsel %vm3245, %v3217, %v3273
  %v3302 = vsel %vm3246, %v3218, %v3274
  %v3303 = vsel %vm3247, %v3219, %v3275
  %v3304 = vsel %vm3248, %v3220, %v3276
  %v3305 = vsel %vm3249, %v3221, %v3277
  %v3306 = vsel %vm3250, %v3222, %v3278
  %v3307 = vsel %vm3251, %v3223, %v3279
  %v3308 = vsel %vm3252, %v3224, %v3280
  %v3309 = vsel %vm3253, %v3225, %v3281
  %v3310 = vsel %vm3254, %v3226, %v3282
  %v3311 = vsel %vm3255, %v3227, %v3283
  %v3312 = vsel %vm3256, %v3228, %v3284
  %v3313 = vsel %vm3257, %v3229, %v3285
  %v3314 = vsel %vm3258, %v3230, %v3286
  %v3315 = vsel %vm3259, %v3231, %v3287
  %v3316 = vsel %vm3260, %v3232, %v3288
  %v3317 = vsel %vm3261, %v3233, %v3289
  %v3318 = vsel %vm3262, %v3234, %v3290
  %v3319 = vsel %vm3263, %v3235, %v3291
  %v3320 = vsel %vm3264, %v3236, %v3292
  %v3321 = vsel %vm3265, %v3237, %v3293
  %v3322 = vsel %vm3266, %v3238, %v3294
  %v3323 = vsel %vm3267, %v3239, %v3295
  %v3324 = vsel %vm3268, %v3240, %v3296
  %v3325 = vmul.f32 %v2991, %v3111
  %v3326 = vmul.f32 %v2992, %v3112
  %v3327 = vmul.f32 %v2993, %v3113
  %v3328 = vmul.f32 %v2994, %v3114
  %v3329 = vmul.f32 %v2995, %v3111
  %v3330 = vmul.f32 %v2996, %v3112
  %v3331 = vmul.f32 %v2997, %v3113
  %v3332 = vmul.f32 %v2998, %v3114
  %v3333 = vmul.f32 %v2999, %v3111
  %v3334 = vmul.f32 %v3000, %v3112
  %v3335 = vmul.f32 %v3001, %v3113
  %v3336 = vmul.f32 %v3002, %v3114
  %v3337 = vmul.f32 %v3003, %v3111
  %v3338 = vmul.f32 %v3004, %v3112
  %v3339 = vmul.f32 %v3005, %v3113
  %v3340 = vmul.f32 %v3006, %v3114
  %v3341 = vmul.f32 %v3007, %v3111
  %v3342 = vmul.f32 %v3008, %v3112
  %v3343 = vmul.f32 %v3009, %v3113
  %v3344 = vmul.f32 %v3010, %v3114
  %v3345 = vmul.f32 %v3011, %v3111
  %v3346 = vmul.f32 %v3012, %v3112
  %v3347 = vmul.f32 %v3013, %v3113
  %v3348 = vmul.f32 %v3014, %v3114
  %v3349 = vmul.f32 %v3015, %v3111
  %v3350 = vmul.f32 %v3016, %v3112
  %v3351 = vmul.f32 %v3017, %v3113
  %v3352 = vmul.f32 %v3018, %v3114
  %v3353 = vmul.f32 %v3325, %v3147
  %v3354 = vmul.f32 %v3326, %v3151
  %v3355 = vmul.f32 %v3327, %v3155
  %v3356 = vmul.f32 %v3328, %v3159
  %v3357 = vmul.f32 %v3329, %v3147
  %v3358 = vmul.f32 %v3330, %v3151
  %v3359 = vmul.f32 %v3331, %v3155
  %v3360 = vmul.f32 %v3332, %v3159
  %v3361 = vmul.f32 %v3333, %v3147
  %v3362 = vmul.f32 %v3334, %v3151
  %v3363 = vmul.f32 %v3335, %v3155
  %v3364 = vmul.f32 %v3336, %v3159
  %v3365 = vmul.f32 %v3337, %v3147
  %v3366 = vmul.f32 %v3338, %v3151
  %v3367 = vmul.f32 %v3339, %v3155
  %v3368 = vmul.f32 %v3340, %v3159
  %v3369 = vmul.f32 %v3341, %v3147
  %v3370 = vmul.f32 %v3342, %v3151
  %v3371 = vmul.f32 %v3343, %v3155
  %v3372 = vmul.f32 %v3344, %v3159
  %v3373 = vmul.f32 %v3345, %v3147
  %v3374 = vmul.f32 %v3346, %v3151
  %v3375 = vmul.f32 %v3347, %v3155
  %v3376 = vmul.f32 %v3348, %v3159
  %v3377 = vmul.f32 %v3349, %v3147
  %v3378 = vmul.f32 %v3350, %v3151
  %v3379 = vmul.f32 %v3351, %v3155
  %v3380 = vmul.f32 %v3352, %v3159
  %v3381 = vadd.f32 %v3353, %v3196
  %v3382 = vadd.f32 %v3354, %v3200
  %v3383 = vadd.f32 %v3355, %v3204
  %v3384 = vadd.f32 %v3356, %v3208
  %v3385 = vadd.f32 %v3357, %v3196
  %v3386 = vadd.f32 %v3358, %v3200
  %v3387 = vadd.f32 %v3359, %v3204
  %v3388 = vadd.f32 %v3360, %v3208
  %v3389 = vadd.f32 %v3361, %v3196
  %v3390 = vadd.f32 %v3362, %v3200
  %v3391 = vadd.f32 %v3363, %v3204
  %v3392 = vadd.f32 %v3364, %v3208
  %v3393 = vadd.f32 %v3365, %v3196
  %v3394 = vadd.f32 %v3366, %v3200
  %v3395 = vadd.f32 %v3367, %v3204
  %v3396 = vadd.f32 %v3368, %v3208
  %v3397 = vadd.f32 %v3369, %v3196
  %v3398 = vadd.f32 %v3370, %v3200
  %v3399 = vadd.f32 %v3371, %v3204
  %v3400 = vadd.f32 %v3372, %v3208
  %v3401 = vadd.f32 %v3373, %v3196
  %v3402 = vadd.f32 %v3374, %v3200
  %v3403 = vadd.f32 %v3375, %v3204
  %v3404 = vadd.f32 %v3376, %v3208
  %v3405 = vadd.f32 %v3377, %v3196
  %v3406 = vadd.f32 %v3378, %v3200
  %v3407 = vadd.f32 %v3379, %v3204
  %v3408 = vadd.f32 %v3380, %v3208
  %vm3409 = vcmp.ge.f32.partialorder %v3381, 0.0
  %vm3410 = vcmp.ge.f32.partialorder %v3382, 0.0
  %vm3411 = vcmp.ge.f32.partialorder %v3383, 0.0
  %vm3412 = vcmp.ge.f32.partialorder %v3384, 0.0
  %vm3413 = vcmp.ge.f32.partialorder %v3385, 0.0
  %vm3414 = vcmp.ge.f32.partialorder %v3386, 0.0
  %vm3415 = vcmp.ge.f32.partialorder %v3387, 0.0
  %vm3416 = vcmp.ge.f32.partialorder %v3388, 0.0
  %vm3417 = vcmp.ge.f32.partialorder %v3389, 0.0
  %vm3418 = vcmp.ge.f32.partialorder %v3390, 0.0
  %vm3419 = vcmp.ge.f32.partialorder %v3391, 0.0
  %vm3420 = vcmp.ge.f32.partialorder %v3392, 0.0
  %vm3421 = vcmp.ge.f32.partialorder %v3393, 0.0
  %vm3422 = vcmp.ge.f32.partialorder %v3394, 0.0
  %vm3423 = vcmp.ge.f32.partialorder %v3395, 0.0
  %vm3424 = vcmp.ge.f32.partialorder %v3396, 0.0
  %vm3425 = vcmp.ge.f32.partialorder %v3397, 0.0
  %vm3426 = vcmp.ge.f32.partialorder %v3398, 0.0
  %vm3427 = vcmp.ge.f32.partialorder %v3399, 0.0
  %vm3428 = vcmp.ge.f32.partialorder %v3400, 0.0
  %vm3429 = vcmp.ge.f32.partialorder %v3401, 0.0
  %vm3430 = vcmp.ge.f32.partialorder %v3402, 0.0
  %vm3431 = vcmp.ge.f32.partialorder %v3403, 0.0
  %vm3432 = vcmp.ge.f32.partialorder %v3404, 0.0
  %vm3433 = vcmp.ge.f32.partialorder %v3405, 0.0
  %vm3434 = vcmp.ge.f32.partialorder %v3406, 0.0
  %vm3435 = vcmp.ge.f32.partialorder %v3407, 0.0
  %vm3436 = vcmp.ge.f32.partialorder %v3408, 0.0
  %v3437 = vmul.f32 %v3381, 0.01
  %v3438 = vmul.f32 %v3382, 0.01
  %v3439 = vmul.f32 %v3383, 0.01
  %v3440 = vmul.f32 %v3384, 0.01
  %v3441 = vmul.f32 %v3385, 0.01
  %v3442 = vmul.f32 %v3386, 0.01
  %v3443 = vmul.f32 %v3387, 0.01
  %v3444 = vmul.f32 %v3388, 0.01
  %v3445 = vmul.f32 %v3389, 0.01
  %v3446 = vmul.f32 %v3390, 0.01
  %v3447 = vmul.f32 %v3391, 0.01
  %v3448 = vmul.f32 %v3392, 0.01
  %v3449 = vmul.f32 %v3393, 0.01
  %v3450 = vmul.f32 %v3394, 0.01
  %v3451 = vmul.f32 %v3395, 0.01
  %v3452 = vmul.f32 %v3396, 0.01
  %v3453 = vmul.f32 %v3397, 0.01
  %v3454 = vmul.f32 %v3398, 0.01
  %v3455 = vmul.f32 %v3399, 0.01
  %v3456 = vmul.f32 %v3400, 0.01
  %v3457 = vmul.f32 %v3401, 0.01
  %v3458 = vmul.f32 %v3402, 0.01
  %v3459 = vmul.f32 %v3403, 0.01
  %v3460 = vmul.f32 %v3404, 0.01
  %v3461 = vmul.f32 %v3405, 0.01
  %v3462 = vmul.f32 %v3406, 0.01
  %v3463 = vmul.f32 %v3407, 0.01
  %v3464 = vmul.f32 %v3408, 0.01
  %v3465 = vsel %vm3409, %v3381, %v3437
  %v3466 = vsel %vm3410, %v3382, %v3438
  %v3467 = vsel %vm3411, %v3383, %v3439
  %v3468 = vsel %vm3412, %v3384, %v3440
  %v3469 = vsel %vm3413, %v3385, %v3441
  %v3470 = vsel %vm3414, %v3386, %v3442
  %v3471 = vsel %vm3415, %v3387, %v3443
  %v3472 = vsel %vm3416, %v3388, %v3444
  %v3473 = vsel %vm3417, %v3389, %v3445
  %v3474 = vsel %vm3418, %v3390, %v3446
  %v3475 = vsel %vm3419, %v3391, %v3447
  %v3476 = vsel %vm3420, %v3392, %v3448
  %v3477 = vsel %vm3421, %v3393, %v3449
  %v3478 = vsel %vm3422, %v3394, %v3450
  %v3479 = vsel %vm3423, %v3395, %v3451
  %v3480 = vsel %vm3424, %v3396, %v3452
  %v3481 = vsel %vm3425, %v3397, %v3453
  %v3482 = vsel %vm3426, %v3398, %v3454
  %v3483 = vsel %vm3427, %v3399, %v3455
  %v3484 = vsel %vm3428, %v3400, %v3456
  %v3485 = vsel %vm3429, %v3401, %v3457
  %v3486 = vsel %vm3430, %v3402, %v3458
  %v3487 = vsel %vm3431, %v3403, %v3459
  %v3488 = vsel %vm3432, %v3404, %v3460
  %v3489 = vsel %vm3433, %v3405, %v3461
  %v3490 = vsel %vm3434, %v3406, %v3462
  %v3491 = vsel %vm3435, %v3407, %v3463
  %v3492 = vsel %vm3436, %v3408, %v3464
  %v3493 = vpack.c.bf16 %v3301, %v3297
  %v3494 = vpack.c.bf16 %v3302, %v3298
  %v3495 = vpack.c.bf16 %v3303, %v3299
  %v3496 = vpack.c.bf16 %v3304, %v3300
  %v3497 = vpack.c.bf16 %v3309, %v3305
  %v3498 = vpack.c.bf16 %v3310, %v3306
  %v3499 = vpack.c.bf16 %v3311, %v3307
  %v3500 = vpack.c.bf16 %v3312, %v3308
  %v3501 = vpack.c.bf16 %v3317, %v3313
  %v3502 = vpack.c.bf16 %v3318, %v3314
  %v3503 = vpack.c.bf16 %v3319, %v3315
  %v3504 = vpack.c.bf16 %v3320, %v3316
  %v3505 = vpack.c.bf16 %v3321, %v3321
  %v3506 = vpack.c.bf16 %v3322, %v3322
  %v3507 = vpack.c.bf16 %v3323, %v3323
  %v3508 = vpack.c.bf16 %v3324, %v3324
  %v3509 = vld [vmem:[%s5] sm:$0xff]
  %v3510 = vld [vmem:[%s5 + $0x8] sm:$0xff]
  %v3511 = vld [vmem:[%s5 + $0x10] sm:$0xff]
  %v3512 = vld [vmem:[%s5 + $0x18] sm:$0xff]
  %v3513 = vld [vmem:[%s5 + $0x20] sm:$0xff]
  %v3514 = vld [vmem:[%s5 + $0x28] sm:$0xff]
  %v3515 = vld [vmem:[%s5 + $0x30] sm:$0xff]
  %v3516 = vld [vmem:[%s5 + $0x38] sm:$0xff]
  %v3517 = vld [vmem:[%s5 + $0x40] sm:$0xff]
  %v3518 = vld [vmem:[%s5 + $0x48] sm:$0xff]
  %v3519 = vld [vmem:[%s5 + $0x50] sm:$0xff]
  %v3520 = vld [vmem:[%s5 + $0x58] sm:$0xff]
  %v3521 = vld [vmem:[%s5 + $0x60] sm:$0xff]
  %v3522 = vld [vmem:[%s5 + $0x68] sm:$0xff]
  %v3523 = vld [vmem:[%s5 + $0x70] sm:$0xff]
  %v3524 = vld [vmem:[%s5 + $0x78] sm:$0xff]
  %v3525 = vld [vmem:[%s5 + $0x80] sm:$0xff]
  %v3526 = vld [vmem:[%s5 + $0x88] sm:$0xff]
  %v3527 = vld [vmem:[%s5 + $0x90] sm:$0xff]
  %v3528 = vld [vmem:[%s5 + $0x98] sm:$0xff]
  %v3529 = vld [vmem:[%s5 + $0xa0] sm:$0xff]
  %v3530 = vld [vmem:[%s5 + $0xa8] sm:$0xff]
  %v3531 = vld [vmem:[%s5 + $0xb0] sm:$0xff]
  %v3532 = vld [vmem:[%s5 + $0xb8] sm:$0xff]
  %v3533 = vld [vmem:[%s5 + $0xc0] sm:$0xff]
  %v3534 = vld [vmem:[%s5 + $0xc8] sm:$0xff]
  %v3535 = vld [vmem:[%s5 + $0xd0] sm:$0xff]
  %v3536 = vld [vmem:[%s5 + $0xd8] sm:$0xff]
  %v3537 = vld [vmem:[%s5 + $0xe0] sm:$0xff]
  %v3538 = vld [vmem:[%s5 + $0xe8] sm:$0xff]
  %v3539 = vld [vmem:[%s5 + $0xf0] sm:$0xff]
  %v3540 = vld [vmem:[%s5 + $0xf8] sm:$0xff]
  %v3541 = vld [vmem:[%s5 + $0x100] sm:$0xff]
  %v3542 = vld [vmem:[%s5 + $0x108] sm:$0xff]
  %v3543 = vld [vmem:[%s5 + $0x110] sm:$0xff]
  %v3544 = vld [vmem:[%s5 + $0x118] sm:$0xff]
  %v3545 = vld [vmem:[%s5 + $0x120] sm:$0xff]
  %v3546 = vld [vmem:[%s5 + $0x128] sm:$0xff]
  %v3547 = vld [vmem:[%s5 + $0x130] sm:$0xff]
  %v3548 = vld [vmem:[%s5 + $0x138] sm:$0xff]
  %v3549 = vld [vmem:[%s5 + $0x140] sm:$0xff]
  %v3550 = vld [vmem:[%s5 + $0x148] sm:$0xff]
  %v3551 = vld [vmem:[%s5 + $0x150] sm:$0xff]
  %v3552 = vld [vmem:[%s5 + $0x158] sm:$0xff]
  %v3553 = vld [vmem:[%s5 + $0x160] sm:$0xff]
  %v3554 = vld [vmem:[%s5 + $0x168] sm:$0xff]
  %v3555 = vld [vmem:[%s5 + $0x170] sm:$0xff]
  %v3556 = vld [vmem:[%s5 + $0x178] sm:$0xff]
  %v3557 = vld [vmem:[%s5 + $0x180] sm:$0xff]
  %v3558 = vld [vmem:[%s5 + $0x188] sm:$0xff]
  %v3559 = vld [vmem:[%s5 + $0x190] sm:$0xff]
  %v3560 = vld [vmem:[%s5 + $0x198] sm:$0xff]
  %v3561 = vld [vmem:[%s5 + $0x1a0] sm:$0xff]
  %v3562 = vld [vmem:[%s5 + $0x1a8] sm:$0xff]
  %v3563 = vld [vmem:[%s5 + $0x1b0] sm:$0xff]
  %v3564 = vld [vmem:[%s5 + $0x1b8] sm:$0xff]
  %v3565 = vld [vmem:[%s5 + $0x1c0] sm:$0xff]
  %v3566 = vld [vmem:[%s5 + $0x1c8] sm:$0xff]
  %v3567 = vld [vmem:[%s5 + $0x1d0] sm:$0xff]
  %v3568 = vld [vmem:[%s5 + $0x1d8] sm:$0xff]
  %v3569 = vld [vmem:[%s5 + $0x1e0] sm:$0xff]
  %v3570 = vld [vmem:[%s5 + $0x1e8] sm:$0xff]
  %v3571 = vld [vmem:[%s5 + $0x1f0] sm:$0xff]
  %v3572 = vld [vmem:[%s5 + $0x1f8] sm:$0xff]
  %v3637 = vunpack.c.l.b16 %v3509
  %v3638 = vunpack.c.h.b16 %v3509
  %v3639 = vunpack.c.l.b16 %v3510
  %v3640 = vunpack.c.h.b16 %v3510
  %v3641 = vunpack.c.l.b16 %v3511
  %v3642 = vunpack.c.h.b16 %v3511
  %v3643 = vunpack.c.l.b16 %v3512
  %v3644 = vunpack.c.h.b16 %v3512
  %v3645 = vunpack.c.l.b16 %v3513
  %v3646 = vunpack.c.h.b16 %v3513
  %v3647 = vunpack.c.l.b16 %v3514
  %v3648 = vunpack.c.h.b16 %v3514
  %v3649 = vunpack.c.l.b16 %v3515
  %v3650 = vunpack.c.h.b16 %v3515
  %v3651 = vunpack.c.l.b16 %v3516
  %v3652 = vunpack.c.h.b16 %v3516
  %v3653 = vunpack.c.l.b16 %v3517
  %v3654 = vunpack.c.h.b16 %v3517
  %v3655 = vunpack.c.l.b16 %v3518
  %v3656 = vunpack.c.h.b16 %v3518
  %v3657 = vunpack.c.l.b16 %v3519
  %v3658 = vunpack.c.h.b16 %v3519
  %v3659 = vunpack.c.l.b16 %v3520
  %v3660 = vunpack.c.h.b16 %v3520
  %v3661 = vunpack.c.l.b16 %v3521
  %v3662 = vunpack.c.h.b16 %v3521
  %v3663 = vunpack.c.l.b16 %v3522
  %v3664 = vunpack.c.h.b16 %v3522
  %v3665 = vunpack.c.l.b16 %v3523
  %v3666 = vunpack.c.h.b16 %v3523
  %v3667 = vunpack.c.l.b16 %v3524
  %v3668 = vunpack.c.h.b16 %v3524
  %v3669 = vunpack.c.l.b16 %v3525
  %v3670 = vunpack.c.h.b16 %v3525
  %v3671 = vunpack.c.l.b16 %v3526
  %v3672 = vunpack.c.h.b16 %v3526
  %v3673 = vunpack.c.l.b16 %v3527
  %v3674 = vunpack.c.h.b16 %v3527
  %v3675 = vunpack.c.l.b16 %v3528
  %v3676 = vunpack.c.h.b16 %v3528
  %v3677 = vunpack.c.l.b16 %v3529
  %v3678 = vunpack.c.h.b16 %v3529
  %v3679 = vunpack.c.l.b16 %v3530
  %v3680 = vunpack.c.h.b16 %v3530
  %v3681 = vunpack.c.l.b16 %v3531
  %v3682 = vunpack.c.h.b16 %v3531
  %v3683 = vunpack.c.l.b16 %v3532
  %v3684 = vunpack.c.h.b16 %v3532
  %v3685 = vunpack.c.l.b16 %v3533
  %v3686 = vunpack.c.h.b16 %v3533
  %v3687 = vunpack.c.l.b16 %v3534
  %v3688 = vunpack.c.h.b16 %v3534
  %v3689 = vunpack.c.l.b16 %v3535
  %v3690 = vunpack.c.h.b16 %v3535
  %v3691 = vunpack.c.l.b16 %v3536
  %v3692 = vunpack.c.h.b16 %v3536
  %v3693 = vunpack.c.l.b16 %v3537
  %v3694 = vunpack.c.h.b16 %v3537
  %v3695 = vunpack.c.l.b16 %v3538
  %v3696 = vunpack.c.h.b16 %v3538
  %v3697 = vunpack.c.l.b16 %v3539
  %v3698 = vunpack.c.h.b16 %v3539
  %v3699 = vunpack.c.l.b16 %v3540
  %v3700 = vunpack.c.h.b16 %v3540
  %v3701 = vunpack.c.l.b16 %v3541
  %v3702 = vunpack.c.h.b16 %v3541
  %v3703 = vunpack.c.l.b16 %v3542
  %v3704 = vunpack.c.h.b16 %v3542
  %v3705 = vunpack.c.l.b16 %v3543
  %v3706 = vunpack.c.h.b16 %v3543
  %v3707 = vunpack.c.l.b16 %v3544
  %v3708 = vunpack.c.h.b16 %v3544
  %v3709 = vunpack.c.l.b16 %v3545
  %v3710 = vunpack.c.h.b16 %v3545
  %v3711 = vunpack.c.l.b16 %v3546
  %v3712 = vunpack.c.h.b16 %v3546
  %v3713 = vunpack.c.l.b16 %v3547
  %v3714 = vunpack.c.h.b16 %v3547
  %v3715 = vunpack.c.l.b16 %v3548
  %v3716 = vunpack.c.h.b16 %v3548
  %v3717 = vunpack.c.l.b16 %v3549
  %v3718 = vunpack.c.h.b16 %v3549
  %v3719 = vunpack.c.l.b16 %v3550
  %v3720 = vunpack.c.h.b16 %v3550
  %v3721 = vunpack.c.l.b16 %v3551
  %v3722 = vunpack.c.h.b16 %v3551
  %v3723 = vunpack.c.l.b16 %v3552
  %v3724 = vunpack.c.h.b16 %v3552
  %v3725 = vunpack.c.l.b16 %v3553
  %v3726 = vunpack.c.h.b16 %v3553
  %v3727 = vunpack.c.l.b16 %v3554
  %v3728 = vunpack.c.h.b16 %v3554
  %v3729 = vunpack.c.l.b16 %v3555
  %v3730 = vunpack.c.h.b16 %v3555
  %v3731 = vunpack.c.l.b16 %v3556
  %v3732 = vunpack.c.h.b16 %v3556
  %v3733 = vunpack.c.l.b16 %v3557
  %v3734 = vunpack.c.h.b16 %v3557
  %v3735 = vunpack.c.l.b16 %v3558
  %v3736 = vunpack.c.h.b16 %v3558
  %v3737 = vunpack.c.l.b16 %v3559
  %v3738 = vunpack.c.h.b16 %v3559
  %v3739 = vunpack.c.l.b16 %v3560
  %v3740 = vunpack.c.h.b16 %v3560
  %v3741 = vunpack.c.l.b16 %v3561
  %v3742 = vunpack.c.h.b16 %v3561
  %v3743 = vunpack.c.l.b16 %v3562
  %v3744 = vunpack.c.h.b16 %v3562
  %v3745 = vunpack.c.l.b16 %v3563
  %v3746 = vunpack.c.h.b16 %v3563
  %v3747 = vunpack.c.l.b16 %v3564
  %v3748 = vunpack.c.h.b16 %v3564
  %v3749 = vunpack.c.l.b16 %v3565
  %v3750 = vunpack.c.h.b16 %v3565
  %v3751 = vunpack.c.l.b16 %v3566
  %v3752 = vunpack.c.h.b16 %v3566
  %v3753 = vunpack.c.l.b16 %v3567
  %v3754 = vunpack.c.h.b16 %v3567
  %v3755 = vunpack.c.l.b16 %v3568
  %v3756 = vunpack.c.h.b16 %v3568
  %v3757 = vunpack.c.l.b16 %v3569
  %v3758 = vunpack.c.h.b16 %v3569
  %v3759 = vunpack.c.l.b16 %v3570
  %v3760 = vunpack.c.h.b16 %v3570
  %v3761 = vunpack.c.l.b16 %v3571
  %v3762 = vunpack.c.h.b16 %v3571
  %v3763 = vunpack.c.l.b16 %v3572
  %v3764 = vunpack.c.h.b16 %v3572
  %v3765 = vpack.c.b16 %v3639, %v3637
  %v3766 = vpack.c.b16 %v3640, %v3638
  %v3767 = vpack.c.b16 %v3643, %v3641
  %v3768 = vpack.c.b16 %v3644, %v3642
  %v3769 = vpack.c.b16 %v3647, %v3645
  %v3770 = vpack.c.b16 %v3648, %v3646
  %v3771 = vpack.c.b16 %v3651, %v3649
  %v3772 = vpack.c.b16 %v3652, %v3650
  %v3773 = vpack.c.b16 %v3655, %v3653
  %v3774 = vpack.c.b16 %v3656, %v3654
  %v3775 = vpack.c.b16 %v3659, %v3657
  %v3776 = vpack.c.b16 %v3660, %v3658
  %v3777 = vpack.c.b16 %v3663, %v3661
  %v3778 = vpack.c.b16 %v3664, %v3662
  %v3779 = vpack.c.b16 %v3667, %v3665
  %v3780 = vpack.c.b16 %v3668, %v3666
  %v3781 = vpack.c.b16 %v3671, %v3669
  %v3782 = vpack.c.b16 %v3672, %v3670
  %v3783 = vpack.c.b16 %v3675, %v3673
  %v3784 = vpack.c.b16 %v3676, %v3674
  %v3785 = vpack.c.b16 %v3679, %v3677
  %v3786 = vpack.c.b16 %v3680, %v3678
  %v3787 = vpack.c.b16 %v3683, %v3681
  %v3788 = vpack.c.b16 %v3684, %v3682
  %v3789 = vpack.c.b16 %v3687, %v3685
  %v3790 = vpack.c.b16 %v3688, %v3686
  %v3791 = vpack.c.b16 %v3691, %v3689
  %v3792 = vpack.c.b16 %v3692, %v3690
  %v3793 = vpack.c.b16 %v3695, %v3693
  %v3794 = vpack.c.b16 %v3696, %v3694
  %v3795 = vpack.c.b16 %v3699, %v3697
  %v3796 = vpack.c.b16 %v3700, %v3698
  %v3797 = vpack.c.b16 %v3703, %v3701
  %v3798 = vpack.c.b16 %v3704, %v3702
  %v3799 = vpack.c.b16 %v3707, %v3705
  %v3800 = vpack.c.b16 %v3708, %v3706
  %v3801 = vpack.c.b16 %v3711, %v3709
  %v3802 = vpack.c.b16 %v3712, %v3710
  %v3803 = vpack.c.b16 %v3715, %v3713
  %v3804 = vpack.c.b16 %v3716, %v3714
  %v3805 = vpack.c.b16 %v3719, %v3717
  %v3806 = vpack.c.b16 %v3720, %v3718
  %v3807 = vpack.c.b16 %v3723, %v3721
  %v3808 = vpack.c.b16 %v3724, %v3722
  %v3809 = vpack.c.b16 %v3727, %v3725
  %v3810 = vpack.c.b16 %v3728, %v3726
  %v3811 = vpack.c.b16 %v3731, %v3729
  %v3812 = vpack.c.b16 %v3732, %v3730
  %v3813 = vpack.c.b16 %v3735, %v3733
  %v3814 = vpack.c.b16 %v3736, %v3734
  %v3815 = vpack.c.b16 %v3739, %v3737
  %v3816 = vpack.c.b16 %v3740, %v3738
  %v3817 = vpack.c.b16 %v3743, %v3741
  %v3818 = vpack.c.b16 %v3744, %v3742
  %v3819 = vpack.c.b16 %v3747, %v3745
  %v3820 = vpack.c.b16 %v3748, %v3746
  %v3821 = vpack.c.b16 %v3751, %v3749
  %v3822 = vpack.c.b16 %v3752, %v3750
  %v3823 = vpack.c.b16 %v3755, %v3753
  %v3824 = vpack.c.b16 %v3756, %v3754
  %v3825 = vpack.c.b16 %v3759, %v3757
  %v3826 = vpack.c.b16 %v3760, %v3758
  %v3827 = vpack.c.b16 %v3763, %v3761
  %v3828 = vpack.c.b16 %v3764, %v3762
  %3893 = vmatprep.subr.bf16.mxu0 %v3780
  %3894 = vmatpush1.bf16.msra.mxu0 %v3779
  %3895 = vmatprep.subr.bf16.mxu0 %v3778
  %3896 = vmatpush1.bf16.msra.mxu0 %v3777
  %3897 = vmatprep.subr.bf16.mxu0 %v3776
  %3898 = vmatpush1.bf16.msra.mxu0 %v3775
  %3899 = vmatprep.subr.bf16.mxu0 %v3774
  %3900 = vmatpush1.bf16.msra.mxu0 %v3773
  %3901 = vmatprep.subr.bf16.mxu0 %v3772
  %3902 = vmatpush1.bf16.msra.mxu0 %v3771
  %3903 = vmatprep.subr.bf16.mxu0 %v3770
  %3904 = vmatpush1.bf16.msra.mxu0 %v3769
  %3905 = vmatprep.subr.bf16.mxu0 %v3768
  %3906 = vmatpush1.bf16.msra.mxu0 %v3767
  %3907 = vmatprep.subr.bf16.mxu0 %v3766
  %3908 = vmatpush1.bf16.msra.mxu0 %v3765
  %3909 = vmatprep.subr.bf16.mxu0 %v3796
  %3910 = vmatpush2.bf16.msra.mxu0 %v3795
  %3911 = vmatprep.subr.bf16.mxu0 %v3794
  %3912 = vmatpush2.bf16.msra.mxu0 %v3793
  %3913 = vmatprep.subr.bf16.mxu0 %v3792
  %3914 = vmatpush2.bf16.msra.mxu0 %v3791
  %3915 = vmatprep.subr.bf16.mxu0 %v3790
  %3916 = vmatpush2.bf16.msra.mxu0 %v3789
  %3917 = vmatprep.subr.bf16.mxu0 %v3788
  %3918 = vmatpush2.bf16.msra.mxu0 %v3787
  %3919 = vmatprep.subr.bf16.mxu0 %v3786
  %3920 = vmatpush2.bf16.msra.mxu0 %v3785
  %3921 = vmatprep.subr.bf16.mxu0 %v3784
  %3922 = vmatpush2.bf16.msra.mxu0 %v3783
  %3923 = vmatprep.subr.bf16.mxu0 %v3782
  %3924 = vmatpush2.bf16.msra.mxu0 %v3781
  %3925 = vmatprep.mubr.bf16.mxu0 %v3494
  %3926 = vmatmul.mubr.bf16.gmra.mxu0 %v3493
  %v3927 = vpop.f32.mrf.mxu0
  %v3928 = vadd.f32 0.0, %v3927
  %v3929 = vpop.f32.mrf.mxu0
  %v3930 = vadd.f32 0.0, %v3929
  %v3931 = vpop.f32.mrf.mxu0
  %v3932 = vadd.f32 0.0, %v3931
  %v3933 = vpop.f32.mrf.mxu0
  %v3934 = vadd.f32 0.0, %v3933
  %3935 = vmatprep.mubr.bf16.mxu0 %v3498
  %3936 = vmatmul.mubr.bf16.gmra.mxu0 %v3497
  %v3937 = vpop.f32.mrf.mxu0
  %v3938 = vadd.f32 0.0, %v3937
  %v3939 = vpop.f32.mrf.mxu0
  %v3940 = vadd.f32 0.0, %v3939
  %v3941 = vpop.f32.mrf.mxu0
  %v3942 = vadd.f32 0.0, %v3941
  %v3943 = vpop.f32.mrf.mxu0
  %v3944 = vadd.f32 0.0, %v3943
  %3945 = vmatprep.mubr.bf16.mxu0 %v3502
  %3946 = vmatmul.mubr.bf16.gmra.mxu0 %v3501
  %v3947 = vpop.f32.mrf.mxu0
  %v3948 = vadd.f32 0.0, %v3947
  %v3949 = vpop.f32.mrf.mxu0
  %v3950 = vadd.f32 0.0, %v3949
  %v3951 = vpop.f32.mrf.mxu0
  %v3952 = vadd.f32 0.0, %v3951
  %v3953 = vpop.f32.mrf.mxu0
  %v3954 = vadd.f32 0.0, %v3953
  %3955 = vmatprep.mubr.bf16.mxu0 %v3506
  %3956 = vmatmul.mubr.bf16.gmra.mxu0 %v3505
  %v3957 = vpop.f32.mrf.mxu0
  %v3958 = vadd.f32 0.0, %v3957
  %v3959 = vpop.f32.mrf.mxu0
  %v3960 = vadd.f32 0.0, %v3959
  %v3961 = vpop.f32.mrf.mxu0
  %v3962 = vpop.f32.mrf.mxu0
  %3963 = vdwg.mxu0
  %3964 = vmatprep.subr.bf16.mxu0 %v3812
  %3965 = vmatpush1.bf16.msra.mxu0 %v3811
  %3966 = vmatprep.subr.bf16.mxu0 %v3810
  %3967 = vmatpush1.bf16.msra.mxu0 %v3809
  %3968 = vmatprep.subr.bf16.mxu0 %v3808
  %3969 = vmatpush1.bf16.msra.mxu0 %v3807
  %3970 = vmatprep.subr.bf16.mxu0 %v3806
  %3971 = vmatpush1.bf16.msra.mxu0 %v3805
  %3972 = vmatprep.subr.bf16.mxu0 %v3804
  %3973 = vmatpush1.bf16.msra.mxu0 %v3803
  %3974 = vmatprep.subr.bf16.mxu0 %v3802
  %3975 = vmatpush1.bf16.msra.mxu0 %v3801
  %3976 = vmatprep.subr.bf16.mxu0 %v3800
  %3977 = vmatpush1.bf16.msra.mxu0 %v3799
  %3978 = vmatprep.subr.bf16.mxu0 %v3798
  %3979 = vmatpush1.bf16.msra.mxu0 %v3797
  %3980 = vmatprep.subr.bf16.mxu0 %v3828
  %3981 = vmatpush2.bf16.msra.mxu0 %v3827
  %3982 = vmatprep.subr.bf16.mxu0 %v3826
  %3983 = vmatpush2.bf16.msra.mxu0 %v3825
  %3984 = vmatprep.subr.bf16.mxu0 %v3824
  %3985 = vmatpush2.bf16.msra.mxu0 %v3823
  %3986 = vmatprep.subr.bf16.mxu0 %v3822
  %3987 = vmatpush2.bf16.msra.mxu0 %v3821
  %3988 = vmatprep.subr.bf16.mxu0 %v3820
  %3989 = vmatpush2.bf16.msra.mxu0 %v3819
  %3990 = vmatprep.subr.bf16.mxu0 %v3818
  %3991 = vmatpush2.bf16.msra.mxu0 %v3817
  %3992 = vmatprep.subr.bf16.mxu0 %v3816
  %3993 = vmatpush2.bf16.msra.mxu0 %v3815
  %3994 = vmatprep.subr.bf16.mxu0 %v3814
  %3995 = vmatpush2.bf16.msra.mxu0 %v3813
  %3996 = vmatprep.mubr.bf16.mxu0 %v3496
  %3997 = vmatmul.mubr.bf16.gmra.mxu0 %v3495
  %v3998 = vpop.f32.mrf.mxu0
  %v3999 = vadd.f32 %v3928, %v3998
  %v4000 = vpop.f32.mrf.mxu0
  %v4001 = vadd.f32 %v3930, %v4000
  %v4002 = vpop.f32.mrf.mxu0
  %v4003 = vadd.f32 %v3932, %v4002
  %v4004 = vpop.f32.mrf.mxu0
  %v4005 = vadd.f32 %v3934, %v4004
  %4006 = vmatprep.mubr.bf16.mxu0 %v3500
  %4007 = vmatmul.mubr.bf16.gmra.mxu0 %v3499
  %v4008 = vpop.f32.mrf.mxu0
  %v4009 = vadd.f32 %v3938, %v4008
  %v4010 = vpop.f32.mrf.mxu0
  %v4011 = vadd.f32 %v3940, %v4010
  %v4012 = vpop.f32.mrf.mxu0
  %v4013 = vadd.f32 %v3942, %v4012
  %v4014 = vpop.f32.mrf.mxu0
  %v4015 = vadd.f32 %v3944, %v4014
  %4016 = vmatprep.mubr.bf16.mxu0 %v3504
  %4017 = vmatmul.mubr.bf16.gmra.mxu0 %v3503
  %v4018 = vpop.f32.mrf.mxu0
  %v4019 = vadd.f32 %v3948, %v4018
  %v4020 = vpop.f32.mrf.mxu0
  %v4021 = vadd.f32 %v3950, %v4020
  %v4022 = vpop.f32.mrf.mxu0
  %v4023 = vadd.f32 %v3952, %v4022
  %v4024 = vpop.f32.mrf.mxu0
  %v4025 = vadd.f32 %v3954, %v4024
  %4026 = vmatprep.mubr.bf16.mxu0 %v3508
  %4027 = vmatmul.mubr.bf16.gmra.mxu0 %v3507
  %v4028 = vpop.f32.mrf.mxu0
  %v4029 = vadd.f32 %v3958, %v4028
  %v4030 = vpop.f32.mrf.mxu0
  %v4031 = vadd.f32 %v3960, %v4030
  %v4032 = vpop.f32.mrf.mxu0
  %v4033 = vpop.f32.mrf.mxu0
  %4034 = vdwg.mxu0
  %v4035 = vpack.c.bf16 %v3469, %v3465
  %v4036 = vpack.c.bf16 %v3470, %v3466
  %v4037 = vpack.c.bf16 %v3471, %v3467
  %v4038 = vpack.c.bf16 %v3472, %v3468
  %v4039 = vpack.c.bf16 %v3477, %v3473
  %v4040 = vpack.c.bf16 %v3478, %v3474
  %v4041 = vpack.c.bf16 %v3479, %v3475
  %v4042 = vpack.c.bf16 %v3480, %v3476
  %v4043 = vpack.c.bf16 %v3485, %v3481
  %v4044 = vpack.c.bf16 %v3486, %v3482
  %v4045 = vpack.c.bf16 %v3487, %v3483
  %v4046 = vpack.c.bf16 %v3488, %v3484
  %v4047 = vpack.c.bf16 %v3489, %v3489
  %v4048 = vpack.c.bf16 %v3490, %v3490
  %v4049 = vpack.c.bf16 %v3491, %v3491
  %v4050 = vpack.c.bf16 %v3492, %v3492
  %4051 = vmatprep.subr.bf16.mxu0 %v3780
  %4052 = vmatpush1.bf16.msra.mxu0 %v3779
  %4053 = vmatprep.subr.bf16.mxu0 %v3778
  %4054 = vmatpush1.bf16.msra.mxu0 %v3777
  %4055 = vmatprep.subr.bf16.mxu0 %v3776
  %4056 = vmatpush1.bf16.msra.mxu0 %v3775
  %4057 = vmatprep.subr.bf16.mxu0 %v3774
  %4058 = vmatpush1.bf16.msra.mxu0 %v3773
  %4059 = vmatprep.subr.bf16.mxu0 %v3772
  %4060 = vmatpush1.bf16.msra.mxu0 %v3771
  %4061 = vmatprep.subr.bf16.mxu0 %v3770
  %4062 = vmatpush1.bf16.msra.mxu0 %v3769
  %4063 = vmatprep.subr.bf16.mxu0 %v3768
  %4064 = vmatpush1.bf16.msra.mxu0 %v3767
  %4065 = vmatprep.subr.bf16.mxu0 %v3766
  %4066 = vmatpush1.bf16.msra.mxu0 %v3765
  %4067 = vmatprep.subr.bf16.mxu0 %v3796
  %4068 = vmatpush2.bf16.msra.mxu0 %v3795
  %4069 = vmatprep.subr.bf16.mxu0 %v3794
  %4070 = vmatpush2.bf16.msra.mxu0 %v3793
  %4071 = vmatprep.subr.bf16.mxu0 %v3792
  %4072 = vmatpush2.bf16.msra.mxu0 %v3791
  %4073 = vmatprep.subr.bf16.mxu0 %v3790
  %4074 = vmatpush2.bf16.msra.mxu0 %v3789
  %4075 = vmatprep.subr.bf16.mxu0 %v3788
  %4076 = vmatpush2.bf16.msra.mxu0 %v3787
  %4077 = vmatprep.subr.bf16.mxu0 %v3786
  %4078 = vmatpush2.bf16.msra.mxu0 %v3785
  %4079 = vmatprep.subr.bf16.mxu0 %v3784
  %4080 = vmatpush2.bf16.msra.mxu0 %v3783
  %4081 = vmatprep.subr.bf16.mxu0 %v3782
  %4082 = vmatpush2.bf16.msra.mxu0 %v3781
  %4083 = vmatprep.mubr.bf16.mxu0 %v4036
  %4084 = vmatmul.mubr.bf16.gmra.mxu0 %v4035
  %v4085 = vpop.f32.mrf.mxu0
  %v4086 = vadd.f32 0.0, %v4085
  %v4087 = vpop.f32.mrf.mxu0
  %v4088 = vadd.f32 0.0, %v4087
  %v4089 = vpop.f32.mrf.mxu0
  %v4090 = vadd.f32 0.0, %v4089
  %v4091 = vpop.f32.mrf.mxu0
  %v4092 = vadd.f32 0.0, %v4091
  %4093 = vmatprep.mubr.bf16.mxu0 %v4040
  %4094 = vmatmul.mubr.bf16.gmra.mxu0 %v4039
  %v4095 = vpop.f32.mrf.mxu0
  %v4096 = vadd.f32 0.0, %v4095
  %v4097 = vpop.f32.mrf.mxu0
  %v4098 = vadd.f32 0.0, %v4097
  %v4099 = vpop.f32.mrf.mxu0
  %v4100 = vadd.f32 0.0, %v4099
  %v4101 = vpop.f32.mrf.mxu0
  %v4102 = vadd.f32 0.0, %v4101
  %4103 = vmatprep.mubr.bf16.mxu0 %v4044
  %4104 = vmatmul.mubr.bf16.gmra.mxu0 %v4043
  %v4105 = vpop.f32.mrf.mxu0
  %v4106 = vadd.f32 0.0, %v4105
  %v4107 = vpop.f32.mrf.mxu0
  %v4108 = vadd.f32 0.0, %v4107
  %v4109 = vpop.f32.mrf.mxu0
  %v4110 = vadd.f32 0.0, %v4109
  %v4111 = vpop.f32.mrf.mxu0
  %v4112 = vadd.f32 0.0, %v4111
  %4113 = vmatprep.mubr.bf16.mxu0 %v4048
  %4114 = vmatmul.mubr.bf16.gmra.mxu0 %v4047
  %v4115 = vpop.f32.mrf.mxu0
  %v4116 = vadd.f32 0.0, %v4115
  %v4117 = vpop.f32.mrf.mxu0
  %v4118 = vadd.f32 0.0, %v4117
  %v4119 = vpop.f32.mrf.mxu0
  %v4120 = vpop.f32.mrf.mxu0
  %4121 = vdwg.mxu0
  %4122 = vmatprep.subr.bf16.mxu0 %v3812
  %4123 = vmatpush1.bf16.msra.mxu0 %v3811
  %4124 = vmatprep.subr.bf16.mxu0 %v3810
  %4125 = vmatpush1.bf16.msra.mxu0 %v3809
  %4126 = vmatprep.subr.bf16.mxu0 %v3808
  %4127 = vmatpush1.bf16.msra.mxu0 %v3807
  %4128 = vmatprep.subr.bf16.mxu0 %v3806
  %4129 = vmatpush1.bf16.msra.mxu0 %v3805
  %4130 = vmatprep.subr.bf16.mxu0 %v3804
  %4131 = vmatpush1.bf16.msra.mxu0 %v3803
  %4132 = vmatprep.subr.bf16.mxu0 %v3802
  %4133 = vmatpush1.bf16.msra.mxu0 %v3801
  %4134 = vmatprep.subr.bf16.mxu0 %v3800
  %4135 = vmatpush1.bf16.msra.mxu0 %v3799
  %4136 = vmatprep.subr.bf16.mxu0 %v3798
  %4137 = vmatpush1.bf16.msra.mxu0 %v3797
  %4138 = vmatprep.subr.bf16.mxu0 %v3828
  %4139 = vmatpush2.bf16.msra.mxu0 %v3827
  %4140 = vmatprep.subr.bf16.mxu0 %v3826
  %4141 = vmatpush2.bf16.msra.mxu0 %v3825
  %4142 = vmatprep.subr.bf16.mxu0 %v3824
  %4143 = vmatpush2.bf16.msra.mxu0 %v3823
  %4144 = vmatprep.subr.bf16.mxu0 %v3822
  %4145 = vmatpush2.bf16.msra.mxu0 %v3821
  %4146 = vmatprep.subr.bf16.mxu0 %v3820
  %4147 = vmatpush2.bf16.msra.mxu0 %v3819
  %4148 = vmatprep.subr.bf16.mxu0 %v3818
  %4149 = vmatpush2.bf16.msra.mxu0 %v3817
  %4150 = vmatprep.subr.bf16.mxu0 %v3816
  %4151 = vmatpush2.bf16.msra.mxu0 %v3815
  %4152 = vmatprep.subr.bf16.mxu0 %v3814
  %4153 = vmatpush2.bf16.msra.mxu0 %v3813
  %4154 = vmatprep.mubr.bf16.mxu0 %v4038
  %4155 = vmatmul.mubr.bf16.gmra.mxu0 %v4037
  %v4156 = vpop.f32.mrf.mxu0
  %v4157 = vadd.f32 %v4086, %v4156
  %v4158 = vpop.f32.mrf.mxu0
  %v4159 = vadd.f32 %v4088, %v4158
  %v4160 = vpop.f32.mrf.mxu0
  %v4161 = vadd.f32 %v4090, %v4160
  %v4162 = vpop.f32.mrf.mxu0
  %v4163 = vadd.f32 %v4092, %v4162
  %4164 = vmatprep.mubr.bf16.mxu0 %v4042
  %4165 = vmatmul.mubr.bf16.gmra.mxu0 %v4041
  %v4166 = vpop.f32.mrf.mxu0
  %v4167 = vadd.f32 %v4096, %v4166
  %v4168 = vpop.f32.mrf.mxu0
  %v4169 = vadd.f32 %v4098, %v4168
  %v4170 = vpop.f32.mrf.mxu0
  %v4171 = vadd.f32 %v4100, %v4170
  %v4172 = vpop.f32.mrf.mxu0
  %v4173 = vadd.f32 %v4102, %v4172
  %4174 = vmatprep.mubr.bf16.mxu0 %v4046
  %4175 = vmatmul.mubr.bf16.gmra.mxu0 %v4045
  %v4176 = vpop.f32.mrf.mxu0
  %v4177 = vadd.f32 %v4106, %v4176
  %v4178 = vpop.f32.mrf.mxu0
  %v4179 = vadd.f32 %v4108, %v4178
  %v4180 = vpop.f32.mrf.mxu0
  %v4181 = vadd.f32 %v4110, %v4180
  %v4182 = vpop.f32.mrf.mxu0
  %v4183 = vadd.f32 %v4112, %v4182
  %4184 = vmatprep.mubr.bf16.mxu0 %v4050
  %4185 = vmatmul.mubr.bf16.gmra.mxu0 %v4049
  %v4186 = vpop.f32.mrf.mxu0
  %v4187 = vadd.f32 %v4116, %v4186
  %v4188 = vpop.f32.mrf.mxu0
  %v4189 = vadd.f32 %v4118, %v4188
  %v4190 = vpop.f32.mrf.mxu0
  %v4191 = vpop.f32.mrf.mxu0
  %4192 = vdwg.mxu0
  %v4193 = vld [vmem:[%s6] sm:$0x3]
  %v4194 = vld [vmem:[%s7] sm:$0x3]
  %v4195 = vadd.f32 %v3999, %v4003
  %v4196 = vadd.f32 %v4195, %v4009
  %v4197 = vadd.f32 %v4196, %v4013
  %v4198 = vadd.f32 %v4197, %v4019
  %v4199 = vadd.f32 %v4198, %v4023
  %v4200 = vsel %vm171, %v4029, 0.0
  %v4201 = vadd.f32 %v4199, %v4200
  %v4202 = vrot.slane %v4201, 4
  %v4203 = vadd.f32 %v4201, %v4202
  %v4204 = vrot.slane %v4203, 2
  %v4205 = vadd.f32 %v4203, %v4204
  %v4206 = vrot.slane %v4205, 1
  %v4207 = vadd.f32 %v4205, %v4206
  %v4208 = vadd.f32 %v4001, %v4005
  %v4209 = vadd.f32 %v4208, %v4011
  %v4210 = vadd.f32 %v4209, %v4015
  %v4211 = vadd.f32 %v4210, %v4021
  %v4212 = vadd.f32 %v4211, %v4025
  %v4213 = vsel %vm171, %v4031, 0.0
  %v4214 = vadd.f32 %v4212, %v4213
  %v4215 = vrot.slane %v4214, 4
  %v4216 = vadd.f32 %v4214, %v4215
  %v4217 = vrot.slane %v4216, 2
  %v4218 = vadd.f32 %v4216, %v4217
  %v4219 = vrot.slane %v4218, 1
  %v4220 = vadd.f32 %v4218, %v4219
  %v4221 = vadd.f32 %v4207, 0.0
  %v4222 = vadd.f32 %v4220, 0.0
  %v4223 = vadd.f32 %v4157, %v4161
  %v4224 = vadd.f32 %v4223, %v4167
  %v4225 = vadd.f32 %v4224, %v4171
  %v4226 = vadd.f32 %v4225, %v4177
  %v4227 = vadd.f32 %v4226, %v4181
  %v4228 = vsel %vm171, %v4187, 0.0
  %v4229 = vadd.f32 %v4227, %v4228
  %v4230 = vrot.slane %v4229, 4
  %v4231 = vadd.f32 %v4229, %v4230
  %v4232 = vrot.slane %v4231, 2
  %v4233 = vadd.f32 %v4231, %v4232
  %v4234 = vrot.slane %v4233, 1
  %v4235 = vadd.f32 %v4233, %v4234
  %v4236 = vadd.f32 %v4159, %v4163
  %v4237 = vadd.f32 %v4236, %v4169
  %v4238 = vadd.f32 %v4237, %v4173
  %v4239 = vadd.f32 %v4238, %v4179
  %v4240 = vadd.f32 %v4239, %v4183
  %v4241 = vsel %vm171, %v4189, 0.0
  %v4242 = vadd.f32 %v4240, %v4241
  %v4243 = vrot.slane %v4242, 4
  %v4244 = vadd.f32 %v4242, %v4243
  %v4245 = vrot.slane %v4244, 2
  %v4246 = vadd.f32 %v4244, %v4245
  %v4247 = vrot.slane %v4246, 1
  %v4248 = vadd.f32 %v4246, %v4247
  %v4249 = vadd.f32 %v4221, %v4235
  %v4250 = vadd.f32 %v4222, %v4248
  %v4251 = vmul.f32 %v4249, %v2874
  %v4252 = vmul.f32 %v4250, %v2874
  %v4253 = vsub.f32 %v3999, %v4251
  %v4254 = vsub.f32 %v4001, %v4252
  %v4255 = vsub.f32 %v4003, %v4251
  %v4256 = vsub.f32 %v4005, %v4252
  %v4257 = vsub.f32 %v4009, %v4251
  %v4258 = vsub.f32 %v4011, %v4252
  %v4259 = vsub.f32 %v4013, %v4251
  %v4260 = vsub.f32 %v4015, %v4252
  %v4261 = vsub.f32 %v4019, %v4251
  %v4262 = vsub.f32 %v4021, %v4252
  %v4263 = vsub.f32 %v4023, %v4251
  %v4264 = vsub.f32 %v4025, %v4252
  %v4265 = vsub.f32 %v4029, %v4251
  %v4266 = vsub.f32 %v4031, %v4252
  %v4267 = vmul.f32 %v4253, %v4253
  %v4268 = vmul.f32 %v4254, %v4254
  %v4269 = vmul.f32 %v4255, %v4255
  %v4270 = vmul.f32 %v4256, %v4256
  %v4271 = vmul.f32 %v4257, %v4257
  %v4272 = vmul.f32 %v4258, %v4258
  %v4273 = vmul.f32 %v4259, %v4259
  %v4274 = vmul.f32 %v4260, %v4260
  %v4275 = vmul.f32 %v4261, %v4261
  %v4276 = vmul.f32 %v4262, %v4262
  %v4277 = vmul.f32 %v4263, %v4263
  %v4278 = vmul.f32 %v4264, %v4264
  %v4279 = vmul.f32 %v4265, %v4265
  %v4280 = vmul.f32 %v4266, %v4266
  %v4281 = vadd.f32 %v4267, %v4269
  %v4282 = vadd.f32 %v4281, %v4271
  %v4283 = vadd.f32 %v4282, %v4273
  %v4284 = vadd.f32 %v4283, %v4275
  %v4285 = vadd.f32 %v4284, %v4277
  %v4286 = vsel %vm171, %v4279, 0.0
  %v4287 = vadd.f32 %v4285, %v4286
  %v4288 = vrot.slane %v4287, 4
  %v4289 = vadd.f32 %v4287, %v4288
  %v4290 = vrot.slane %v4289, 2
  %v4291 = vadd.f32 %v4289, %v4290
  %v4292 = vrot.slane %v4291, 1
  %v4293 = vadd.f32 %v4291, %v4292
  %v4294 = vadd.f32 %v4268, %v4270
  %v4295 = vadd.f32 %v4294, %v4272
  %v4296 = vadd.f32 %v4295, %v4274
  %v4297 = vadd.f32 %v4296, %v4276
  %v4298 = vadd.f32 %v4297, %v4278
  %v4299 = vsel %vm171, %v4280, 0.0
  %v4300 = vadd.f32 %v4298, %v4299
  %v4301 = vrot.slane %v4300, 4
  %v4302 = vadd.f32 %v4300, %v4301
  %v4303 = vrot.slane %v4302, 2
  %v4304 = vadd.f32 %v4302, %v4303
  %v4305 = vrot.slane %v4304, 1
  %v4306 = vadd.f32 %v4304, %v4305
  %v4307 = vadd.f32 %v4293, 0.0
  %v4308 = vadd.f32 %v4306, 0.0
  %v4309 = vsub.f32 %v4157, %v4251
  %v4310 = vsub.f32 %v4159, %v4252
  %v4311 = vsub.f32 %v4161, %v4251
  %v4312 = vsub.f32 %v4163, %v4252
  %v4313 = vsub.f32 %v4167, %v4251
  %v4314 = vsub.f32 %v4169, %v4252
  %v4315 = vsub.f32 %v4171, %v4251
  %v4316 = vsub.f32 %v4173, %v4252
  %v4317 = vsub.f32 %v4177, %v4251
  %v4318 = vsub.f32 %v4179, %v4252
  %v4319 = vsub.f32 %v4181, %v4251
  %v4320 = vsub.f32 %v4183, %v4252
  %v4321 = vsub.f32 %v4187, %v4251
  %v4322 = vsub.f32 %v4189, %v4252
  %v4323 = vmul.f32 %v4309, %v4309
  %v4324 = vmul.f32 %v4310, %v4310
  %v4325 = vmul.f32 %v4311, %v4311
  %v4326 = vmul.f32 %v4312, %v4312
  %v4327 = vmul.f32 %v4313, %v4313
  %v4328 = vmul.f32 %v4314, %v4314
  %v4329 = vmul.f32 %v4315, %v4315
  %v4330 = vmul.f32 %v4316, %v4316
  %v4331 = vmul.f32 %v4317, %v4317
  %v4332 = vmul.f32 %v4318, %v4318
  %v4333 = vmul.f32 %v4319, %v4319
  %v4334 = vmul.f32 %v4320, %v4320
  %v4335 = vmul.f32 %v4321, %v4321
  %v4336 = vmul.f32 %v4322, %v4322
  %v4337 = vadd.f32 %v4323, %v4325
  %v4338 = vadd.f32 %v4337, %v4327
  %v4339 = vadd.f32 %v4338, %v4329
  %v4340 = vadd.f32 %v4339, %v4331
  %v4341 = vadd.f32 %v4340, %v4333
  %v4342 = vsel %vm171, %v4335, 0.0
  %v4343 = vadd.f32 %v4341, %v4342
  %v4344 = vrot.slane %v4343, 4
  %v4345 = vadd.f32 %v4343, %v4344
  %v4346 = vrot.slane %v4345, 2
  %v4347 = vadd.f32 %v4345, %v4346
  %v4348 = vrot.slane %v4347, 1
  %v4349 = vadd.f32 %v4347, %v4348
  %v4350 = vadd.f32 %v4324, %v4326
  %v4351 = vadd.f32 %v4350, %v4328
  %v4352 = vadd.f32 %v4351, %v4330
  %v4353 = vadd.f32 %v4352, %v4332
  %v4354 = vadd.f32 %v4353, %v4334
  %v4355 = vsel %vm171, %v4336, 0.0
  %v4356 = vadd.f32 %v4354, %v4355
  %v4357 = vrot.slane %v4356, 4
  %v4358 = vadd.f32 %v4356, %v4357
  %v4359 = vrot.slane %v4358, 2
  %v4360 = vadd.f32 %v4358, %v4359
  %v4361 = vrot.slane %v4360, 1
  %v4362 = vadd.f32 %v4360, %v4361
  %v4363 = vadd.f32 %v4307, %v4349
  %v4364 = vadd.f32 %v4308, %v4362
  %v4365 = vmul.f32 %v4363, %v2874
  %v4366 = vmul.f32 %v4364, %v2874
  %v4367 = vadd.f32 %v4365, 1e-05
  %v4368 = vadd.f32 %v4366, 1e-05
  %v4369 = vrsqrt.pop %v4367
  %v4370 = vrsqrt.pop %v4368
  %v4371 = vmul.f32 %v4253, %v4369
  %v4372 = vmul.f32 %v4254, %v4370
  %v4373 = vmul.f32 %v4255, %v4369
  %v4374 = vmul.f32 %v4256, %v4370
  %v4375 = vmul.f32 %v4257, %v4369
  %v4376 = vmul.f32 %v4258, %v4370
  %v4377 = vmul.f32 %v4259, %v4369
  %v4378 = vmul.f32 %v4260, %v4370
  %v4379 = vmul.f32 %v4261, %v4369
  %v4380 = vmul.f32 %v4262, %v4370
  %v4381 = vmul.f32 %v4263, %v4369
  %v4382 = vmul.f32 %v4264, %v4370
  %v4383 = vmul.f32 %v4265, %v4369
  %v4384 = vmul.f32 %v4266, %v4370
  %v4386 = vlaneseq
  %v4387 = vshrl.u32 %v4386, 7
  %v4388 = vsub.s32 0, %v4387
  %v4389 = vrot.slane %v4193, %v4388
  %v4390 = vlaneseq
  %v4391 = vshrl.u32 %v4390, 7
  %v4392 = vsub.s32 1, %v4391
  %v4393 = vrot.slane %v4193, %v4392
  %v4396 = vmul.f32 %v4371, %v4389
  %v4397 = vmul.f32 %v4372, %v4393
  %v4398 = vmul.f32 %v4373, %v4389
  %v4399 = vmul.f32 %v4374, %v4393
  %v4400 = vmul.f32 %v4375, %v4389
  %v4401 = vmul.f32 %v4376, %v4393
  %v4402 = vmul.f32 %v4377, %v4389
  %v4403 = vmul.f32 %v4378, %v4393
  %v4404 = vmul.f32 %v4379, %v4389
  %v4405 = vmul.f32 %v4380, %v4393
  %v4406 = vmul.f32 %v4381, %v4389
  %v4407 = vmul.f32 %v4382, %v4393
  %v4408 = vmul.f32 %v4383, %v4389
  %v4409 = vmul.f32 %v4384, %v4393
  %v4411 = vlaneseq
  %v4412 = vshrl.u32 %v4411, 7
  %v4413 = vsub.s32 0, %v4412
  %v4414 = vrot.slane %v4194, %v4413
  %v4415 = vlaneseq
  %v4416 = vshrl.u32 %v4415, 7
  %v4417 = vsub.s32 1, %v4416
  %v4418 = vrot.slane %v4194, %v4417
  %v4421 = vadd.f32 %v4396, %v4414
  %v4422 = vadd.f32 %v4397, %v4418
  %v4423 = vadd.f32 %v4398, %v4414
  %v4424 = vadd.f32 %v4399, %v4418
  %v4425 = vadd.f32 %v4400, %v4414
  %v4426 = vadd.f32 %v4401, %v4418
  %v4427 = vadd.f32 %v4402, %v4414
  %v4428 = vadd.f32 %v4403, %v4418
  %v4429 = vadd.f32 %v4404, %v4414
  %v4430 = vadd.f32 %v4405, %v4418
  %v4431 = vadd.f32 %v4406, %v4414
  %v4432 = vadd.f32 %v4407, %v4418
  %v4433 = vadd.f32 %v4408, %v4414
  %v4434 = vadd.f32 %v4409, %v4418
  %vm4435 = vcmp.ge.f32.partialorder %v4421, 0.0
  %vm4436 = vcmp.ge.f32.partialorder %v4422, 0.0
  %vm4437 = vcmp.ge.f32.partialorder %v4423, 0.0
  %vm4438 = vcmp.ge.f32.partialorder %v4424, 0.0
  %vm4439 = vcmp.ge.f32.partialorder %v4425, 0.0
  %vm4440 = vcmp.ge.f32.partialorder %v4426, 0.0
  %vm4441 = vcmp.ge.f32.partialorder %v4427, 0.0
  %vm4442 = vcmp.ge.f32.partialorder %v4428, 0.0
  %vm4443 = vcmp.ge.f32.partialorder %v4429, 0.0
  %vm4444 = vcmp.ge.f32.partialorder %v4430, 0.0
  %vm4445 = vcmp.ge.f32.partialorder %v4431, 0.0
  %vm4446 = vcmp.ge.f32.partialorder %v4432, 0.0
  %vm4447 = vcmp.ge.f32.partialorder %v4433, 0.0
  %vm4448 = vcmp.ge.f32.partialorder %v4434, 0.0
  %v4449 = vmul.f32 %v4421, 0.01
  %v4450 = vmul.f32 %v4422, 0.01
  %v4451 = vmul.f32 %v4423, 0.01
  %v4452 = vmul.f32 %v4424, 0.01
  %v4453 = vmul.f32 %v4425, 0.01
  %v4454 = vmul.f32 %v4426, 0.01
  %v4455 = vmul.f32 %v4427, 0.01
  %v4456 = vmul.f32 %v4428, 0.01
  %v4457 = vmul.f32 %v4429, 0.01
  %v4458 = vmul.f32 %v4430, 0.01
  %v4459 = vmul.f32 %v4431, 0.01
  %v4460 = vmul.f32 %v4432, 0.01
  %v4461 = vmul.f32 %v4433, 0.01
  %v4462 = vmul.f32 %v4434, 0.01
  %v4463 = vsel %vm4435, %v4421, %v4449
  %v4464 = vsel %vm4436, %v4422, %v4450
  %v4465 = vsel %vm4437, %v4423, %v4451
  %v4466 = vsel %vm4438, %v4424, %v4452
  %v4467 = vsel %vm4439, %v4425, %v4453
  %v4468 = vsel %vm4440, %v4426, %v4454
  %v4469 = vsel %vm4441, %v4427, %v4455
  %v4470 = vsel %vm4442, %v4428, %v4456
  %v4471 = vsel %vm4443, %v4429, %v4457
  %v4472 = vsel %vm4444, %v4430, %v4458
  %v4473 = vsel %vm4445, %v4431, %v4459
  %v4474 = vsel %vm4446, %v4432, %v4460
  %v4475 = vsel %vm4447, %v4433, %v4461
  %v4476 = vsel %vm4448, %v4434, %v4462
  %v4477 = vmul.f32 %v4309, %v4369
  %v4478 = vmul.f32 %v4310, %v4370
  %v4479 = vmul.f32 %v4311, %v4369
  %v4480 = vmul.f32 %v4312, %v4370
  %v4481 = vmul.f32 %v4313, %v4369
  %v4482 = vmul.f32 %v4314, %v4370
  %v4483 = vmul.f32 %v4315, %v4369
  %v4484 = vmul.f32 %v4316, %v4370
  %v4485 = vmul.f32 %v4317, %v4369
  %v4486 = vmul.f32 %v4318, %v4370
  %v4487 = vmul.f32 %v4319, %v4369
  %v4488 = vmul.f32 %v4320, %v4370
  %v4489 = vmul.f32 %v4321, %v4369
  %v4490 = vmul.f32 %v4322, %v4370
  %v4491 = vmul.f32 %v4477, %v4389
  %v4492 = vmul.f32 %v4478, %v4393
  %v4493 = vmul.f32 %v4479, %v4389
  %v4494 = vmul.f32 %v4480, %v4393
  %v4495 = vmul.f32 %v4481, %v4389
  %v4496 = vmul.f32 %v4482, %v4393
  %v4497 = vmul.f32 %v4483, %v4389
  %v4498 = vmul.f32 %v4484, %v4393
  %v4499 = vmul.f32 %v4485, %v4389
  %v4500 = vmul.f32 %v4486, %v4393
  %v4501 = vmul.f32 %v4487, %v4389
  %v4502 = vmul.f32 %v4488, %v4393
  %v4503 = vmul.f32 %v4489, %v4389
  %v4504 = vmul.f32 %v4490, %v4393
  %v4505 = vadd.f32 %v4491, %v4414
  %v4506 = vadd.f32 %v4492, %v4418
  %v4507 = vadd.f32 %v4493, %v4414
  %v4508 = vadd.f32 %v4494, %v4418
  %v4509 = vadd.f32 %v4495, %v4414
  %v4510 = vadd.f32 %v4496, %v4418
  %v4511 = vadd.f32 %v4497, %v4414
  %v4512 = vadd.f32 %v4498, %v4418
  %v4513 = vadd.f32 %v4499, %v4414
  %v4514 = vadd.f32 %v4500, %v4418
  %v4515 = vadd.f32 %v4501, %v4414
  %v4516 = vadd.f32 %v4502, %v4418
  %v4517 = vadd.f32 %v4503, %v4414
  %v4518 = vadd.f32 %v4504, %v4418
  %vm4519 = vcmp.ge.f32.partialorder %v4505, 0.0
  %vm4520 = vcmp.ge.f32.partialorder %v4506, 0.0
  %vm4521 = vcmp.ge.f32.partialorder %v4507, 0.0
  %vm4522 = vcmp.ge.f32.partialorder %v4508, 0.0
  %vm4523 = vcmp.ge.f32.partialorder %v4509, 0.0
  %vm4524 = vcmp.ge.f32.partialorder %v4510, 0.0
  %vm4525 = vcmp.ge.f32.partialorder %v4511, 0.0
  %vm4526 = vcmp.ge.f32.partialorder %v4512, 0.0
  %vm4527 = vcmp.ge.f32.partialorder %v4513, 0.0
  %vm4528 = vcmp.ge.f32.partialorder %v4514, 0.0
  %vm4529 = vcmp.ge.f32.partialorder %v4515, 0.0
  %vm4530 = vcmp.ge.f32.partialorder %v4516, 0.0
  %vm4531 = vcmp.ge.f32.partialorder %v4517, 0.0
  %vm4532 = vcmp.ge.f32.partialorder %v4518, 0.0
  %v4533 = vmul.f32 %v4505, 0.01
  %v4534 = vmul.f32 %v4506, 0.01
  %v4535 = vmul.f32 %v4507, 0.01
  %v4536 = vmul.f32 %v4508, 0.01
  %v4537 = vmul.f32 %v4509, 0.01
  %v4538 = vmul.f32 %v4510, 0.01
  %v4539 = vmul.f32 %v4511, 0.01
  %v4540 = vmul.f32 %v4512, 0.01
  %v4541 = vmul.f32 %v4513, 0.01
  %v4542 = vmul.f32 %v4514, 0.01
  %v4543 = vmul.f32 %v4515, 0.01
  %v4544 = vmul.f32 %v4516, 0.01
  %v4545 = vmul.f32 %v4517, 0.01
  %v4546 = vmul.f32 %v4518, 0.01
  %v4547 = vsel %vm4519, %v4505, %v4533
  %v4548 = vsel %vm4520, %v4506, %v4534
  %v4549 = vsel %vm4521, %v4507, %v4535
  %v4550 = vsel %vm4522, %v4508, %v4536
  %v4551 = vsel %vm4523, %v4509, %v4537
  %v4552 = vsel %vm4524, %v4510, %v4538
  %v4553 = vsel %vm4525, %v4511, %v4539
  %v4554 = vsel %vm4526, %v4512, %v4540
  %v4555 = vsel %vm4527, %v4513, %v4541
  %v4556 = vsel %vm4528, %v4514, %v4542
  %v4557 = vsel %vm4529, %v4515, %v4543
  %v4558 = vsel %vm4530, %v4516, %v4544
  %v4559 = vsel %vm4531, %v4517, %v4545
  %v4560 = vsel %vm4532, %v4518, %v4546
  %4561 = vst [vmem:[%s8] sm:$0xff] %v4463
  %4562 = vst [vmem:[%s8 + $0x8] sm:$0xff] %v4464
  %4563 = vst [vmem:[%s8 + $0x10] sm:$0xff] %v4465
  %4564 = vst [vmem:[%s8 + $0x18] sm:$0xff] %v4466
  %4565 = vst [vmem:[%s8 + $0x20] sm:$0xff] %v4467
  %4566 = vst [vmem:[%s8 + $0x28] sm:$0xff] %v4468
  %4567 = vst [vmem:[%s8 + $0x30] sm:$0xff] %v4469
  %4568 = vst [vmem:[%s8 + $0x38] sm:$0xff] %v4470
  %4569 = vst [vmem:[%s8 + $0x40] sm:$0xff] %v4471
  %4570 = vst [vmem:[%s8 + $0x48] sm:$0xff] %v4472
  %4571 = vst [vmem:[%s8 + $0x50] sm:$0xff] %v4473
  %4572 = vst [vmem:[%s8 + $0x58] sm:$0xff] %v4474
  %4573 = vst [vmem:[%s8 + $0x60] sm:$0x1] %v4475
  %4574 = vst [vmem:[%s8 + $0x68] sm:$0x1] %v4476
  %s4575 = scalar_lea.vmem %s8, 112
  %4576 = vst [vmem:[%s4575] sm:$0xff] %v4547
  %4577 = vst [vmem:[%s4575 + $0x8] sm:$0xff] %v4548
  %4578 = vst [vmem:[%s4575 + $0x10] sm:$0xff] %v4549
  %4579 = vst [vmem:[%s4575 + $0x18] sm:$0xff] %v4550
  %4580 = vst [vmem:[%s4575 + $0x20] sm:$0xff] %v4551
  %4581 = vst [vmem:[%s4575 + $0x28] sm:$0xff] %v4552
  %4582 = vst [vmem:[%s4575 + $0x30] sm:$0xff] %v4553
  %4583 = vst [vmem:[%s4575 + $0x38] sm:$0xff] %v4554
  %4584 = vst [vmem:[%s4575 + $0x40] sm:$0xff] %v4555
  %4585 = vst [vmem:[%s4575 + $0x48] sm:$0xff] %v4556
  %4586 = vst [vmem:[%s4575 + $0x50] sm:$0xff] %v4557
  %4587 = vst [vmem:[%s4575 + $0x58] sm:$0xff] %v4558
  %4588 = vst [vmem:[%s4575 + $0x60] sm:$0x1] %v4559
  %4589 = vst [vmem:[%s4575 + $0x68] sm:$0x1] %v4560
  // Predicated region
  $region34: #{graph_network_forward.4} parent=0 // pred_check
    _
  $region35: #{graph_network_forward.4} parent=0 // pred_check_branch
    %4591 = sbr.rel (0) target = $region37
  $region36: #{graph_network_forward.4} parent=0 // pred_region
    _
  $region37: #{graph_network_forward.4} parent=0 // pred_fallthru
    _
  // Predicated region
  $region38: #{graph_network_forward.4} parent=0 // pred_check
    _
  $region39: #{graph_network_forward.4} parent=0 // pred_check_branch
    %4593 = sbr.rel (0) target = $region41
  $region40: #{graph_network_forward.4} parent=0 // pred_region
    _
  $region41: #{graph_network_forward.4} parent=0 // pred_fallthru
    _

</llo_original>
